<compile_context>
chip_gen: v7x
topology: tpu7x:2x2x1
jax: 0.10.0
libtpu: 0.0.40
codegen_flags: <defaults>
</compile_context>

<pallas_src>
import functools

import jax
import jax.numpy as jnp
from jax.experimental import pallas as pl
from jax.experimental.pallas import tpu as pltpu


def _round_up(x, m):
    return (x + m - 1) // m * m


def _vmem_limit_bytes():
    # v5e/v6e: 128 MiB physical -> ~96 MiB budget; v7x: 64 MiB -> ~48 MiB.
    try:
        info = pltpu.get_tpu_info()
        cap = int(getattr(info, "vmem_capacity_bytes", 128 * 1024 * 1024))
    except Exception:  # pragma: no cover - conservative fallback
        cap = 64 * 1024 * 1024
    return min(cap * 3 // 4, 100 * 1024 * 1024)


VMEM_LIMIT = _vmem_limit_bytes()


def _cp(ndims):
    return pltpu.CompilerParams(dimension_semantics=("parallel",) * ndims,
                                vmem_limit_bytes=VMEM_LIMIT)


# ----------------------------------------------------------------------------
# Pallas kernels
# ----------------------------------------------------------------------------
def _conv_kxk_kernel(x_ref, w_ref, shift_ref, o_ref, acc_ref, *,
                     k, stride, Hph, Ho, TB, relu):
    """Inflated (1,k,k) conv + folded BN (+ReLU) on TB frames per grid step.

    x_ref:     (P, TB*Hph, Wp*Cin)   phase-major, lane-dense halo rows (bf16)
    w_ref:     (k, Wp*Cin, WoT*Cout) banded weights (BN scale folded, bf16)
    shift_ref: (1, WoT*Cout)         BN shift tiled over the Wo tile (f32)
    o_ref:     (TB, Ho, WoT*Cout)    lane-dense output (bf16)
    acc_ref:   (L, WoT*Cout) f32 VMEM accumulator, L = (TB-1)*Hph + Ho
    """
    L = (TB - 1) * Hph + Ho
    for dh in range(k):
        q, r0 = dh % stride, dh // stride
        part = jnp.dot(x_ref[q, r0:r0 + L, :], w_ref[dh],
                       preferred_element_type=jnp.float32)
        if dh == 0:
            acc_ref[...] = part
        else:
            acc_ref[...] += part
    for f in range(TB):
        y = acc_ref[f * Hph:f * Hph + Ho, :] + shift_ref[...]
        if relu:
            y = jnp.maximum(y, 0.0)
        o_ref[f] = y.astype(o_ref.dtype)


def _matmul_shift_kernel(x_ref, w_ref, shift_ref, o_ref, *, relu):
    acc = jnp.dot(x_ref[...], w_ref[...], preferred_element_type=jnp.float32)
    y = acc + shift_ref[...]
    if relu:
        y = jnp.maximum(y, 0.0)
    o_ref[...] = y.astype(o_ref.dtype)


def _matmul_shift_add_relu_kernel(x_ref, w_ref, shift_ref, res_ref, o_ref):
    acc = jnp.dot(x_ref[...], w_ref[...], preferred_element_type=jnp.float32)
    y = acc + shift_ref[...] + res_ref[...].astype(jnp.float32)
    o_ref[...] = jnp.maximum(y, 0.0).astype(o_ref.dtype)


def _maxpool_kernel(x_ref, o_ref, *, C, Ho, Wo):
    """3x3/2 max pool over 4 parity phases, lane-dense (Wph*C lanes).

    x_ref: (TB, 4, Hph, Wph*C), o_ref: (TB, Ho, Wo*C)
    """
    acc = None
    for dh in range(3):
        for dw in range(3):
            q = (dh % 2) * 2 + (dw % 2)
            r0, c0 = dh // 2, dw // 2
            t = x_ref[:, q, r0:r0 + Ho, c0 * C:(c0 + Wo) * C]
            acc = t if acc is None else jnp.maximum(acc, t)
    o_ref[...] = acc


def _head_kernel(x_ref, s_ref, t_ref, w_ref, b_ref, y_ref, f_ref):
    """Fused: spatial max-pool + temporal mean + BatchNorm1d + Linear."""
    x = x_ref[...].astype(jnp.float32)                   # (B, T, HW, C)
    feat = jnp.mean(jnp.max(x, axis=2), axis=1)          # (B, C)
    f = feat * s_ref[...] + t_ref[...]
    f_ref[...] = f
    y_ref[...] = (jnp.dot(f, w_ref[...], preferred_element_type=jnp.float32)
                  + b_ref[...])


# ----------------------------------------------------------------------------
# Tile-size helpers
# ----------------------------------------------------------------------------
def _pick_tm(M):
    # 256-row tiles (v6e/v7x MXU) when there is enough work; keep >=2 steps.
    if M >= 512:
        return 256
    if M >= 256:
        return 128
    return M


def _pick_wot(Wo, Cout, k, WpC, budget):
    """Largest Wo tile whose banded-weight block fits `budget` (128-aligned)."""
    divs = [d for d in range(1, Wo + 1) if Wo % d == 0]
    for wot in reversed(divs):
        ok_lane = (wot * Cout) % 128 == 0 or wot == Wo
        if ok_lane and k * WpC * wot * Cout * 2 <= budget:
            return wot
    for wot in divs:
        if (wot * Cout) % 128 == 0:
            return wot
    return Wo


def _pick_tb_conv(BT, P, Hph, WpC, Ho, WoC, extra, budget):
    cap = max(1, BT // 2)          # keep >= 2 grid steps (v7x has 2 TCs)
    tb = 1
    for d in range(1, cap + 1):
        if BT % d:
            continue
        step = (2 * (P * d * Hph * WpC * 2 + d * Ho * WoC * 2)  # dbl-buffered io
                + ((d - 1) * Hph + Ho) * WoC * 4                # f32 accumulator
                + extra)                                        # resident weights
        if step > budget:
            break
        tb = d
        if (d - 1) * Hph + Ho >= 256:                           # MXU rows filled
            break
    return tb


def _pick_tb_pool(BT, Hph, WphC, Ho, WoC, budget):
    cap = max(1, BT // 2)
    tb = 1
    for d in range(1, cap + 1):
        if BT % d:
            continue
        if 2 * d * (4 * Hph * WphC + Ho * WoC) * 2 > budget:
            break
        tb = d
    return tb


# ----------------------------------------------------------------------------
# Pallas wrappers
# ----------------------------------------------------------------------------
def matmul_shift(x, w, shift, *, relu, residual=None, out_dtype=jnp.bfloat16):
    """out = [relu]((x @ w) + shift [+ residual]); bf16 in, f32 accumulate."""
    M, K = x.shape
    N = w.shape[1]
    tm = _pick_tm(M)
    grid = (pl.cdiv(M, tm),)

    in_specs = [
        pl.BlockSpec((tm, K), lambda i: (i, 0)),
        pl.BlockSpec((K, N), lambda i: (0, 0)),
        pl.BlockSpec((1, N), lambda i: (0, 0)),
    ]
    args = [x, w, shift]
    if residual is not None:
        in_specs.append(pl.BlockSpec((tm, N), lambda i: (i, 0)))
        args.append(residual)
        kernel = _matmul_shift_add_relu_kernel
    else:
        kernel = functools.partial(_matmul_shift_kernel, relu=relu)

    return pl.pallas_call(
        kernel,
        out_shape=jax.ShapeDtypeStruct((M, N), out_dtype),
        grid=grid,
        in_specs=in_specs,
        out_specs=pl.BlockSpec((tm, N), lambda i: (i, 0)),
        compiler_params=_cp(1),
    )(*args)


def conv1x1_bn(x, p, *, relu=True, residual=None):
    """1x1 conv + folded BN (+ fused residual-add + ReLU). x: (BT,H,W,Cin)."""
    BT, H, W, C = x.shape
    N = p['w'].shape[1]
    X = x.reshape(BT * H * W, C)                       # free row-major reshape
    res = None if residual is None else residual.reshape(BT * H * W, N)
    out = matmul_shift(X, p['w'], p['shift'], relu=relu, residual=res)
    return out.reshape(BT, H, W, N)


def conv_kxk_bn(x, p, *, relu=True):
    """Inflated (1,k,k) conv + folded BN via banded weights. x: (BT,H,W,Cin)."""
    BT, H, W, C = x.shape
    k, s = p['k'], p['stride']
    pad = k // 2
    Hp, Wp = H + 2 * pad, W + 2 * pad
    assert Wp == p['Wp'], (Wp, p['Wp'])
    Ho = (Hp - k) // s + 1
    Wo, Cout = p['Wo'], p['cout']
    P = s
    assert Hp % s == 0
    Hph = Hp // s
    Hph_pad = _round_up(Hph, 8)        # keep merged (TB*Hph) sublane-aligned
    Hp_eff = s * Hph_pad

    # One pad: spatial halo + per-frame bottom rows so each phase plane is a
    # multiple of 8 rows; stride handled by row-phase split (no strided refs).
    xp = jnp.pad(x, ((0, 0), (pad, Hp_eff - H - pad), (pad, pad), (0, 0)))
    if s == 1:
        ph = xp[None]                                           # (1,BT,Hp,Wp,C)
    else:
        ph = jnp.stack([xp[:, q::s] for q in range(s)], axis=0)  # (s,BT,Hph,Wp,C)
    WpC = Wp * C
    ph = ph.reshape(P, BT * Hph_pad, WpC)

    # Wo tiling bounds the resident banded-weight block in VMEM (v7x: 64 MiB).
    wot = _pick_wot(Wo, Cout, k, WpC, budget=VMEM_LIMIT // 4)
    n_wot = Wo // wot
    WoTC = wot * Cout

    TB = _pick_tb_conv(BT, P, Hph_pad, WpC, Ho, WoTC,
                       extra=2 * k * WpC * WoTC * 2,
                       budget=int(VMEM_LIMIT * 0.6))
    L = (TB - 1) * Hph_pad + Ho
    grid = (BT // TB, n_wot)

    out = pl.pallas_call(
        functools.partial(_conv_kxk_kernel, k=k, stride=s, Hph=Hph_pad,
                          Ho=Ho, TB=TB, relu=relu),
        out_shape=jax.ShapeDtypeStruct((BT, Ho, Wo * Cout), jnp.bfloat16),
        grid=grid,
        in_specs=[
            pl.BlockSpec((P, TB * Hph_pad, WpC), lambda i, j: (0, i, 0)),
            pl.BlockSpec((k, WpC, WoTC), lambda i, j: (0, 0, j)),
            pl.BlockSpec((1, WoTC), lambda i, j: (0, j)),
        ],
        out_specs=pl.BlockSpec((TB, Ho, WoTC), lambda i, j: (i, 0, j)),
        scratch_shapes=[pltpu.VMEM((L, WoTC), jnp.float32)],
        compiler_params=_cp(2),
    )(ph, p['band'], p['shift'])
    return out.reshape(BT, Ho, Wo, Cout)


def maxpool_3x3_s2(x):
    """MaxPool3d kernel (1,3,3), stride (1,2,2), pad (0,1,1) -> per-frame 2D."""
    BT, H, W, C = x.shape
    pad_val = jnp.finfo(x.dtype).min
    xp = jnp.pad(x, ((0, 0), (1, 1), (1, 1), (0, 0)), constant_values=pad_val)
    Hp, Wp = H + 2, W + 2
    assert Hp % 2 == 0 and Wp % 2 == 0
    Hph, Wph = Hp // 2, Wp // 2
    Ho, Wo = (Hp - 3) // 2 + 1, (Wp - 3) // 2 + 1
    ph = jnp.stack([xp[:, 0::2, 0::2], xp[:, 0::2, 1::2],
                    xp[:, 1::2, 0::2], xp[:, 1::2, 1::2]], axis=1)
    ph = ph.reshape(BT, 4, Hph, Wph * C)               # lane-dense phases

    TB = _pick_tb_pool(BT, Hph, Wph * C, Ho, Wo * C, budget=int(VMEM_LIMIT * 0.6))
    out = pl.pallas_call(
        functools.partial(_maxpool_kernel, C=C, Ho=Ho, Wo=Wo),
        out_shape=jax.ShapeDtypeStruct((BT, Ho, Wo * C), x.dtype),
        grid=(BT // TB,),
        in_specs=[pl.BlockSpec((TB, 4, Hph, Wph * C), lambda i: (i, 0, 0, 0))],
        out_specs=pl.BlockSpec((TB, Ho, Wo * C), lambda i: (i, 0, 0)),
        compiler_params=_cp(1),
    )(ph)
    return out.reshape(BT, Ho, Wo, C)


def head_forward(x, hp, B, T):
    """F.max_pool2d over full spatial extent, mean over T, BN1d, Linear."""
    BT, H, W, C = x.shape
    xr = x.reshape(B, T, H * W, C)
    NC = hp['w'].shape[1]
    y, f = pl.pallas_call(
        _head_kernel,
        out_shape=(jax.ShapeDtypeStruct((B, NC), jnp.float32),
                   jax.ShapeDtypeStruct((B, C), jnp.float32)),
        grid=(1,),
        in_specs=[pl.BlockSpec((B, T, H * W, C), lambda i: (0, 0, 0, 0)),
                  pl.BlockSpec((1, C), lambda i: (0, 0)),
                  pl.BlockSpec((1, C), lambda i: (0, 0)),
                  pl.BlockSpec((C, NC), lambda i: (0, 0)),
                  pl.BlockSpec((1, NC), lambda i: (0, 0))],
        out_specs=(pl.BlockSpec((B, NC), lambda i: (0, 0)),
                   pl.BlockSpec((B, C), lambda i: (0, 0))),
        compiler_params=_cp(1),
    )(xr, hp['scale'], hp['shift'], hp['w'], hp['b'])
    return y, f


# ----------------------------------------------------------------------------
# Parameter construction (deterministic synthetic init, BN eval-folded)
# ----------------------------------------------------------------------------
def _conv_out(n, k, s, p):
    return (n + 2 * p - k) // s + 1


def _fold_bn(key, cout, eps=1e-5):
    gamma = 1.0 + 0.02 * jax.random.normal(key, (cout,), jnp.float32)
    beta = jnp.zeros((cout,), jnp.float32)
    mean = jnp.zeros((cout,), jnp.float32)
    var = jnp.ones((cout,), jnp.float32)
    scale = gamma / jnp.sqrt(var + eps)
    shift = beta - mean * scale
    return scale, shift


def build_band(wf, k, stride, Wp, Wo):
    """Banded weight (k, Wp*Cin, Wo*Cout) absorbing kernel-width & W-stride."""
    Cin, Cout = wf.shape[2], wf.shape[3]
    band = jnp.zeros((k, Wp, Cin, Wo, Cout), jnp.float32)
    for wo in range(Wo):
        for dw in range(k):
            wp = wo * stride + dw
            band = band.at[:, wp, :, wo, :].set(wf[:, dw, :, :])
    return band.reshape(k, Wp * Cin, Wo * Cout).astype(jnp.bfloat16)


def init_conv1x1_bn(key, cin, cout):
    kw_, kg_ = jax.random.split(key)
    w = jax.random.normal(kw_, (cin, cout), jnp.float32) * jnp.sqrt(2.0 / cout)
    scale, shift = _fold_bn(kg_, cout)
    return dict(k=1,
                w=(w * scale[None, :]).astype(jnp.bfloat16),
                shift=shift.reshape(1, cout).astype(jnp.float32))


def init_convk_bn(key, cin, cout, k, stride, w_in):
    kw_, kg_ = jax.random.split(key)
    fan_out = cout * k * k
    w4 = jax.random.normal(kw_, (k, k, cin, cout), jnp.float32) * jnp.sqrt(2.0 / fan_out)
    scale, shift = _fold_bn(kg_, cout)
    wf = w4 * scale[None, None, None, :]
    pad = k // 2
    Wp = w_in + 2 * pad
    Wo = (Wp - k) // stride + 1
    band = build_band(wf, k, stride, Wp, Wo)
    shift_t = jnp.tile(shift.reshape(1, cout), (1, Wo)).astype(jnp.float32)
    return dict(k=k, stride=stride, band=band, shift=shift_t,
                cin=cin, cout=cout, Wp=Wp, Wo=Wo)


def make_bottleneck_params(key, inplanes, planes, stride, w_in):
    keys = jax.random.split(key, 4)
    p = {
        'conv1': init_conv1x1_bn(keys[0], inplanes, planes),
        'conv2': init_convk_bn(keys[1], planes, planes, 3, stride, w_in),
        'conv3': init_conv1x1_bn(keys[2], planes, planes * 4),
        'stride': stride,
    }
    if stride != 1 or inplanes != planes * 4:
        p['down'] = init_conv1x1_bn(keys[3], inplanes, planes * 4)
    return p


def init_params(key, num_classes=10, in_hw=32):
    # Scaled-down widths / depth (base ResNet-50 uses planes (64,128,256,512)
    # and (3,4,6,3) blocks); structure & forward semantics are identical.
    planes_per_layer = (32, 64, 128, 256)
    strides = (1, 2, 2, 1)     # layer4 conv2/downsample stride forced to (1,1)
    keys = jax.random.split(key, 6)

    stem_ch = planes_per_layer[0]
    params = {'stem': init_convk_bn(keys[0], 3, stem_ch, 7, 2, in_hw)}
    sp = _conv_out(in_hw, 7, 2, 3)     # after stem
    sp = _conv_out(sp, 3, 2, 1)        # after maxpool

    inplanes = stem_ch
    for li, (planes, stride) in enumerate(zip(planes_per_layer, strides)):
        params[f'layer{li + 1}'] = [
            make_bottleneck_params(keys[1 + li], inplanes, planes, stride, sp)
        ]
        sp = _conv_out(sp, 3, stride, 1)
        inplanes = planes * 4

    # Head: BatchNorm1d (kaiming init: gamma~N(1,0.02), beta=0) + classifier.
    hk = jax.random.split(keys[5], 2)
    Cf = inplanes
    gamma = 1.0 + 0.02 * jax.random.normal(hk[0], (Cf,), jnp.float32)
    scale = gamma / jnp.sqrt(1.0 + 1e-5)
    shift = jnp.zeros((Cf,), jnp.float32)
    wc = 0.001 * jax.random.normal(hk[1], (Cf, num_classes), jnp.float32)
    bc = jnp.zeros((num_classes,), jnp.float32)
    params['head'] = dict(scale=scale.reshape(1, Cf), shift=shift.reshape(1, Cf),
                          w=wc, b=bc.reshape(1, num_classes))
    params['last_feature_dim'] = Cf
    return params


# ----------------------------------------------------------------------------
# Forward pass
# ----------------------------------------------------------------------------
def bottleneck_forward(x, p):
    stride = p['stride']
    out = conv1x1_bn(x, p['conv1'], relu=True)
    out = conv_kxk_bn(out, p['conv2'], relu=True)
    if 'down' in p:
        xin = x if stride == 1 else x[:, ::stride, ::stride, :]
        residual = conv1x1_bn(xin, p['down'], relu=False)
    else:
        residual = x
    # conv3 + bn3 + residual add + relu fused in one Pallas matmul kernel.
    out = conv1x1_bn(out, p['conv3'], relu=False, residual=residual)
    return out


def resnet503d_forward(x, params):
    """x: (B, C, T, H, W) float32 (PyTorch NCTHW). Returns (y, f) (training)."""
    B, C, T, H, W = x.shape
    # layout: (B, C, T, H, W) -> (B*T, H, W, C) channels-last, bf16
    xt = jnp.transpose(x, (0, 2, 3, 4, 1)).reshape(B * T, H, W, C)
    xt = xt.astype(jnp.bfloat16)

    out = conv_kxk_bn(xt, params['stem'], relu=True)         # 7x7/2 + bn + relu
    out = maxpool_3x3_s2(out)                                # (1,3,3)/(1,2,2) pool
    for name in ('layer1', 'layer2', 'layer3', 'layer4'):
        for bp in params[name]:
            out = bottleneck_forward(out, bp)

    # permute(0,2,1,3,4).view(b*t,c,h,w) -> spatial max -> mean over t -> bn -> fc
    y, f = head_forward(out, params['head'], B, T)
    return y, f


# ----------------------------------------------------------------------------
if __name__ == "__main__":
    key = jax.random.PRNGKey(0)
    kp, kx = jax.random.split(key)
    num_classes = 10

    # Small input consistent with the module: (B, C=3, T, H, W)
    B, T, H, W = 2, 2, 32, 32
    params = init_params(kp, num_classes=num_classes, in_hw=W)
    x = jax.random.normal(kx, (B, 3, T, H, W), jnp.float32)

    y, f = resnet503d_forward(x, params)
    jax.block_until_ready((y, f))

    assert y.shape == (B, num_classes), y.shape
    assert f.shape == (B, params['last_feature_dim']), f.shape
    assert jnp.all(jnp.isfinite(y)) and jnp.all(jnp.isfinite(f))
    print("KERNEL_OK")
</pallas_src>

<mosaic_0001>
module attributes {stable_mosaic.version = 11 : i64} {
  func.func @_conv_kxk_kernel(%arg0: i32, %arg1: i32, %arg2: memref<2x48x114xbf16, #tpu.memory_space<vmem>>, %arg3: memref<7x114x512xbf16, #tpu.memory_space<vmem>>, %arg4: memref<1x512xf32, #tpu.memory_space<vmem>>, %arg5: memref<2x16x512xbf16, #tpu.memory_space<vmem>>, %arg6: memref<40x512xf32, #tpu.memory_space<vmem>>) attributes {dimension_semantics = [#tpu.dimension_semantics<parallel>, #tpu.dimension_semantics<parallel>], iteration_bounds = array<i64: 2, 1>, scalar_prefetch = 0 : i64, scratch_operands = 1 : i64, tpu.core_type = #tpu.core_type<tc>, window_params = [{transform_indices = @transform_0, window_bounds = array<i64: 2, 48, 114>}, {transform_indices = @transform_1, window_bounds = array<i64: 7, 114, 512>}, {transform_indices = @transform_2, window_bounds = array<i64: 1, 512>}, {transform_indices = @transform_3, window_bounds = array<i64: 2, 16, 512>}]} {
    %c0 = arith.constant 0 : index
    %c0_0 = arith.constant 0 : index
    %c0_1 = arith.constant 0 : index
    %0 = vector.load %arg2[%c0, %c0_0, %c0_1] : memref<2x48x114xbf16, #tpu.memory_space<vmem>>, vector<1x40x114xbf16>
    %1 = vector.shape_cast %0 : vector<1x40x114xbf16> to vector<40x114xbf16>
    %c0_2 = arith.constant 0 : index
    %c0_3 = arith.constant 0 : index
    %c0_4 = arith.constant 0 : index
    %2 = vector.load %arg3[%c0_2, %c0_3, %c0_4] : memref<7x114x512xbf16, #tpu.memory_space<vmem>>, vector<1x114x512xbf16>
    %3 = vector.shape_cast %2 : vector<1x114x512xbf16> to vector<114x512xbf16>
    %cst = arith.constant dense<0.000000e+00> : vector<40x512xf32>
    %4 = tpu.matmul %1, %3, %cst {dimension_numbers = #tpu.dot_dimension_numbers<[1], [0], [0], [1], [0, 0, 1, 1], [], []>} : vector<40x114xbf16>, vector<114x512xbf16>, vector<40x512xf32> -> vector<40x512xf32>
    %c0_5 = arith.constant 0 : index
    %c0_6 = arith.constant 0 : index
    %5 = vector.load %arg6[%c0_5, %c0_6] : memref<40x512xf32, #tpu.memory_space<vmem>>, vector<40x512xf32>
    tpu.vector_store %arg6[%c0_5, %c0_6], %4 {strides = array<i32>} : memref<40x512xf32, #tpu.memory_space<vmem>>, vector<40x512xf32>,
    %c1 = arith.constant 1 : index
    %c0_7 = arith.constant 0 : index
    %c0_8 = arith.constant 0 : index
    %6 = vector.load %arg2[%c1, %c0_7, %c0_8] : memref<2x48x114xbf16, #tpu.memory_space<vmem>>, vector<1x40x114xbf16>
    %7 = vector.shape_cast %6 : vector<1x40x114xbf16> to vector<40x114xbf16>
    %c1_9 = arith.constant 1 : index
    %c0_10 = arith.constant 0 : index
    %c0_11 = arith.constant 0 : index
    %8 = vector.load %arg3[%c1_9, %c0_10, %c0_11] : memref<7x114x512xbf16, #tpu.memory_space<vmem>>, vector<1x114x512xbf16>
    %9 = vector.shape_cast %8 : vector<1x114x512xbf16> to vector<114x512xbf16>
    %cst_12 = arith.constant dense<0.000000e+00> : vector<40x512xf32>
    %10 = tpu.matmul %7, %9, %cst_12 {dimension_numbers = #tpu.dot_dimension_numbers<[1], [0], [0], [1], [0, 0, 1, 1], [], []>} : vector<40x114xbf16>, vector<114x512xbf16>, vector<40x512xf32> -> vector<40x512xf32>
    %c0_13 = arith.constant 0 : index
    %c0_14 = arith.constant 0 : index
    %11 = vector.load %arg6[%c0_13, %c0_14] : memref<40x512xf32, #tpu.memory_space<vmem>>, vector<40x512xf32>
    %12 = arith.addf %11, %10 : vector<40x512xf32>
    %c0_15 = arith.constant 0 : index
    %c0_16 = arith.constant 0 : index
    %13 = vector.load %arg6[%c0_15, %c0_16] : memref<40x512xf32, #tpu.memory_space<vmem>>, vector<40x512xf32>
    tpu.vector_store %arg6[%c0_15, %c0_16], %12 {strides = array<i32>} : memref<40x512xf32, #tpu.memory_space<vmem>>, vector<40x512xf32>,
    %c0_17 = arith.constant 0 : index
    %c1_18 = arith.constant 1 : index
    %c0_19 = arith.constant 0 : index
    %14 = vector.load %arg2[%c0_17, %c1_18, %c0_19] : memref<2x48x114xbf16, #tpu.memory_space<vmem>>, vector<1x40x114xbf16>
    %15 = vector.shape_cast %14 : vector<1x40x114xbf16> to vector<40x114xbf16>
    %c2 = arith.constant 2 : index
    %c0_20 = arith.constant 0 : index
    %c0_21 = arith.constant 0 : index
    %16 = vector.load %arg3[%c2, %c0_20, %c0_21] : memref<7x114x512xbf16, #tpu.memory_space<vmem>>, vector<1x114x512xbf16>
    %17 = vector.shape_cast %16 : vector<1x114x512xbf16> to vector<114x512xbf16>
    %cst_22 = arith.constant dense<0.000000e+00> : vector<40x512xf32>
    %18 = tpu.matmul %15, %17, %cst_22 {dimension_numbers = #tpu.dot_dimension_numbers<[1], [0], [0], [1], [0, 0, 1, 1], [], []>} : vector<40x114xbf16>, vector<114x512xbf16>, vector<40x512xf32> -> vector<40x512xf32>
    %c0_23 = arith.constant 0 : index
    %c0_24 = arith.constant 0 : index
    %19 = vector.load %arg6[%c0_23, %c0_24] : memref<40x512xf32, #tpu.memory_space<vmem>>, vector<40x512xf32>
    %20 = arith.addf %19, %18 : vector<40x512xf32>
    %c0_25 = arith.constant 0 : index
    %c0_26 = arith.constant 0 : index
    %21 = vector.load %arg6[%c0_25, %c0_26] : memref<40x512xf32, #tpu.memory_space<vmem>>, vector<40x512xf32>
    tpu.vector_store %arg6[%c0_25, %c0_26], %20 {strides = array<i32>} : memref<40x512xf32, #tpu.memory_space<vmem>>, vector<40x512xf32>,
    %c1_27 = arith.constant 1 : index
    %c1_28 = arith.constant 1 : index
    %c0_29 = arith.constant 0 : index
    %22 = vector.load %arg2[%c1_27, %c1_28, %c0_29] : memref<2x48x114xbf16, #tpu.memory_space<vmem>>, vector<1x40x114xbf16>
    %23 = vector.shape_cast %22 : vector<1x40x114xbf16> to vector<40x114xbf16>
    %c3 = arith.constant 3 : index
    %c0_30 = arith.constant 0 : index
    %c0_31 = arith.constant 0 : index
    %24 = vector.load %arg3[%c3, %c0_30, %c0_31] : memref<7x114x512xbf16, #tpu.memory_space<vmem>>, vector<1x114x512xbf16>
    %25 = vector.shape_cast %24 : vector<1x114x512xbf16> to vector<114x512xbf16>
    %cst_32 = arith.constant dense<0.000000e+00> : vector<40x512xf32>
    %26 = tpu.matmul %23, %25, %cst_32 {dimension_numbers = #tpu.dot_dimension_numbers<[1], [0], [0], [1], [0, 0, 1, 1], [], []>} : vector<40x114xbf16>, vector<114x512xbf16>, vector<40x512xf32> -> vector<40x512xf32>
    %c0_33 = arith.constant 0 : index
    %c0_34 = arith.constant 0 : index
    %27 = vector.load %arg6[%c0_33, %c0_34] : memref<40x512xf32, #tpu.memory_space<vmem>>, vector<40x512xf32>
    %28 = arith.addf %27, %26 : vector<40x512xf32>
    %c0_35 = arith.constant 0 : index
    %c0_36 = arith.constant 0 : index
    %29 = vector.load %arg6[%c0_35, %c0_36] : memref<40x512xf32, #tpu.memory_space<vmem>>, vector<40x512xf32>
    tpu.vector_store %arg6[%c0_35, %c0_36], %28 {strides = array<i32>} : memref<40x512xf32, #tpu.memory_space<vmem>>, vector<40x512xf32>,
    %c0_37 = arith.constant 0 : index
    %c2_38 = arith.constant 2 : index
    %c0_39 = arith.constant 0 : index
    %30 = vector.load %arg2[%c0_37, %c2_38, %c0_39] : memref<2x48x114xbf16, #tpu.memory_space<vmem>>, vector<1x40x114xbf16>
    %31 = vector.shape_cast %30 : vector<1x40x114xbf16> to vector<40x114xbf16>
    %c4 = arith.constant 4 : index
    %c0_40 = arith.constant 0 : index
    %c0_41 = arith.constant 0 : index
    %32 = vector.load %arg3[%c4, %c0_40, %c0_41] : memref<7x114x512xbf16, #tpu.memory_space<vmem>>, vector<1x114x512xbf16>
    %33 = vector.shape_cast %32 : vector<1x114x512xbf16> to vector<114x512xbf16>
    %cst_42 = arith.constant dense<0.000000e+00> : vector<40x512xf32>
    %34 = tpu.matmul %31, %33, %cst_42 {dimension_numbers = #tpu.dot_dimension_numbers<[1], [0], [0], [1], [0, 0, 1, 1], [], []>} : vector<40x114xbf16>, vector<114x512xbf16>, vector<40x512xf32> -> vector<40x512xf32>
    %c0_43 = arith.constant 0 : index
    %c0_44 = arith.constant 0 : index
    %35 = vector.load %arg6[%c0_43, %c0_44] : memref<40x512xf32, #tpu.memory_space<vmem>>, vector<40x512xf32>
    %36 = arith.addf %35, %34 : vector<40x512xf32>
    %c0_45 = arith.constant 0 : index
    %c0_46 = arith.constant 0 : index
    %37 = vector.load %arg6[%c0_45, %c0_46] : memref<40x512xf32, #tpu.memory_space<vmem>>, vector<40x512xf32>
    tpu.vector_store %arg6[%c0_45, %c0_46], %36 {strides = array<i32>} : memref<40x512xf32, #tpu.memory_space<vmem>>, vector<40x512xf32>,
    %c1_47 = arith.constant 1 : index
    %c2_48 = arith.constant 2 : index
    %c0_49 = arith.constant 0 : index
    %38 = vector.load %arg2[%c1_47, %c2_48, %c0_49] : memref<2x48x114xbf16, #tpu.memory_space<vmem>>, vector<1x40x114xbf16>
    %39 = vector.shape_cast %38 : vector<1x40x114xbf16> to vector<40x114xbf16>
    %c5 = arith.constant 5 : index
    %c0_50 = arith.constant 0 : index
    %c0_51 = arith.constant 0 : index
    %40 = vector.load %arg3[%c5, %c0_50, %c0_51] : memref<7x114x512xbf16, #tpu.memory_space<vmem>>, vector<1x114x512xbf16>
    %41 = vector.shape_cast %40 : vector<1x114x512xbf16> to vector<114x512xbf16>
    %cst_52 = arith.constant dense<0.000000e+00> : vector<40x512xf32>
    %42 = tpu.matmul %39, %41, %cst_52 {dimension_numbers = #tpu.dot_dimension_numbers<[1], [0], [0], [1], [0, 0, 1, 1], [], []>} : vector<40x114xbf16>, vector<114x512xbf16>, vector<40x512xf32> -> vector<40x512xf32>
    %c0_53 = arith.constant 0 : index
    %c0_54 = arith.constant 0 : index
    %43 = vector.load %arg6[%c0_53, %c0_54] : memref<40x512xf32, #tpu.memory_space<vmem>>, vector<40x512xf32>
    %44 = arith.addf %43, %42 : vector<40x512xf32>
    %c0_55 = arith.constant 0 : index
    %c0_56 = arith.constant 0 : index
    %45 = vector.load %arg6[%c0_55, %c0_56] : memref<40x512xf32, #tpu.memory_space<vmem>>, vector<40x512xf32>
    tpu.vector_store %arg6[%c0_55, %c0_56], %44 {strides = array<i32>} : memref<40x512xf32, #tpu.memory_space<vmem>>, vector<40x512xf32>,
    %c0_57 = arith.constant 0 : index
    %c3_58 = arith.constant 3 : index
    %c0_59 = arith.constant 0 : index
    %46 = vector.load %arg2[%c0_57, %c3_58, %c0_59] : memref<2x48x114xbf16, #tpu.memory_space<vmem>>, vector<1x40x114xbf16>
    %47 = vector.shape_cast %46 : vector<1x40x114xbf16> to vector<40x114xbf16>
    %c6 = arith.constant 6 : index
    %c0_60 = arith.constant 0 : index
    %c0_61 = arith.constant 0 : index
    %48 = vector.load %arg3[%c6, %c0_60, %c0_61] : memref<7x114x512xbf16, #tpu.memory_space<vmem>>, vector<1x114x512xbf16>
    %49 = vector.shape_cast %48 : vector<1x114x512xbf16> to vector<114x512xbf16>
    %cst_62 = arith.constant dense<0.000000e+00> : vector<40x512xf32>
    %50 = tpu.matmul %47, %49, %cst_62 {dimension_numbers = #tpu.dot_dimension_numbers<[1], [0], [0], [1], [0, 0, 1, 1], [], []>} : vector<40x114xbf16>, vector<114x512xbf16>, vector<40x512xf32> -> vector<40x512xf32>
    %c0_63 = arith.constant 0 : index
    %c0_64 = arith.constant 0 : index
    %51 = vector.load %arg6[%c0_63, %c0_64] : memref<40x512xf32, #tpu.memory_space<vmem>>, vector<40x512xf32>
    %52 = arith.addf %51, %50 : vector<40x512xf32>
    %c0_65 = arith.constant 0 : index
    %c0_66 = arith.constant 0 : index
    %53 = vector.load %arg6[%c0_65, %c0_66] : memref<40x512xf32, #tpu.memory_space<vmem>>, vector<40x512xf32>
    tpu.vector_store %arg6[%c0_65, %c0_66], %52 {strides = array<i32>} : memref<40x512xf32, #tpu.memory_space<vmem>>, vector<40x512xf32>,
    %c0_67 = arith.constant 0 : index
    %c0_68 = arith.constant 0 : index
    %54 = vector.load %arg6[%c0_67, %c0_68] : memref<40x512xf32, #tpu.memory_space<vmem>>, vector<16x512xf32>
    %c0_69 = arith.constant 0 : index
    %c0_70 = arith.constant 0 : index
    %55 = vector.load %arg4[%c0_69, %c0_70] : memref<1x512xf32, #tpu.memory_space<vmem>>, vector<1x512xf32>
    %56 = vector.broadcast %55 : vector<1x512xf32> to vector<16x512xf32>
    %57 = arith.addf %54, %56 : vector<16x512xf32>
    %cst_71 = arith.constant 0.000000e+00 : f32
    %58 = vector.broadcast %cst_71 : f32 to vector<16x512xf32>
    %59 = arith.maximumf %57, %58 : vector<16x512xf32>
    %60 = arith.truncf %59 : vector<16x512xf32> to vector<16x512xbf16>
    %c0_72 = arith.constant 0 : index
    %c0_73 = arith.constant 0 : index
    %c0_74 = arith.constant 0 : index
    %61 = vector.load %arg5[%c0_72, %c0_73, %c0_74] : memref<2x16x512xbf16, #tpu.memory_space<vmem>>, vector<1x16x512xbf16>
    %62 = vector.shape_cast %61 : vector<1x16x512xbf16> to vector<16x512xbf16>
    %63 = vector.shape_cast %60 : vector<16x512xbf16> to vector<1x16x512xbf16>
    tpu.vector_store %arg5[%c0_72, %c0_73, %c0_74], %63 {strides = array<i32>} : memref<2x16x512xbf16, #tpu.memory_space<vmem>>, vector<1x16x512xbf16>,
    %c24 = arith.constant 24 : index
    %c0_75 = arith.constant 0 : index
    %64 = vector.load %arg6[%c24, %c0_75] : memref<40x512xf32, #tpu.memory_space<vmem>>, vector<16x512xf32>
    %c0_76 = arith.constant 0 : index
    %c0_77 = arith.constant 0 : index
    %65 = vector.load %arg4[%c0_76, %c0_77] : memref<1x512xf32, #tpu.memory_space<vmem>>, vector<1x512xf32>
    %66 = vector.broadcast %65 : vector<1x512xf32> to vector<16x512xf32>
    %67 = arith.addf %64, %66 : vector<16x512xf32>
    %cst_78 = arith.constant 0.000000e+00 : f32
    %68 = vector.broadcast %cst_78 : f32 to vector<16x512xf32>
    %69 = arith.maximumf %67, %68 : vector<16x512xf32>
    %70 = arith.truncf %69 : vector<16x512xf32> to vector<16x512xbf16>
    %c1_79 = arith.constant 1 : index
    %c0_80 = arith.constant 0 : index
    %c0_81 = arith.constant 0 : index
    %71 = vector.load %arg5[%c1_79, %c0_80, %c0_81] : memref<2x16x512xbf16, #tpu.memory_space<vmem>>, vector<1x16x512xbf16>
    %72 = vector.shape_cast %71 : vector<1x16x512xbf16> to vector<16x512xbf16>
    %73 = vector.shape_cast %70 : vector<16x512xbf16> to vector<1x16x512xbf16>
    tpu.vector_store %arg5[%c1_79, %c0_80, %c0_81], %73 {strides = array<i32>} : memref<2x16x512xbf16, #tpu.memory_space<vmem>>, vector<1x16x512xbf16>,
    return
  }
  func.func @transform_0(%arg0: i32, %arg1: i32) -> (i32, i32, i32) {
    %c0_i32 = arith.constant 0 : i32
    %c0_i32_0 = arith.constant 0 : i32
    %c0_i32_1 = arith.constant 0 : i32
    return %c0_i32, %arg0, %c0_i32_0 : i32, i32, i32
  }
  func.func @transform_1(%arg0: i32, %arg1: i32) -> (i32, i32, i32) {
    %c0_i32 = arith.constant 0 : i32
    %c0_i32_0 = arith.constant 0 : i32
    %c0_i32_1 = arith.constant 0 : i32
    return %c0_i32, %c0_i32_0, %arg1 : i32, i32, i32
  }
  func.func @transform_2(%arg0: i32, %arg1: i32) -> (i32, i32) {
    %c0_i32 = arith.constant 0 : i32
    %c0_i32_0 = arith.constant 0 : i32
    return %c0_i32, %arg1 : i32, i32
  }
  func.func @transform_3(%arg0: i32, %arg1: i32) -> (i32, i32, i32) {
    %c0_i32 = arith.constant 0 : i32
    %c0_i32_0 = arith.constant 0 : i32
    return %arg0, %c0_i32, %arg1 : i32, i32, i32
  }
}

</mosaic_0001>

<llo_original>
// kernel: tpu_custom_call.1
$region0: #{tpu_custom_call.1}
  #allocation0 [shape = 'u32[]', space=smem, size = 0x4, offset = 0x4, fixed_abs, tag = 'smem constant byte address 0x4 - core index']
  #allocation1 [shape = 'u32[144,128]{1,0:T(1,128)}', space=vmem, size = 0x12000, scoped, tag = 'internal scratch']
  #allocation2 [shape = 'f32[40,512]{1,0:T(8,128)}', space=vmem, size = 0x14000, scoped, tag = 'scratch operand']
  #allocation9 [shape = 's32[]', space=sflag, size = 0x4, offset = 0, fixed_abs, tag = 'sflag constant byte address 0x0 - dummy sync flag']
  %s0 = inlined_call_operand.hbm [shape: bf16[2,96,114], index: 0, kind: input, shape index: {}]
  %s1 = inlined_call_operand.hbm [shape: bf16[7,114,512], index: 1, kind: input, shape index: {}]
  %s2 = inlined_call_operand.vmem [shape: f32[1,512], index: 2, kind: input, shape index: {}]
  %s3 = inlined_call_operand.hbm [shape: bf16[4,16,512], index: 3, kind: output, shape index: {}]
  %s4 = sld [smem:[#allocation0]]
  $region53: #{tpu_custom_call.1} parent=0
    _
  %s6 = ssub.s32 1, %s4
  %s7 = scalar_select 0, %s6, %s4
  $region1: #{tpu_custom_call.1} parent=0
    #allocation3 [shape = 'u8[49152]{0}', space=vmem, size = 0xc000, scoped, tag = 'input window, operand 0']
    #allocation4 [shape = 's32[2]{0}', space=sflag, size = 0x8, scoped, tag = 'scoped memory for tpu_custom_call.1']
    #allocation5 [shape = 's32[2]{0}', space=sflag, size = 0x8, scoped, tag = 'scoped memory for tpu_custom_call.1']
    #allocation6 [shape = 'u8[860160]{0}', space=vmem, size = 0xd2000, scoped, tag = 'input window, operand 1, single buffered']
    #allocation7 [shape = 's32[1]{0}', space=sflag, size = 0x4, scoped, tag = 'scoped memory for tpu_custom_call.1']
    #allocation8 [shape = 'u8[65536]{0}', space=vmem, size = 0x10000, scoped, tag = 'output window, operand 0']
    %8 = vsyncpa [#allocation4], 0
    %s9 = scalar_lea.sflag [#allocation4], 1
    %10 = vsyncpa %s9, 0
    %11 = vsyncpa [#allocation7], 0
    %12 = vsyncpa [#allocation5], 0
    %s13 = scalar_lea.sflag [#allocation5], 1
    %14 = vsyncpa %s13, 0
    loop: start=0, step=1, limit=4
    $region2: #{tpu_custom_call.1} parent=1 // loop_pre_header
      _
    $region3: #{tpu_custom_call.1} parent=1 // loop_header
      %s16 = sphi 0, %s20
      %p17 = scmp.ge.s32.totalorder %s16, 4
      %s23 = sphi 0, %s35
      %s24 = sphi 0, %s31
      %s25 = sphi 0, %s23
      %s26 = sphi 0, %s24
      %s27 = sphi 0, %s25
      %s28 = sphi 0, %s26
      %s38 = sphi 0, %s40
      %s41 = sphi 0, %s38
      %s42 = sphi 0, %s41
      %s58 = sphi 0, %s42
      %s64 = sphi 0, %s66
      %s67 = sphi 0, %s64
      %s68 = sphi 0, %s67
      %s84 = sphi 0, %s68
      %s90 = sphi 0, %s92
      %s93 = sphi 0, %s90
      %s94 = sphi 0, %s93
      %s110 = sphi 0, %s94
      %s118 = sphi 0, %s120
      %s121 = sphi 0, %s118
      %s122 = sphi 0, %s121
      %s138 = sphi 0, %s122
    $region4: #{tpu_custom_call.1} parent=1 // loop_header_branch
      %19 = sbr.rel (%p17) target = $region8
    $region5: #{tpu_custom_call.1} parent=1 // loop_body
      %s21 = ssub.s32 %s16, 1
      %s22 = ssub.s32 %s16, 2
      %s29 = sadd.s32 1, %s24
      %p30 = scmp.ge.s32.totalorder %s29, 1
      %s31 = scalar_select %p30, 0, %s29
      %s32 = sadd.s32 1, %s23
      %s33 = scalar_select %p30, %s32, %s23
      %p34 = scmp.ge.s32.totalorder %s33, 2
      %s35 = scalar_select %p34, 0, %s33
      %s36 = ssub.s32 %s23, %s35
      %p37 = scmp.eq.s32.totalorder %s36, 0
      %s39 = sadd.s32 %s38, 1
      %s40 = scalar_select %p37, %s38, %s39
      %p43 = pneg %p37
      %p44 = scmp.eq.s32.totalorder %s16, 1
      %p45 = por %p43, %p44
      %p46 = scmp.ne.s32.totalorder %s38, %s41
      %p47 = scmp.eq.s32.totalorder %s16, 0
      %p48 = por %p46, %p47
      %p49 = scmp.ne.s32.totalorder %s38, %s41
      %p50 = scmp.eq.s32.totalorder %s21, 1
      %p51 = por %p49, %p50
      %p52 = scmp.ne.s32.totalorder %s41, %s42
      %p53 = scmp.eq.s32.totalorder %s21, 0
      %p54 = por %p52, %p53
      %p55 = scmp.ne.s32.totalorder %s41, %s42
      %p56 = scmp.eq.s32.totalorder %s22, 1
      %p57 = por %p55, %p56
      %p59 = scmp.ne.s32.totalorder %s42, %s58
      %p60 = scmp.eq.s32.totalorder %s22, 0
      %p61 = por %p59, %p60
      %s62 = ssub.s32 %s24, %s31
      %p63 = scmp.eq.s32.totalorder %s62, 0
      %s65 = sadd.s32 %s64, 1
      %s66 = scalar_select %p63, %s64, %s65
      %p69 = pneg %p63
      %p70 = scmp.eq.s32.totalorder %s16, 1
      %p71 = por %p69, %p70
      %p72 = scmp.ne.s32.totalorder %s64, %s67
      %p73 = scmp.eq.s32.totalorder %s16, 0
      %p74 = por %p72, %p73
      %p75 = scmp.ne.s32.totalorder %s64, %s67
      %p76 = scmp.eq.s32.totalorder %s21, 1
      %p77 = por %p75, %p76
      %p78 = scmp.ne.s32.totalorder %s67, %s68
      %p79 = scmp.eq.s32.totalorder %s21, 0
      %p80 = por %p78, %p79
      %p81 = scmp.ne.s32.totalorder %s67, %s68
      %p82 = scmp.eq.s32.totalorder %s22, 1
      %p83 = por %p81, %p82
      %p85 = scmp.ne.s32.totalorder %s68, %s84
      %p86 = scmp.eq.s32.totalorder %s22, 0
      %p87 = por %p85, %p86
      %s88 = ssub.s32 %s24, %s31
      %p89 = scmp.eq.s32.totalorder %s88, 0
      %s91 = sadd.s32 %s90, 1
      %s92 = scalar_select %p89, %s90, %s91
      %p95 = pneg %p89
      %p96 = scmp.eq.s32.totalorder %s16, 1
      %p97 = por %p95, %p96
      %p98 = scmp.ne.s32.totalorder %s90, %s93
      %p99 = scmp.eq.s32.totalorder %s16, 0
      %p100 = por %p98, %p99
      %p101 = scmp.ne.s32.totalorder %s90, %s93
      %p102 = scmp.eq.s32.totalorder %s21, 1
      %p103 = por %p101, %p102
      %p104 = scmp.ne.s32.totalorder %s93, %s94
      %p105 = scmp.eq.s32.totalorder %s21, 0
      %p106 = por %p104, %p105
      %p107 = scmp.ne.s32.totalorder %s93, %s94
      %p108 = scmp.eq.s32.totalorder %s22, 1
      %p109 = por %p107, %p108
      %p111 = scmp.ne.s32.totalorder %s94, %s110
      %p112 = scmp.eq.s32.totalorder %s22, 0
      %p113 = por %p111, %p112
      %s114 = ssub.s32 %s23, %s35
      %s115 = ssub.s32 %s24, %s31
      %s116 = sor.u32 %s114, %s115
      %p117 = scmp.eq.s32.totalorder %s116, 0
      %s119 = sadd.s32 %s118, 1
      %s120 = scalar_select %p117, %s118, %s119
      %p123 = pneg %p117
      %p124 = scmp.eq.s32.totalorder %s16, 1
      %p125 = por %p123, %p124
      %p126 = scmp.ne.s32.totalorder %s118, %s121
      %p127 = scmp.eq.s32.totalorder %s16, 0
      %p128 = por %p126, %p127
      %p129 = scmp.ne.s32.totalorder %s118, %s121
      %p130 = scmp.eq.s32.totalorder %s21, 1
      %p131 = por %p129, %p130
      %p132 = scmp.ne.s32.totalorder %s121, %s122
      %p133 = scmp.eq.s32.totalorder %s21, 0
      %p134 = por %p132, %p133
      %p135 = scmp.ne.s32.totalorder %s121, %s122
      %p136 = scmp.eq.s32.totalorder %s22, 1
      %p137 = por %p135, %p136
      %p139 = scmp.ne.s32.totalorder %s122, %s138
      %p140 = scmp.eq.s32.totalorder %s22, 0
      %p141 = por %p139, %p140
      %p142 = scmp.le.s32.totalorder 1, %s16
      %p143 = scmp.lt.s32.totalorder %s16, 3
      %p144 = pnand %p142, %p143
      %p145 = pneg %p144
      // Predicated region
      $region9: #{tpu_custom_call.1} parent=5 // pred_check
        _
      $region10: #{tpu_custom_call.1} parent=5 // pred_check_branch
        %147 = sbr.rel (%p144) target = $region12
      $region11: #{tpu_custom_call.1} parent=5 // pred_region
        %s148 = ssub.s32 %s16, 1
        // Predicated region
        $region13: #{tpu_custom_call.1} parent=11 // pred_check
          %p149 = pneg %p80
        $region14: #{tpu_custom_call.1} parent=11 // pred_check_branch
          %151 = sbr.rel (%p149) target = $region16
        $region15: #{tpu_custom_call.1} parent=11 // pred_region
          %s152 = smul.u32 4, %s26
          %s154 = ssub.s32 26880, 26880
          %155 = vsyncadd [#allocation7], %s154
          %s156 = smul.addr %s152, 64
          %s157 = scalar_lea.hbm %s1, %s156
          %s158 = sshll.u32 [#allocation6], 4
          %s159 = int_to_ptr.vmem [resolvable:$true] %s158
          %164 = dma.hbm_to_vmem [thread:$0]  %s157, 26880, %s159, [#allocation7], 256, 256, 16
        $region16: #{tpu_custom_call.1} parent=11 // pred_fallthru
          _
        // Predicated region
        $region17: #{tpu_custom_call.1} parent=11 // pred_check
          %p165 = pneg %p106
        $region18: #{tpu_custom_call.1} parent=11 // pred_check_branch
          %167 = sbr.rel (%p165) target = $region20
        $region19: #{tpu_custom_call.1} parent=11 // pred_region
          %s168 = smul.u32 4, %s26
          %p169 = scmp.lt.s32.totalorder %s168, 3
          %s170 = scalar_select %p169, %s168, 3
          %s171 = scalar_lea.vmem %s2, %s170
          %s172 = smul.u32 4, %s26
        $region20: #{tpu_custom_call.1} parent=11 // pred_fallthru
          _
      $region12: #{tpu_custom_call.1} parent=5 // pred_fallthru
        _
      %p173 = scmp.lt.s32.totalorder %s16, 2
      // Predicated region
      $region21: #{tpu_custom_call.1} parent=5 // pred_check
        %p174 = pneg %p173
      $region22: #{tpu_custom_call.1} parent=5 // pred_check_branch
        %176 = sbr.rel (%p174) target = $region24
      $region23: #{tpu_custom_call.1} parent=5 // pred_region
        // Predicated region
        $region25: #{tpu_custom_call.1} parent=23 // pred_check
          %p177 = pneg %p48
        $region26: #{tpu_custom_call.1} parent=23 // pred_check_branch
          %179 = sbr.rel (%p177) target = $region28
        $region27: #{tpu_custom_call.1} parent=23 // pred_region
          #allocation10 [shape = 'u32[6]{0}', space=smem, size = 0x18, scoped, tag = 'DMA stride descriptor']
          %s180 = sand.u32 %s38, 1
          %s181 = scalar_lea.sflag [#allocation4], %s180
          %s182 = sand.u32 %s38, 1
          %s183 = smul.addr %s182, 48
          %s184 = scalar_lea.vmem [#allocation3], %s183
          %s185 = smul.u32 6, %s23
          %s187 = ssub.s32 768, 768
          %188 = vsyncadd %s181, %s187
          %s189 = smul.addr %s185, 64
          %s190 = scalar_lea.hbm %s0, %s189
          %s192 = sshll.u32 1, 14
          %s193 = sxor.u32 4294967295, %s192
          %s195 = sld [smem:[#allocation0]]
          %s196 = sadd.s32 2, %s195
          %s198 = sshll.u32 7, 26
          %s199 = sxor.u32 4294967295, %s198
          %s200 = sand.u32 0, %s199
          %s201 = sshll.u32 %s196, 26
          %s202 = sor.u32 %s200, %s201
          %s203 = sshll.u32 %s184, 4
          %s204 = int_to_ptr.vmem [resolvable:$true] %s203
          %210 = sst [smem:[#allocation10]] 768
          %s211 = scalar_lea.smem [#allocation10], 1
          %212 = sst [smem:[%s211]] 384
          %s213 = scalar_lea.smem [#allocation10], 2
          %214 = sst [smem:[%s213]] 6
          %s215 = scalar_lea.smem [#allocation10], 3
          %216 = sst [smem:[%s215]] 64
          %s217 = scalar_lea.smem [#allocation10], 4
          %218 = sst [smem:[%s217]] 64
          %s219 = scalar_lea.smem [#allocation10], 5
          %220 = sst [smem:[%s219]] 4
          %222 = dma.general %s190, 768, %s204, %s181, [#allocation9], [#allocation10], %s202, 0
        $region28: #{tpu_custom_call.1} parent=23 // pred_fallthru
          _
      $region24: #{tpu_custom_call.1} parent=5 // pred_fallthru
        _
      %p223 = scmp.le.s32.totalorder 1, %s16
      %p224 = scmp.lt.s32.totalorder %s16, 3
      %p225 = pnand %p223, %p224
      %p226 = pneg %p225
      // Predicated region
      $region29: #{tpu_custom_call.1} parent=5 // pred_check
        _
      $region30: #{tpu_custom_call.1} parent=5 // pred_check_branch
        %228 = sbr.rel (%p225) target = $region32
      $region31: #{tpu_custom_call.1} parent=5 // pred_region
        %s229 = ssub.s32 %s16, 1
        %s230 = sand.u32 %s41, 1
        %s231 = scalar_lea.sflag [#allocation4], %s230
        %s232 = sand.u32 %s41, 1
        %s233 = smul.addr %s232, 48
        %s234 = scalar_lea.vmem [#allocation3], %s233
        // Predicated region
        $region33: #{tpu_custom_call.1} parent=31 // pred_check
          %p235 = pneg %p54
        $region34: #{tpu_custom_call.1} parent=31 // pred_check_branch
          %237 = sbr.rel (%p235) target = $region36
        $region35: #{tpu_custom_call.1} parent=31 // pred_region
          %238 = dma.done %s231, 768
        $region36: #{tpu_custom_call.1} parent=31 // pred_fallthru
          _
        // Predicated region
        $region37: #{tpu_custom_call.1} parent=31 // pred_check
          %p239 = pneg %p80
        $region38: #{tpu_custom_call.1} parent=31 // pred_check_branch
          %241 = sbr.rel (%p239) target = $region40
        $region39: #{tpu_custom_call.1} parent=31 // pred_region
          %242 = dma.done [#allocation7], 26880
        $region40: #{tpu_custom_call.1} parent=31 // pred_fallthru
          _
        %s243 = sand.u32 %s41, 1
        %s244 = scalar_lea.sflag [#allocation4], %s243
        %s245 = sand.u32 %s41, 1
        %s246 = smul.addr %s245, 48
        %s247 = scalar_lea.vmem [#allocation3], %s246
        %p248 = pneg %p54
        %p249 = pneg %p51
        %p250 = pneg %p80
        %p251 = pneg %p77
        %s252 = smul.u32 4, %s26
        %p253 = scmp.lt.s32.totalorder %s252, 3
        %s254 = scalar_select %p253, %s252, 3
        %s255 = scalar_lea.vmem %s2, %s254
        %p256 = pneg %p106
        %p257 = pneg %p103
        %p258 = pneg %p134
        %p259 = pneg %p131
        %s260 = sand.u32 %s121, 1
        %s261 = scalar_lea.sflag [#allocation5], %s260
        %s262 = sand.u32 %s121, 1
        %s263 = smul.addr %s262, 64
        %s264 = scalar_lea.vmem [#allocation8], %s263
        %s265 = smul.u32 6, %s25
        %s266 = smul.u32 4, %s26
        %s267 = smul.u32 4, %s26
        %p268 = scmp.lt.s32.totalorder %s267, 3
        %s269 = scalar_select %p268, %s267, 3
        %s270 = scalar_lea.vmem %s2, %s269
        %s271 = smul.u32 4, %s26
        %s272 = smul.u32 2, %s25
        %s273 = smul.u32 4, %s26
        %v275 = vld [vmem:[%s234] sm:$0xf]
        %v276 = vld [vmem:[%s234 + $0x4] sm:$0xf]
        %v277 = vld [vmem:[%s234 + $0x8] sm:$0xf]
        %v278 = vld [vmem:[%s234 + $0xc] sm:$0xf]
        %v279 = vld [vmem:[%s234 + $0x10] sm:$0xf]
        %v280 = vld [vmem:[#allocation6] sm:$0xff]
        %v281 = vld [vmem:[#allocation6 + $0x8] sm:$0xff]
        %v282 = vld [vmem:[#allocation6 + $0x10] sm:$0xff]
        %v283 = vld [vmem:[#allocation6 + $0x18] sm:$0xff]
        %v284 = vld [vmem:[#allocation6 + $0x20] sm:$0xff]
        %v285 = vld [vmem:[#allocation6 + $0x28] sm:$0xff]
        %v286 = vld [vmem:[#allocation6 + $0x30] sm:$0xff]
        %v287 = vld [vmem:[#allocation6 + $0x38] sm:$0xff]
        %v288 = vld [vmem:[#allocation6 + $0x40] sm:$0xff]
        %v289 = vld [vmem:[#allocation6 + $0x48] sm:$0xff]
        %v290 = vld [vmem:[#allocation6 + $0x50] sm:$0xff]
        %v291 = vld [vmem:[#allocation6 + $0x58] sm:$0xff]
        %v292 = vld [vmem:[#allocation6 + $0x60] sm:$0xff]
        %v293 = vld [vmem:[#allocation6 + $0x68] sm:$0xff]
        %v294 = vld [vmem:[#allocation6 + $0x70] sm:$0xff]
        %v295 = vld [vmem:[#allocation6 + $0x78] sm:$0xff]
        %v296 = vld [vmem:[#allocation6 + $0x80] sm:$0xff]
        %v297 = vld [vmem:[#allocation6 + $0x88] sm:$0xff]
        %v298 = vld [vmem:[#allocation6 + $0x90] sm:$0xff]
        %v299 = vld [vmem:[#allocation6 + $0x98] sm:$0xff]
        %v300 = vld [vmem:[#allocation6 + $0xa0] sm:$0xff]
        %v301 = vld [vmem:[#allocation6 + $0xa8] sm:$0xff]
        %v302 = vld [vmem:[#allocation6 + $0xb0] sm:$0xff]
        %v303 = vld [vmem:[#allocation6 + $0xb8] sm:$0xff]
        %v304 = vld [vmem:[#allocation6 + $0xc0] sm:$0xff]
        %v305 = vld [vmem:[#allocation6 + $0xc8] sm:$0xff]
        %v306 = vld [vmem:[#allocation6 + $0xd0] sm:$0xff]
        %v307 = vld [vmem:[#allocation6 + $0xd8] sm:$0xff]
        %v308 = vld [vmem:[#allocation6 + $0xe0] sm:$0x11]
        %v309 = vld [vmem:[#allocation6 + $0xe8] sm:$0x11]
        %v315 = vunpack.c.l.b16 %v275
        %v316 = vunpack.c.l.b16 %v276
        %v317 = vunpack.c.l.b16 %v277
        %v318 = vunpack.c.l.b16 %v278
        %v319 = vunpack.c.l.b16 %v279
        %v320 = vpack.c.b16 %v316, %v315
        %v321 = vpack.c.b16 %v318, %v317
        %v322 = vpack.c.b16 %v319, %v319
        %v353 = vunpack.c.l.b16 %v280
        %v354 = vunpack.c.h.b16 %v280
        %v355 = vunpack.c.l.b16 %v281
        %v356 = vunpack.c.h.b16 %v281
        %v357 = vunpack.c.l.b16 %v282
        %v358 = vunpack.c.h.b16 %v282
        %v359 = vunpack.c.l.b16 %v283
        %v360 = vunpack.c.h.b16 %v283
        %v361 = vunpack.c.l.b16 %v284
        %v362 = vunpack.c.h.b16 %v284
        %v363 = vunpack.c.l.b16 %v285
        %v364 = vunpack.c.h.b16 %v285
        %v365 = vunpack.c.l.b16 %v286
        %v366 = vunpack.c.h.b16 %v286
        %v367 = vunpack.c.l.b16 %v287
        %v368 = vunpack.c.h.b16 %v287
        %v369 = vunpack.c.l.b16 %v288
        %v370 = vunpack.c.h.b16 %v288
        %v371 = vunpack.c.l.b16 %v289
        %v372 = vunpack.c.h.b16 %v289
        %v373 = vunpack.c.l.b16 %v290
        %v374 = vunpack.c.h.b16 %v290
        %v375 = vunpack.c.l.b16 %v291
        %v376 = vunpack.c.h.b16 %v291
        %v377 = vunpack.c.l.b16 %v292
        %v378 = vunpack.c.h.b16 %v292
        %v379 = vunpack.c.l.b16 %v293
        %v380 = vunpack.c.h.b16 %v293
        %v381 = vunpack.c.l.b16 %v294
        %v382 = vunpack.c.h.b16 %v294
        %v383 = vunpack.c.l.b16 %v295
        %v384 = vunpack.c.h.b16 %v295
        %v385 = vunpack.c.l.b16 %v296
        %v386 = vunpack.c.h.b16 %v296
        %v387 = vunpack.c.l.b16 %v297
        %v388 = vunpack.c.h.b16 %v297
        %v389 = vunpack.c.l.b16 %v298
        %v390 = vunpack.c.h.b16 %v298
        %v391 = vunpack.c.l.b16 %v299
        %v392 = vunpack.c.h.b16 %v299
        %v393 = vunpack.c.l.b16 %v300
        %v394 = vunpack.c.h.b16 %v300
        %v395 = vunpack.c.l.b16 %v301
        %v396 = vunpack.c.h.b16 %v301
        %v397 = vunpack.c.l.b16 %v302
        %v398 = vunpack.c.h.b16 %v302
        %v399 = vunpack.c.l.b16 %v303
        %v400 = vunpack.c.h.b16 %v303
        %v401 = vunpack.c.l.b16 %v304
        %v402 = vunpack.c.h.b16 %v304
        %v403 = vunpack.c.l.b16 %v305
        %v404 = vunpack.c.h.b16 %v305
        %v405 = vunpack.c.l.b16 %v306
        %v406 = vunpack.c.h.b16 %v306
        %v407 = vunpack.c.l.b16 %v307
        %v408 = vunpack.c.h.b16 %v307
        %v409 = vunpack.c.l.b16 %v308
        %v410 = vunpack.c.h.b16 %v308
        %v411 = vunpack.c.l.b16 %v309
        %v412 = vunpack.c.h.b16 %v309
        %v413 = vpack.c.b16 %v357, %v353
        %v414 = vpack.c.b16 %v358, %v354
        %v415 = vpack.c.b16 %v359, %v355
        %v416 = vpack.c.b16 %v360, %v356
        %v417 = vpack.c.b16 %v365, %v361
        %v418 = vpack.c.b16 %v366, %v362
        %v419 = vpack.c.b16 %v367, %v363
        %v420 = vpack.c.b16 %v368, %v364
        %v421 = vpack.c.b16 %v373, %v369
        %v422 = vpack.c.b16 %v374, %v370
        %v423 = vpack.c.b16 %v375, %v371
        %v424 = vpack.c.b16 %v376, %v372
        %v425 = vpack.c.b16 %v381, %v377
        %v426 = vpack.c.b16 %v382, %v378
        %v427 = vpack.c.b16 %v383, %v379
        %v428 = vpack.c.b16 %v384, %v380
        %v429 = vpack.c.b16 %v389, %v385
        %v430 = vpack.c.b16 %v390, %v386
        %v431 = vpack.c.b16 %v391, %v387
        %v432 = vpack.c.b16 %v392, %v388
        %v433 = vpack.c.b16 %v397, %v393
        %v434 = vpack.c.b16 %v398, %v394
        %v435 = vpack.c.b16 %v399, %v395
        %v436 = vpack.c.b16 %v400, %v396
        %v437 = vpack.c.b16 %v405, %v401
        %v438 = vpack.c.b16 %v406, %v402
        %v439 = vpack.c.b16 %v407, %v403
        %v440 = vpack.c.b16 %v408, %v404
        %v441 = vpack.c.b16 %v409, %v409
        %v442 = vpack.c.b16 %v410, %v410
        %v443 = vpack.c.b16 %v411, %v411
        %v444 = vpack.c.b16 %v412, %v412
        %vm473 = vcmask 932864
        %v475 = vsel %vm473, %v320, 0
        %v478 = vsel %vm473, %v321, 0
        %v481 = vsel %vm473, %v322, 0
        %vm483 = vcmask 1040384
        %v485 = vsel %vm483, %v441, 0
        %v488 = vsel %vm483, %v442, 0
        %v491 = vsel %vm483, %v443, 0
        %v494 = vsel %vm483, %v444, 0
        %496 = vmatprep.subr.bf16.mxu0 %v414
        %497 = vmatpush1.bf16.msra.mxu0 %v413
        %498 = vmatprep.subr.bf16.mxu0 %v418
        %499 = vmatpush1.bf16.msra.mxu0 %v417
        %500 = vmatprep.subr.bf16.mxu0 %v422
        %501 = vmatpush1.bf16.msra.mxu0 %v421
        %502 = vmatprep.subr.bf16.mxu0 %v426
        %503 = vmatpush1.bf16.msra.mxu0 %v425
        %504 = vmatprep.subr.bf16.mxu0 %v430
        %505 = vmatpush1.bf16.msra.mxu0 %v429
        %506 = vmatprep.subr.bf16.mxu0 %v434
        %507 = vmatpush1.bf16.msra.mxu0 %v433
        %508 = vmatprep.subr.bf16.mxu0 %v438
        %509 = vmatpush1.bf16.msra.mxu0 %v437
        %510 = vmatprep.subr.bf16.mxu0 %v488
        %511 = vmatpush1.bf16.msra.mxu0 %v485
        %512 = vmatprep.subr.bf16.mxu0 0
        %513 = vmatpush1.bf16.msra.mxu0 0
        %514 = vmatprep.subr.bf16.mxu0 0
        %515 = vmatpush1.bf16.msra.mxu0 0
        %516 = vmatprep.subr.bf16.mxu0 0
        %517 = vmatpush1.bf16.msra.mxu0 0
        %518 = vmatprep.subr.bf16.mxu0 0
        %519 = vmatpush1.bf16.msra.mxu0 0
        %520 = vmatprep.subr.bf16.mxu0 0
        %521 = vmatpush1.bf16.msra.mxu0 0
        %522 = vmatprep.subr.bf16.mxu0 0
        %523 = vmatpush1.bf16.msra.mxu0 0
        %524 = vmatprep.subr.bf16.mxu0 0
        %525 = vmatpush1.bf16.msra.mxu0 0
        %526 = vmatprep.subr.bf16.mxu0 0
        %527 = vmatpush1.bf16.msra.mxu0 0
        %528 = vmatprep.mubr.bf16.mxu0 0
        %529 = vmatmul.mubr.bf16.gmra.mrb[0].mxu0 %v475
        %v530 = vpop.f32.mrb[0].mxu0
        %v531 = vadd.f32 0.0, %v530
        %v532 = vpop.f32.mrb[0].mxu0
        %v533 = vadd.f32 0.0, %v532
        %v534 = vpop.f32.mrb[0].mxu0
        %v535 = vadd.f32 0.0, %v534
        %v536 = vpop.f32.mrb[0].mxu0
        %v537 = vadd.f32 0.0, %v536
        %538 = vmatprep.mubr.bf16.mxu0 0
        %539 = vmatmul.mubr.bf16.gmra.mrb[0].mxu0 %v478
        %v540 = vpop.f32.mrb[0].mxu0
        %v541 = vadd.f32 0.0, %v540
        %v542 = vpop.f32.mrb[0].mxu0
        %v543 = vadd.f32 0.0, %v542
        %v544 = vpop.f32.mrb[0].mxu0
        %v545 = vadd.f32 0.0, %v544
        %v546 = vpop.f32.mrb[0].mxu0
        %v547 = vadd.f32 0.0, %v546
        %548 = vmatprep.mubr.bf16.mxu0 0
        %549 = vmatmul.mubr.bf16.gmra.mrb[0].mxu0 %v481
        %v550 = vpop.f32.mrb[0].mxu0
        %v551 = vadd.f32 0.0, %v550
        %v552 = vpop.f32.mrb[0].mxu0
        %v553 = vadd.f32 0.0, %v552
        %v554 = vpop.f32.mrb[0].mxu0
        %v555 = vpop.f32.mrb[0].mxu0
        %556 = vdwg.mxu0
        %557 = vmatprep.subr.bf16.mxu0 %v416
        %558 = vmatpush1.bf16.msra.mxu0 %v415
        %559 = vmatprep.subr.bf16.mxu0 %v420
        %560 = vmatpush1.bf16.msra.mxu0 %v419
        %561 = vmatprep.subr.bf16.mxu0 %v424
        %562 = vmatpush1.bf16.msra.mxu0 %v423
        %563 = vmatprep.subr.bf16.mxu0 %v428
        %564 = vmatpush1.bf16.msra.mxu0 %v427
        %565 = vmatprep.subr.bf16.mxu0 %v432
        %566 = vmatpush1.bf16.msra.mxu0 %v431
        %567 = vmatprep.subr.bf16.mxu0 %v436
        %568 = vmatpush1.bf16.msra.mxu0 %v435
        %569 = vmatprep.subr.bf16.mxu0 %v440
        %570 = vmatpush1.bf16.msra.mxu0 %v439
        %571 = vmatprep.subr.bf16.mxu0 %v494
        %572 = vmatpush1.bf16.msra.mxu0 %v491
        %573 = vmatprep.subr.bf16.mxu0 0
        %574 = vmatpush1.bf16.msra.mxu0 0
        %575 = vmatprep.subr.bf16.mxu0 0
        %576 = vmatpush1.bf16.msra.mxu0 0
        %577 = vmatprep.subr.bf16.mxu0 0
        %578 = vmatpush1.bf16.msra.mxu0 0
        %579 = vmatprep.subr.bf16.mxu0 0
        %580 = vmatpush1.bf16.msra.mxu0 0
        %581 = vmatprep.subr.bf16.mxu0 0
        %582 = vmatpush1.bf16.msra.mxu0 0
        %583 = vmatprep.subr.bf16.mxu0 0
        %584 = vmatpush1.bf16.msra.mxu0 0
        %585 = vmatprep.subr.bf16.mxu0 0
        %586 = vmatpush1.bf16.msra.mxu0 0
        %587 = vmatprep.subr.bf16.mxu0 0
        %588 = vmatpush1.bf16.msra.mxu0 0
        %589 = vmatprep.mubr.bf16.mxu0 0
        %590 = vmatmul.mubr.bf16.gmra.mrb[0].mxu0 %v475
        %v591 = vpop.f32.mrb[0].mxu0
        %v592 = vadd.f32 0.0, %v591
        %v593 = vpop.f32.mrb[0].mxu0
        %v594 = vadd.f32 0.0, %v593
        %v595 = vpop.f32.mrb[0].mxu0
        %v596 = vadd.f32 0.0, %v595
        %v597 = vpop.f32.mrb[0].mxu0
        %v598 = vadd.f32 0.0, %v597
        %599 = vmatprep.mubr.bf16.mxu0 0
        %600 = vmatmul.mubr.bf16.gmra.mrb[0].mxu0 %v478
        %v601 = vpop.f32.mrb[0].mxu0
        %v602 = vadd.f32 0.0, %v601
        %v603 = vpop.f32.mrb[0].mxu0
        %v604 = vadd.f32 0.0, %v603
        %v605 = vpop.f32.mrb[0].mxu0
        %v606 = vadd.f32 0.0, %v605
        %v607 = vpop.f32.mrb[0].mxu0
        %v608 = vadd.f32 0.0, %v607
        %609 = vmatprep.mubr.bf16.mxu0 0
        %610 = vmatmul.mubr.bf16.gmra.mrb[0].mxu0 %v481
        %v611 = vpop.f32.mrb[0].mxu0
        %v612 = vadd.f32 0.0, %v611
        %v613 = vpop.f32.mrb[0].mxu0
        %v614 = vadd.f32 0.0, %v613
        %v615 = vpop.f32.mrb[0].mxu0
        %v616 = vpop.f32.mrb[0].mxu0
        %617 = vdwg.mxu0
        %618 = vst [vmem:[#allocation2] sm:$0xff] %v531
        %619 = vst [vmem:[#allocation2 + $0x8] sm:$0xff] %v533
        %620 = vst [vmem:[#allocation2 + $0x10] sm:$0xff] %v592
        %621 = vst [vmem:[#allocation2 + $0x18] sm:$0xff] %v594
        %622 = vst [vmem:[#allocation2 + $0x20] sm:$0xff] %v535
        %623 = vst [vmem:[#allocation2 + $0x28] sm:$0xff] %v537
        %624 = vst [vmem:[#allocation2 + $0x30] sm:$0xff] %v596
        %625 = vst [vmem:[#allocation2 + $0x38] sm:$0xff] %v598
        %626 = vst [vmem:[#allocation2 + $0x40] sm:$0xff] %v541
        %627 = vst [vmem:[#allocation2 + $0x48] sm:$0xff] %v543
        %628 = vst [vmem:[#allocation2 + $0x50] sm:$0xff] %v602
        %629 = vst [vmem:[#allocation2 + $0x58] sm:$0xff] %v604
        %630 = vst [vmem:[#allocation2 + $0x60] sm:$0xff] %v545
        %631 = vst [vmem:[#allocation2 + $0x68] sm:$0xff] %v547
        %632 = vst [vmem:[#allocation2 + $0x70] sm:$0xff] %v606
        %633 = vst [vmem:[#allocation2 + $0x78] sm:$0xff] %v608
        %634 = vst [vmem:[#allocation2 + $0x80] sm:$0xff] %v551
        %635 = vst [vmem:[#allocation2 + $0x88] sm:$0xff] %v553
        %636 = vst [vmem:[#allocation2 + $0x90] sm:$0xff] %v612
        %637 = vst [vmem:[#allocation2 + $0x98] sm:$0xff] %v614
        %s638 = scalar_lea.vmem %s234, 24 [#allocation3]
        %v639 = vld [vmem:[%s638] sm:$0xf]
        %v640 = vld [vmem:[%s638 + $0x4] sm:$0xf]
        %v641 = vld [vmem:[%s638 + $0x8] sm:$0xf]
        %v642 = vld [vmem:[%s638 + $0xc] sm:$0xf]
        %v643 = vld [vmem:[%s638 + $0x10] sm:$0xf]
        %s644 = scalar_lea.vmem [#allocation6], 240
        %v645 = vld [vmem:[%s644] sm:$0xff]
        %v646 = vld [vmem:[%s644 + $0x8] sm:$0xff]
        %v647 = vld [vmem:[%s644 + $0x10] sm:$0xff]
        %v648 = vld [vmem:[%s644 + $0x18] sm:$0xff]
        %v649 = vld [vmem:[%s644 + $0x20] sm:$0xff]
        %v650 = vld [vmem:[%s644 + $0x28] sm:$0xff]
        %v651 = vld [vmem:[%s644 + $0x30] sm:$0xff]
        %v652 = vld [vmem:[%s644 + $0x38] sm:$0xff]
        %v653 = vld [vmem:[%s644 + $0x40] sm:$0xff]
        %v654 = vld [vmem:[%s644 + $0x48] sm:$0xff]
        %v655 = vld [vmem:[%s644 + $0x50] sm:$0xff]
        %v656 = vld [vmem:[%s644 + $0x58] sm:$0xff]
        %v657 = vld [vmem:[%s644 + $0x60] sm:$0xff]
        %v658 = vld [vmem:[%s644 + $0x68] sm:$0xff]
        %v659 = vld [vmem:[%s644 + $0x70] sm:$0xff]
        %v660 = vld [vmem:[%s644 + $0x78] sm:$0xff]
        %v661 = vld [vmem:[%s644 + $0x80] sm:$0xff]
        %v662 = vld [vmem:[%s644 + $0x88] sm:$0xff]
        %v663 = vld [vmem:[%s644 + $0x90] sm:$0xff]
        %v664 = vld [vmem:[%s644 + $0x98] sm:$0xff]
        %v665 = vld [vmem:[%s644 + $0xa0] sm:$0xff]
        %v666 = vld [vmem:[%s644 + $0xa8] sm:$0xff]
        %v667 = vld [vmem:[%s644 + $0xb0] sm:$0xff]
        %v668 = vld [vmem:[%s644 + $0xb8] sm:$0xff]
        %v669 = vld [vmem:[%s644 + $0xc0] sm:$0xff]
        %v670 = vld [vmem:[%s644 + $0xc8] sm:$0xff]
        %v671 = vld [vmem:[%s644 + $0xd0] sm:$0xff]
        %v672 = vld [vmem:[%s644 + $0xd8] sm:$0xff]
        %v673 = vld [vmem:[%s644 + $0xe0] sm:$0x11]
        %v674 = vld [vmem:[%s644 + $0xe8] sm:$0x11]
        %v680 = vunpack.c.l.b16 %v639
        %v681 = vunpack.c.l.b16 %v640
        %v682 = vunpack.c.l.b16 %v641
        %v683 = vunpack.c.l.b16 %v642
        %v684 = vunpack.c.l.b16 %v643
        %v685 = vpack.c.b16 %v681, %v680
        %v686 = vpack.c.b16 %v683, %v682
        %v687 = vpack.c.b16 %v684, %v684
        %v718 = vunpack.c.l.b16 %v645
        %v719 = vunpack.c.h.b16 %v645
        %v720 = vunpack.c.l.b16 %v646
        %v721 = vunpack.c.h.b16 %v646
        %v722 = vunpack.c.l.b16 %v647
        %v723 = vunpack.c.h.b16 %v647
        %v724 = vunpack.c.l.b16 %v648
        %v725 = vunpack.c.h.b16 %v648
        %v726 = vunpack.c.l.b16 %v649
        %v727 = vunpack.c.h.b16 %v649
        %v728 = vunpack.c.l.b16 %v650
        %v729 = vunpack.c.h.b16 %v650
        %v730 = vunpack.c.l.b16 %v651
        %v731 = vunpack.c.h.b16 %v651
        %v732 = vunpack.c.l.b16 %v652
        %v733 = vunpack.c.h.b16 %v652
        %v734 = vunpack.c.l.b16 %v653
        %v735 = vunpack.c.h.b16 %v653
        %v736 = vunpack.c.l.b16 %v654
        %v737 = vunpack.c.h.b16 %v654
        %v738 = vunpack.c.l.b16 %v655
        %v739 = vunpack.c.h.b16 %v655
        %v740 = vunpack.c.l.b16 %v656
        %v741 = vunpack.c.h.b16 %v656
        %v742 = vunpack.c.l.b16 %v657
        %v743 = vunpack.c.h.b16 %v657
        %v744 = vunpack.c.l.b16 %v658
        %v745 = vunpack.c.h.b16 %v658
        %v746 = vunpack.c.l.b16 %v659
        %v747 = vunpack.c.h.b16 %v659
        %v748 = vunpack.c.l.b16 %v660
        %v749 = vunpack.c.h.b16 %v660
        %v750 = vunpack.c.l.b16 %v661
        %v751 = vunpack.c.h.b16 %v661
        %v752 = vunpack.c.l.b16 %v662
        %v753 = vunpack.c.h.b16 %v662
        %v754 = vunpack.c.l.b16 %v663
        %v755 = vunpack.c.h.b16 %v663
        %v756 = vunpack.c.l.b16 %v664
        %v757 = vunpack.c.h.b16 %v664
        %v758 = vunpack.c.l.b16 %v665
        %v759 = vunpack.c.h.b16 %v665
        %v760 = vunpack.c.l.b16 %v666
        %v761 = vunpack.c.h.b16 %v666
        %v762 = vunpack.c.l.b16 %v667
        %v763 = vunpack.c.h.b16 %v667
        %v764 = vunpack.c.l.b16 %v668
        %v765 = vunpack.c.h.b16 %v668
        %v766 = vunpack.c.l.b16 %v669
        %v767 = vunpack.c.h.b16 %v669
        %v768 = vunpack.c.l.b16 %v670
        %v769 = vunpack.c.h.b16 %v670
        %v770 = vunpack.c.l.b16 %v671
        %v771 = vunpack.c.h.b16 %v671
        %v772 = vunpack.c.l.b16 %v672
        %v773 = vunpack.c.h.b16 %v672
        %v774 = vunpack.c.l.b16 %v673
        %v775 = vunpack.c.h.b16 %v673
        %v776 = vunpack.c.l.b16 %v674
        %v777 = vunpack.c.h.b16 %v674
        %v778 = vpack.c.b16 %v722, %v718
        %v779 = vpack.c.b16 %v723, %v719
        %v780 = vpack.c.b16 %v724, %v720
        %v781 = vpack.c.b16 %v725, %v721
        %v782 = vpack.c.b16 %v730, %v726
        %v783 = vpack.c.b16 %v731, %v727
        %v784 = vpack.c.b16 %v732, %v728
        %v785 = vpack.c.b16 %v733, %v729
        %v786 = vpack.c.b16 %v738, %v734
        %v787 = vpack.c.b16 %v739, %v735
        %v788 = vpack.c.b16 %v740, %v736
        %v789 = vpack.c.b16 %v741, %v737
        %v790 = vpack.c.b16 %v746, %v742
        %v791 = vpack.c.b16 %v747, %v743
        %v792 = vpack.c.b16 %v748, %v744
        %v793 = vpack.c.b16 %v749, %v745
        %v794 = vpack.c.b16 %v754, %v750
        %v795 = vpack.c.b16 %v755, %v751
        %v796 = vpack.c.b16 %v756, %v752
        %v797 = vpack.c.b16 %v757, %v753
        %v798 = vpack.c.b16 %v762, %v758
        %v799 = vpack.c.b16 %v763, %v759
        %v800 = vpack.c.b16 %v764, %v760
        %v801 = vpack.c.b16 %v765, %v761
        %v802 = vpack.c.b16 %v770, %v766
        %v803 = vpack.c.b16 %v771, %v767
        %v804 = vpack.c.b16 %v772, %v768
        %v805 = vpack.c.b16 %v773, %v769
        %v806 = vpack.c.b16 %v774, %v774
        %v807 = vpack.c.b16 %v775, %v775
        %v808 = vpack.c.b16 %v776, %v776
        %v809 = vpack.c.b16 %v777, %v777
        %v839 = vsel %vm473, %v685, 0
        %v842 = vsel %vm473, %v686, 0
        %v845 = vsel %vm473, %v687, 0
        %v848 = vsel %vm483, %v806, 0
        %v851 = vsel %vm483, %v807, 0
        %v854 = vsel %vm483, %v808, 0
        %v857 = vsel %vm483, %v809, 0
        %859 = vmatprep.subr.bf16.mxu0 %v779
        %860 = vmatpush1.bf16.msra.mxu0 %v778
        %861 = vmatprep.subr.bf16.mxu0 %v783
        %862 = vmatpush1.bf16.msra.mxu0 %v782
        %863 = vmatprep.subr.bf16.mxu0 %v787
        %864 = vmatpush1.bf16.msra.mxu0 %v786
        %865 = vmatprep.subr.bf16.mxu0 %v791
        %866 = vmatpush1.bf16.msra.mxu0 %v790
        %867 = vmatprep.subr.bf16.mxu0 %v795
        %868 = vmatpush1.bf16.msra.mxu0 %v794
        %869 = vmatprep.subr.bf16.mxu0 %v799
        %870 = vmatpush1.bf16.msra.mxu0 %v798
        %871 = vmatprep.subr.bf16.mxu0 %v803
        %872 = vmatpush1.bf16.msra.mxu0 %v802
        %873 = vmatprep.subr.bf16.mxu0 %v851
        %874 = vmatpush1.bf16.msra.mxu0 %v848
        %875 = vmatprep.subr.bf16.mxu0 0
        %876 = vmatpush1.bf16.msra.mxu0 0
        %877 = vmatprep.subr.bf16.mxu0 0
        %878 = vmatpush1.bf16.msra.mxu0 0
        %879 = vmatprep.subr.bf16.mxu0 0
        %880 = vmatpush1.bf16.msra.mxu0 0
        %881 = vmatprep.subr.bf16.mxu0 0
        %882 = vmatpush1.bf16.msra.mxu0 0
        %883 = vmatprep.subr.bf16.mxu0 0
        %884 = vmatpush1.bf16.msra.mxu0 0
        %885 = vmatprep.subr.bf16.mxu0 0
        %886 = vmatpush1.bf16.msra.mxu0 0
        %887 = vmatprep.subr.bf16.mxu0 0
        %888 = vmatpush1.bf16.msra.mxu0 0
        %889 = vmatprep.subr.bf16.mxu0 0
        %890 = vmatpush1.bf16.msra.mxu0 0
        %891 = vmatprep.mubr.bf16.mxu0 0
        %892 = vmatmul.mubr.bf16.gmra.mrb[0].mxu0 %v839
        %v893 = vpop.f32.mrb[0].mxu0
        %v894 = vadd.f32 0.0, %v893
        %v895 = vpop.f32.mrb[0].mxu0
        %v896 = vadd.f32 0.0, %v895
        %v897 = vpop.f32.mrb[0].mxu0
        %v898 = vadd.f32 0.0, %v897
        %v899 = vpop.f32.mrb[0].mxu0
        %v900 = vadd.f32 0.0, %v899
        %901 = vmatprep.mubr.bf16.mxu0 0
        %902 = vmatmul.mubr.bf16.gmra.mrb[0].mxu0 %v842
        %v903 = vpop.f32.mrb[0].mxu0
        %v904 = vadd.f32 0.0, %v903
        %v905 = vpop.f32.mrb[0].mxu0
        %v906 = vadd.f32 0.0, %v905
        %v907 = vpop.f32.mrb[0].mxu0
        %v908 = vadd.f32 0.0, %v907
        %v909 = vpop.f32.mrb[0].mxu0
        %v910 = vadd.f32 0.0, %v909
        %911 = vmatprep.mubr.bf16.mxu0 0
        %912 = vmatmul.mubr.bf16.gmra.mrb[0].mxu0 %v845
        %v913 = vpop.f32.mrb[0].mxu0
        %v914 = vadd.f32 0.0, %v913
        %v915 = vpop.f32.mrb[0].mxu0
        %v916 = vadd.f32 0.0, %v915
        %v917 = vpop.f32.mrb[0].mxu0
        %v918 = vpop.f32.mrb[0].mxu0
        %919 = vdwg.mxu0
        %920 = vmatprep.subr.bf16.mxu0 %v781
        %921 = vmatpush1.bf16.msra.mxu0 %v780
        %922 = vmatprep.subr.bf16.mxu0 %v785
        %923 = vmatpush1.bf16.msra.mxu0 %v784
        %924 = vmatprep.subr.bf16.mxu0 %v789
        %925 = vmatpush1.bf16.msra.mxu0 %v788
        %926 = vmatprep.subr.bf16.mxu0 %v793
        %927 = vmatpush1.bf16.msra.mxu0 %v792
        %928 = vmatprep.subr.bf16.mxu0 %v797
        %929 = vmatpush1.bf16.msra.mxu0 %v796
        %930 = vmatprep.subr.bf16.mxu0 %v801
        %931 = vmatpush1.bf16.msra.mxu0 %v800
        %932 = vmatprep.subr.bf16.mxu0 %v805
        %933 = vmatpush1.bf16.msra.mxu0 %v804
        %934 = vmatprep.subr.bf16.mxu0 %v857
        %935 = vmatpush1.bf16.msra.mxu0 %v854
        %936 = vmatprep.subr.bf16.mxu0 0
        %937 = vmatpush1.bf16.msra.mxu0 0
        %938 = vmatprep.subr.bf16.mxu0 0
        %939 = vmatpush1.bf16.msra.mxu0 0
        %940 = vmatprep.subr.bf16.mxu0 0
        %941 = vmatpush1.bf16.msra.mxu0 0
        %942 = vmatprep.subr.bf16.mxu0 0
        %943 = vmatpush1.bf16.msra.mxu0 0
        %944 = vmatprep.subr.bf16.mxu0 0
        %945 = vmatpush1.bf16.msra.mxu0 0
        %946 = vmatprep.subr.bf16.mxu0 0
        %947 = vmatpush1.bf16.msra.mxu0 0
        %948 = vmatprep.subr.bf16.mxu0 0
        %949 = vmatpush1.bf16.msra.mxu0 0
        %950 = vmatprep.subr.bf16.mxu0 0
        %951 = vmatpush1.bf16.msra.mxu0 0
        %952 = vmatprep.mubr.bf16.mxu0 0
        %953 = vmatmul.mubr.bf16.gmra.mrb[0].mxu0 %v839
        %v954 = vpop.f32.mrb[0].mxu0
        %v955 = vadd.f32 0.0, %v954
        %v956 = vpop.f32.mrb[0].mxu0
        %v957 = vadd.f32 0.0, %v956
        %v958 = vpop.f32.mrb[0].mxu0
        %v959 = vadd.f32 0.0, %v958
        %v960 = vpop.f32.mrb[0].mxu0
        %v961 = vadd.f32 0.0, %v960
        %962 = vmatprep.mubr.bf16.mxu0 0
        %963 = vmatmul.mubr.bf16.gmra.mrb[0].mxu0 %v842
        %v964 = vpop.f32.mrb[0].mxu0
        %v965 = vadd.f32 0.0, %v964
        %v966 = vpop.f32.mrb[0].mxu0
        %v967 = vadd.f32 0.0, %v966
        %v968 = vpop.f32.mrb[0].mxu0
        %v969 = vadd.f32 0.0, %v968
        %v970 = vpop.f32.mrb[0].mxu0
        %v971 = vadd.f32 0.0, %v970
        %972 = vmatprep.mubr.bf16.mxu0 0
        %973 = vmatmul.mubr.bf16.gmra.mrb[0].mxu0 %v845
        %v974 = vpop.f32.mrb[0].mxu0
        %v975 = vadd.f32 0.0, %v974
        %v976 = vpop.f32.mrb[0].mxu0
        %v977 = vadd.f32 0.0, %v976
        %v978 = vpop.f32.mrb[0].mxu0
        %v979 = vpop.f32.mrb[0].mxu0
        %980 = vdwg.mxu0
        %v981 = vld [vmem:[#allocation2] sm:$0xff]
        %v982 = vld [vmem:[#allocation2 + $0x8] sm:$0xff]
        %v983 = vld [vmem:[#allocation2 + $0x10] sm:$0xff]
        %v984 = vld [vmem:[#allocation2 + $0x18] sm:$0xff]
        %v985 = vld [vmem:[#allocation2 + $0x20] sm:$0xff]
        %v986 = vld [vmem:[#allocation2 + $0x28] sm:$0xff]
        %v987 = vld [vmem:[#allocation2 + $0x30] sm:$0xff]
        %v988 = vld [vmem:[#allocation2 + $0x38] sm:$0xff]
        %v989 = vld [vmem:[#allocation2 + $0x40] sm:$0xff]
        %v990 = vld [vmem:[#allocation2 + $0x48] sm:$0xff]
        %v991 = vld [vmem:[#allocation2 + $0x50] sm:$0xff]
        %v992 = vld [vmem:[#allocation2 + $0x58] sm:$0xff]
        %v993 = vld [vmem:[#allocation2 + $0x60] sm:$0xff]
        %v994 = vld [vmem:[#allocation2 + $0x68] sm:$0xff]
        %v995 = vld [vmem:[#allocation2 + $0x70] sm:$0xff]
        %v996 = vld [vmem:[#allocation2 + $0x78] sm:$0xff]
        %v997 = vld [vmem:[#allocation2 + $0x80] sm:$0xff]
        %v998 = vld [vmem:[#allocation2 + $0x88] sm:$0xff]
        %v999 = vld [vmem:[#allocation2 + $0x90] sm:$0xff]
        %v1000 = vld [vmem:[#allocation2 + $0x98] sm:$0xff]
        %v1001 = vadd.f32 %v981, %v894
        %v1002 = vadd.f32 %v982, %v896
        %v1003 = vadd.f32 %v983, %v955
        %v1004 = vadd.f32 %v984, %v957
        %v1005 = vadd.f32 %v985, %v898
        %v1006 = vadd.f32 %v986, %v900
        %v1007 = vadd.f32 %v987, %v959
        %v1008 = vadd.f32 %v988, %v961
        %v1009 = vadd.f32 %v989, %v904
        %v1010 = vadd.f32 %v990, %v906
        %v1011 = vadd.f32 %v991, %v965
        %v1012 = vadd.f32 %v992, %v967
        %v1013 = vadd.f32 %v993, %v908
        %v1014 = vadd.f32 %v994, %v910
        %v1015 = vadd.f32 %v995, %v969
        %v1016 = vadd.f32 %v996, %v971
        %v1017 = vadd.f32 %v997, %v914
        %v1018 = vadd.f32 %v998, %v916
        %v1019 = vadd.f32 %v999, %v975
        %v1020 = vadd.f32 %v1000, %v977
        %1021 = vst [vmem:[#allocation2] sm:$0xff] %v1001
        %1022 = vst [vmem:[#allocation2 + $0x8] sm:$0xff] %v1002
        %1023 = vst [vmem:[#allocation2 + $0x10] sm:$0xff] %v1003
        %1024 = vst [vmem:[#allocation2 + $0x18] sm:$0xff] %v1004
        %1025 = vst [vmem:[#allocation2 + $0x20] sm:$0xff] %v1005
        %1026 = vst [vmem:[#allocation2 + $0x28] sm:$0xff] %v1006
        %1027 = vst [vmem:[#allocation2 + $0x30] sm:$0xff] %v1007
        %1028 = vst [vmem:[#allocation2 + $0x38] sm:$0xff] %v1008
        %1029 = vst [vmem:[#allocation2 + $0x40] sm:$0xff] %v1009
        %1030 = vst [vmem:[#allocation2 + $0x48] sm:$0xff] %v1010
        %1031 = vst [vmem:[#allocation2 + $0x50] sm:$0xff] %v1011
        %1032 = vst [vmem:[#allocation2 + $0x58] sm:$0xff] %v1012
        %1033 = vst [vmem:[#allocation2 + $0x60] sm:$0xff] %v1013
        %1034 = vst [vmem:[#allocation2 + $0x68] sm:$0xff] %v1014
        %1035 = vst [vmem:[#allocation2 + $0x70] sm:$0xff] %v1015
        %1036 = vst [vmem:[#allocation2 + $0x78] sm:$0xff] %v1016
        %1037 = vst [vmem:[#allocation2 + $0x80] sm:$0xff] %v1017
        %1038 = vst [vmem:[#allocation2 + $0x88] sm:$0xff] %v1018
        %1039 = vst [vmem:[#allocation2 + $0x90] sm:$0xff] %v1019
        %1040 = vst [vmem:[#allocation2 + $0x98] sm:$0xff] %v1020
        %v1041 = vld [vmem:[%s234] sm:$0xf]
        %v1042 = vld [vmem:[%s234 + $0x4] sm:$0xf]
        %v1043 = vld [vmem:[%s234 + $0x8] sm:$0xf]
        %v1044 = vld [vmem:[%s234 + $0xc] sm:$0xf]
        %v1045 = vld [vmem:[%s234 + $0x10] sm:$0xf]
        %v1046 = vld [vmem:[%s234 + $0x14] sm:$0x1]
        %s1047 = scalar_lea.vmem [#allocation6], 480
        %v1048 = vld [vmem:[%s1047] sm:$0xff]
        %v1049 = vld [vmem:[%s1047 + $0x8] sm:$0xff]
        %v1050 = vld [vmem:[%s1047 + $0x10] sm:$0xff]
        %v1051 = vld [vmem:[%s1047 + $0x18] sm:$0xff]
        %v1052 = vld [vmem:[%s1047 + $0x20] sm:$0xff]
        %v1053 = vld [vmem:[%s1047 + $0x28] sm:$0xff]
        %v1054 = vld [vmem:[%s1047 + $0x30] sm:$0xff]
        %v1055 = vld [vmem:[%s1047 + $0x38] sm:$0xff]
        %v1056 = vld [vmem:[%s1047 + $0x40] sm:$0xff]
        %v1057 = vld [vmem:[%s1047 + $0x48] sm:$0xff]
        %v1058 = vld [vmem:[%s1047 + $0x50] sm:$0xff]
        %v1059 = vld [vmem:[%s1047 + $0x58] sm:$0xff]
        %v1060 = vld [vmem:[%s1047 + $0x60] sm:$0xff]
        %v1061 = vld [vmem:[%s1047 + $0x68] sm:$0xff]
        %v1062 = vld [vmem:[%s1047 + $0x70] sm:$0xff]
        %v1063 = vld [vmem:[%s1047 + $0x78] sm:$0xff]
        %v1064 = vld [vmem:[%s1047 + $0x80] sm:$0xff]
        %v1065 = vld [vmem:[%s1047 + $0x88] sm:$0xff]
        %v1066 = vld [vmem:[%s1047 + $0x90] sm:$0xff]
        %v1067 = vld [vmem:[%s1047 + $0x98] sm:$0xff]
        %v1068 = vld [vmem:[%s1047 + $0xa0] sm:$0xff]
        %v1069 = vld [vmem:[%s1047 + $0xa8] sm:$0xff]
        %v1070 = vld [vmem:[%s1047 + $0xb0] sm:$0xff]
        %v1071 = vld [vmem:[%s1047 + $0xb8] sm:$0xff]
        %v1072 = vld [vmem:[%s1047 + $0xc0] sm:$0xff]
        %v1073 = vld [vmem:[%s1047 + $0xc8] sm:$0xff]
        %v1074 = vld [vmem:[%s1047 + $0xd0] sm:$0xff]
        %v1075 = vld [vmem:[%s1047 + $0xd8] sm:$0xff]
        %v1076 = vld [vmem:[%s1047 + $0xe0] sm:$0x11]
        %v1077 = vld [vmem:[%s1047 + $0xe8] sm:$0x11]
        %v1084 = vunpack.c.l.b16 %v1041
        %v1085 = vunpack.c.l.b16 %v1042
        %v1086 = vunpack.c.l.b16 %v1043
        %v1087 = vunpack.c.l.b16 %v1044
        %v1088 = vunpack.c.l.b16 %v1045
        %v1089 = vunpack.c.l.b16 %v1046
        %v1090 = vpack.c.b16 %v1085, %v1084
        %v1091 = vpack.c.b16 %v1087, %v1086
        %v1092 = vpack.c.b16 %v1089, %v1088
        %vm1093 = vsmask.f32 7424
        %v1095 = vshrl.u32 %v1090, 16
        %v1097 = vshll.u32 %v1090, 16
        %v1099 = vrot.slane %v1097, 1
        %v1100 = vor.u32 %v1095, %v1099
        %v1102 = vshll.u32 %v1091, 16
        %v1104 = vrot.slane %v1102, 1
        %v1105 = vsel %vm1093, %v1100, %v1104
        %v1106 = vshrl.u32 %v1091, 16
        %v1108 = vor.u32 %v1106, %v1104
        %v1110 = vshll.u32 %v1092, 16
        %v1112 = vrot.slane %v1110, 1
        %v1113 = vsel %vm1093, %v1108, %v1112
        %v1114 = vshrl.u32 %v1092, 16
        %v1116 = vor.u32 %v1114, %v1112
        %v1147 = vunpack.c.l.b16 %v1048
        %v1148 = vunpack.c.h.b16 %v1048
        %v1149 = vunpack.c.l.b16 %v1049
        %v1150 = vunpack.c.h.b16 %v1049
        %v1151 = vunpack.c.l.b16 %v1050
        %v1152 = vunpack.c.h.b16 %v1050
        %v1153 = vunpack.c.l.b16 %v1051
        %v1154 = vunpack.c.h.b16 %v1051
        %v1155 = vunpack.c.l.b16 %v1052
        %v1156 = vunpack.c.h.b16 %v1052
        %v1157 = vunpack.c.l.b16 %v1053
        %v1158 = vunpack.c.h.b16 %v1053
        %v1159 = vunpack.c.l.b16 %v1054
        %v1160 = vunpack.c.h.b16 %v1054
        %v1161 = vunpack.c.l.b16 %v1055
        %v1162 = vunpack.c.h.b16 %v1055
        %v1163 = vunpack.c.l.b16 %v1056
        %v1164 = vunpack.c.h.b16 %v1056
        %v1165 = vunpack.c.l.b16 %v1057
        %v1166 = vunpack.c.h.b16 %v1057
        %v1167 = vunpack.c.l.b16 %v1058
        %v1168 = vunpack.c.h.b16 %v1058
        %v1169 = vunpack.c.l.b16 %v1059
        %v1170 = vunpack.c.h.b16 %v1059
        %v1171 = vunpack.c.l.b16 %v1060
        %v1172 = vunpack.c.h.b16 %v1060
        %v1173 = vunpack.c.l.b16 %v1061
        %v1174 = vunpack.c.h.b16 %v1061
        %v1175 = vunpack.c.l.b16 %v1062
        %v1176 = vunpack.c.h.b16 %v1062
        %v1177 = vunpack.c.l.b16 %v1063
        %v1178 = vunpack.c.h.b16 %v1063
        %v1179 = vunpack.c.l.b16 %v1064
        %v1180 = vunpack.c.h.b16 %v1064
        %v1181 = vunpack.c.l.b16 %v1065
        %v1182 = vunpack.c.h.b16 %v1065
        %v1183 = vunpack.c.l.b16 %v1066
        %v1184 = vunpack.c.h.b16 %v1066
        %v1185 = vunpack.c.l.b16 %v1067
        %v1186 = vunpack.c.h.b16 %v1067
        %v1187 = vunpack.c.l.b16 %v1068
        %v1188 = vunpack.c.h.b16 %v1068
        %v1189 = vunpack.c.l.b16 %v1069
        %v1190 = vunpack.c.h.b16 %v1069
        %v1191 = vunpack.c.l.b16 %v1070
        %v1192 = vunpack.c.h.b16 %v1070
        %v1193 = vunpack.c.l.b16 %v1071
        %v1194 = vunpack.c.h.b16 %v1071
        %v1195 = vunpack.c.l.b16 %v1072
        %v1196 = vunpack.c.h.b16 %v1072
        %v1197 = vunpack.c.l.b16 %v1073
        %v1198 = vunpack.c.h.b16 %v1073
        %v1199 = vunpack.c.l.b16 %v1074
        %v1200 = vunpack.c.h.b16 %v1074
        %v1201 = vunpack.c.l.b16 %v1075
        %v1202 = vunpack.c.h.b16 %v1075
        %v1203 = vunpack.c.l.b16 %v1076
        %v1204 = vunpack.c.h.b16 %v1076
        %v1205 = vunpack.c.l.b16 %v1077
        %v1206 = vunpack.c.h.b16 %v1077
        %v1207 = vpack.c.b16 %v1151, %v1147
        %v1208 = vpack.c.b16 %v1152, %v1148
        %v1209 = vpack.c.b16 %v1153, %v1149
        %v1210 = vpack.c.b16 %v1154, %v1150
        %v1211 = vpack.c.b16 %v1159, %v1155
        %v1212 = vpack.c.b16 %v1160, %v1156
        %v1213 = vpack.c.b16 %v1161, %v1157
        %v1214 = vpack.c.b16 %v1162, %v1158
        %v1215 = vpack.c.b16 %v1167, %v1163
        %v1216 = vpack.c.b16 %v1168, %v1164
        %v1217 = vpack.c.b16 %v1169, %v1165
        %v1218 = vpack.c.b16 %v1170, %v1166
        %v1219 = vpack.c.b16 %v1175, %v1171
        %v1220 = vpack.c.b16 %v1176, %v1172
        %v1221 = vpack.c.b16 %v1177, %v1173
        %v1222 = vpack.c.b16 %v1178, %v1174
        %v1223 = vpack.c.b16 %v1183, %v1179
        %v1224 = vpack.c.b16 %v1184, %v1180
        %v1225 = vpack.c.b16 %v1185, %v1181
        %v1226 = vpack.c.b16 %v1186, %v1182
        %v1227 = vpack.c.b16 %v1191, %v1187
        %v1228 = vpack.c.b16 %v1192, %v1188
        %v1229 = vpack.c.b16 %v1193, %v1189
        %v1230 = vpack.c.b16 %v1194, %v1190
        %v1231 = vpack.c.b16 %v1199, %v1195
        %v1232 = vpack.c.b16 %v1200, %v1196
        %v1233 = vpack.c.b16 %v1201, %v1197
        %v1234 = vpack.c.b16 %v1202, %v1198
        %v1235 = vpack.c.b16 %v1203, %v1203
        %v1236 = vpack.c.b16 %v1204, %v1204
        %v1237 = vpack.c.b16 %v1205, %v1205
        %v1238 = vpack.c.b16 %v1206, %v1206
        %v1268 = vsel %vm473, %v1105, 0
        %v1271 = vsel %vm473, %v1113, 0
        %v1274 = vsel %vm473, %v1116, 0
        %v1277 = vsel %vm483, %v1235, 0
        %v1280 = vsel %vm483, %v1236, 0
        %v1283 = vsel %vm483, %v1237, 0
        %v1286 = vsel %vm483, %v1238, 0
        %1288 = vmatprep.subr.bf16.mxu0 %v1208
        %1289 = vmatpush1.bf16.msra.mxu0 %v1207
        %1290 = vmatprep.subr.bf16.mxu0 %v1212
        %1291 = vmatpush1.bf16.msra.mxu0 %v1211
        %1292 = vmatprep.subr.bf16.mxu0 %v1216
        %1293 = vmatpush1.bf16.msra.mxu0 %v1215
        %1294 = vmatprep.subr.bf16.mxu0 %v1220
        %1295 = vmatpush1.bf16.msra.mxu0 %v1219
        %1296 = vmatprep.subr.bf16.mxu0 %v1224
        %1297 = vmatpush1.bf16.msra.mxu0 %v1223
        %1298 = vmatprep.subr.bf16.mxu0 %v1228
        %1299 = vmatpush1.bf16.msra.mxu0 %v1227
        %1300 = vmatprep.subr.bf16.mxu0 %v1232
        %1301 = vmatpush1.bf16.msra.mxu0 %v1231
        %1302 = vmatprep.subr.bf16.mxu0 %v1280
        %1303 = vmatpush1.bf16.msra.mxu0 %v1277
        %1304 = vmatprep.subr.bf16.mxu0 0
        %1305 = vmatpush1.bf16.msra.mxu0 0
        %1306 = vmatprep.subr.bf16.mxu0 0
        %1307 = vmatpush1.bf16.msra.mxu0 0
        %1308 = vmatprep.subr.bf16.mxu0 0
        %1309 = vmatpush1.bf16.msra.mxu0 0
        %1310 = vmatprep.subr.bf16.mxu0 0
        %1311 = vmatpush1.bf16.msra.mxu0 0
        %1312 = vmatprep.subr.bf16.mxu0 0
        %1313 = vmatpush1.bf16.msra.mxu0 0
        %1314 = vmatprep.subr.bf16.mxu0 0
        %1315 = vmatpush1.bf16.msra.mxu0 0
        %1316 = vmatprep.subr.bf16.mxu0 0
        %1317 = vmatpush1.bf16.msra.mxu0 0
        %1318 = vmatprep.subr.bf16.mxu0 0
        %1319 = vmatpush1.bf16.msra.mxu0 0
        %1320 = vmatprep.mubr.bf16.mxu0 0
        %1321 = vmatmul.mubr.bf16.gmra.mrb[0].mxu0 %v1268
        %v1322 = vpop.f32.mrb[0].mxu0
        %v1323 = vadd.f32 0.0, %v1322
        %v1324 = vpop.f32.mrb[0].mxu0
        %v1325 = vadd.f32 0.0, %v1324
        %v1326 = vpop.f32.mrb[0].mxu0
        %v1327 = vadd.f32 0.0, %v1326
        %v1328 = vpop.f32.mrb[0].mxu0
        %v1329 = vadd.f32 0.0, %v1328
        %1330 = vmatprep.mubr.bf16.mxu0 0
        %1331 = vmatmul.mubr.bf16.gmra.mrb[0].mxu0 %v1271
        %v1332 = vpop.f32.mrb[0].mxu0
        %v1333 = vadd.f32 0.0, %v1332
        %v1334 = vpop.f32.mrb[0].mxu0
        %v1335 = vadd.f32 0.0, %v1334
        %v1336 = vpop.f32.mrb[0].mxu0
        %v1337 = vadd.f32 0.0, %v1336
        %v1338 = vpop.f32.mrb[0].mxu0
        %v1339 = vadd.f32 0.0, %v1338
        %1340 = vmatprep.mubr.bf16.mxu0 0
        %1341 = vmatmul.mubr.bf16.gmra.mrb[0].mxu0 %v1274
        %v1342 = vpop.f32.mrb[0].mxu0
        %v1343 = vadd.f32 0.0, %v1342
        %v1344 = vpop.f32.mrb[0].mxu0
        %v1345 = vadd.f32 0.0, %v1344
        %v1346 = vpop.f32.mrb[0].mxu0
        %v1347 = vpop.f32.mrb[0].mxu0
        %1348 = vdwg.mxu0
        %1349 = vmatprep.subr.bf16.mxu0 %v1210
        %1350 = vmatpush1.bf16.msra.mxu0 %v1209
        %1351 = vmatprep.subr.bf16.mxu0 %v1214
        %1352 = vmatpush1.bf16.msra.mxu0 %v1213
        %1353 = vmatprep.subr.bf16.mxu0 %v1218
        %1354 = vmatpush1.bf16.msra.mxu0 %v1217
        %1355 = vmatprep.subr.bf16.mxu0 %v1222
        %1356 = vmatpush1.bf16.msra.mxu0 %v1221
        %1357 = vmatprep.subr.bf16.mxu0 %v1226
        %1358 = vmatpush1.bf16.msra.mxu0 %v1225
        %1359 = vmatprep.subr.bf16.mxu0 %v1230
        %1360 = vmatpush1.bf16.msra.mxu0 %v1229
        %1361 = vmatprep.subr.bf16.mxu0 %v1234
        %1362 = vmatpush1.bf16.msra.mxu0 %v1233
        %1363 = vmatprep.subr.bf16.mxu0 %v1286
        %1364 = vmatpush1.bf16.msra.mxu0 %v1283
        %1365 = vmatprep.subr.bf16.mxu0 0
        %1366 = vmatpush1.bf16.msra.mxu0 0
        %1367 = vmatprep.subr.bf16.mxu0 0
        %1368 = vmatpush1.bf16.msra.mxu0 0
        %1369 = vmatprep.subr.bf16.mxu0 0
        %1370 = vmatpush1.bf16.msra.mxu0 0
        %1371 = vmatprep.subr.bf16.mxu0 0
        %1372 = vmatpush1.bf16.msra.mxu0 0
        %1373 = vmatprep.subr.bf16.mxu0 0
        %1374 = vmatpush1.bf16.msra.mxu0 0
        %1375 = vmatprep.subr.bf16.mxu0 0
        %1376 = vmatpush1.bf16.msra.mxu0 0
        %1377 = vmatprep.subr.bf16.mxu0 0
        %1378 = vmatpush1.bf16.msra.mxu0 0
        %1379 = vmatprep.subr.bf16.mxu0 0
        %1380 = vmatpush1.bf16.msra.mxu0 0
        %1381 = vmatprep.mubr.bf16.mxu0 0
        %1382 = vmatmul.mubr.bf16.gmra.mrb[0].mxu0 %v1268
        %v1383 = vpop.f32.mrb[0].mxu0
        %v1384 = vadd.f32 0.0, %v1383
        %v1385 = vpop.f32.mrb[0].mxu0
        %v1386 = vadd.f32 0.0, %v1385
        %v1387 = vpop.f32.mrb[0].mxu0
        %v1388 = vadd.f32 0.0, %v1387
        %v1389 = vpop.f32.mrb[0].mxu0
        %v1390 = vadd.f32 0.0, %v1389
        %1391 = vmatprep.mubr.bf16.mxu0 0
        %1392 = vmatmul.mubr.bf16.gmra.mrb[0].mxu0 %v1271
        %v1393 = vpop.f32.mrb[0].mxu0
        %v1394 = vadd.f32 0.0, %v1393
        %v1395 = vpop.f32.mrb[0].mxu0
        %v1396 = vadd.f32 0.0, %v1395
        %v1397 = vpop.f32.mrb[0].mxu0
        %v1398 = vadd.f32 0.0, %v1397
        %v1399 = vpop.f32.mrb[0].mxu0
        %v1400 = vadd.f32 0.0, %v1399
        %1401 = vmatprep.mubr.bf16.mxu0 0
        %1402 = vmatmul.mubr.bf16.gmra.mrb[0].mxu0 %v1274
        %v1403 = vpop.f32.mrb[0].mxu0
        %v1404 = vadd.f32 0.0, %v1403
        %v1405 = vpop.f32.mrb[0].mxu0
        %v1406 = vadd.f32 0.0, %v1405
        %v1407 = vpop.f32.mrb[0].mxu0
        %v1408 = vpop.f32.mrb[0].mxu0
        %1409 = vdwg.mxu0
        %v1410 = vld [vmem:[#allocation2] sm:$0xff]
        %v1411 = vld [vmem:[#allocation2 + $0x8] sm:$0xff]
        %v1412 = vld [vmem:[#allocation2 + $0x10] sm:$0xff]
        %v1413 = vld [vmem:[#allocation2 + $0x18] sm:$0xff]
        %v1414 = vld [vmem:[#allocation2 + $0x20] sm:$0xff]
        %v1415 = vld [vmem:[#allocation2 + $0x28] sm:$0xff]
        %v1416 = vld [vmem:[#allocation2 + $0x30] sm:$0xff]
        %v1417 = vld [vmem:[#allocation2 + $0x38] sm:$0xff]
        %v1418 = vld [vmem:[#allocation2 + $0x40] sm:$0xff]
        %v1419 = vld [vmem:[#allocation2 + $0x48] sm:$0xff]
        %v1420 = vld [vmem:[#allocation2 + $0x50] sm:$0xff]
        %v1421 = vld [vmem:[#allocation2 + $0x58] sm:$0xff]
        %v1422 = vld [vmem:[#allocation2 + $0x60] sm:$0xff]
        %v1423 = vld [vmem:[#allocation2 + $0x68] sm:$0xff]
        %v1424 = vld [vmem:[#allocation2 + $0x70] sm:$0xff]
        %v1425 = vld [vmem:[#allocation2 + $0x78] sm:$0xff]
        %v1426 = vld [vmem:[#allocation2 + $0x80] sm:$0xff]
        %v1427 = vld [vmem:[#allocation2 + $0x88] sm:$0xff]
        %v1428 = vld [vmem:[#allocation2 + $0x90] sm:$0xff]
        %v1429 = vld [vmem:[#allocation2 + $0x98] sm:$0xff]
        %v1430 = vadd.f32 %v1410, %v1323
        %v1431 = vadd.f32 %v1411, %v1325
        %v1432 = vadd.f32 %v1412, %v1384
        %v1433 = vadd.f32 %v1413, %v1386
        %v1434 = vadd.f32 %v1414, %v1327
        %v1435 = vadd.f32 %v1415, %v1329
        %v1436 = vadd.f32 %v1416, %v1388
        %v1437 = vadd.f32 %v1417, %v1390
        %v1438 = vadd.f32 %v1418, %v1333
        %v1439 = vadd.f32 %v1419, %v1335
        %v1440 = vadd.f32 %v1420, %v1394
        %v1441 = vadd.f32 %v1421, %v1396
        %v1442 = vadd.f32 %v1422, %v1337
        %v1443 = vadd.f32 %v1423, %v1339
        %v1444 = vadd.f32 %v1424, %v1398
        %v1445 = vadd.f32 %v1425, %v1400
        %v1446 = vadd.f32 %v1426, %v1343
        %v1447 = vadd.f32 %v1427, %v1345
        %v1448 = vadd.f32 %v1428, %v1404
        %v1449 = vadd.f32 %v1429, %v1406
        %1450 = vst [vmem:[#allocation2] sm:$0xff] %v1430
        %1451 = vst [vmem:[#allocation2 + $0x8] sm:$0xff] %v1431
        %1452 = vst [vmem:[#allocation2 + $0x10] sm:$0xff] %v1432
        %1453 = vst [vmem:[#allocation2 + $0x18] sm:$0xff] %v1433
        %1454 = vst [vmem:[#allocation2 + $0x20] sm:$0xff] %v1434
        %1455 = vst [vmem:[#allocation2 + $0x28] sm:$0xff] %v1435
        %1456 = vst [vmem:[#allocation2 + $0x30] sm:$0xff] %v1436
        %1457 = vst [vmem:[#allocation2 + $0x38] sm:$0xff] %v1437
        %1458 = vst [vmem:[#allocation2 + $0x40] sm:$0xff] %v1438
        %1459 = vst [vmem:[#allocation2 + $0x48] sm:$0xff] %v1439
        %1460 = vst [vmem:[#allocation2 + $0x50] sm:$0xff] %v1440
        %1461 = vst [vmem:[#allocation2 + $0x58] sm:$0xff] %v1441
        %1462 = vst [vmem:[#allocation2 + $0x60] sm:$0xff] %v1442
        %1463 = vst [vmem:[#allocation2 + $0x68] sm:$0xff] %v1443
        %1464 = vst [vmem:[#allocation2 + $0x70] sm:$0xff] %v1444
        %1465 = vst [vmem:[#allocation2 + $0x78] sm:$0xff] %v1445
        %1466 = vst [vmem:[#allocation2 + $0x80] sm:$0xff] %v1446
        %1467 = vst [vmem:[#allocation2 + $0x88] sm:$0xff] %v1447
        %1468 = vst [vmem:[#allocation2 + $0x90] sm:$0xff] %v1448
        %1469 = vst [vmem:[#allocation2 + $0x98] sm:$0xff] %v1449
        %v1470 = vld [vmem:[%s638] sm:$0xf]
        %v1471 = vld [vmem:[%s638 + $0x4] sm:$0xf]
        %v1472 = vld [vmem:[%s638 + $0x8] sm:$0xf]
        %v1473 = vld [vmem:[%s638 + $0xc] sm:$0xf]
        %v1474 = vld [vmem:[%s638 + $0x10] sm:$0xf]
        %v1475 = vld [vmem:[%s638 + $0x14] sm:$0x1]
        %s1476 = scalar_lea.vmem [#allocation6], 720
        %v1477 = vld [vmem:[%s1476] sm:$0xff]
        %v1478 = vld [vmem:[%s1476 + $0x8] sm:$0xff]
        %v1479 = vld [vmem:[%s1476 + $0x10] sm:$0xff]
        %v1480 = vld [vmem:[%s1476 + $0x18] sm:$0xff]
        %v1481 = vld [vmem:[%s1476 + $0x20] sm:$0xff]
        %v1482 = vld [vmem:[%s1476 + $0x28] sm:$0xff]
        %v1483 = vld [vmem:[%s1476 + $0x30] sm:$0xff]
        %v1484 = vld [vmem:[%s1476 + $0x38] sm:$0xff]
        %v1485 = vld [vmem:[%s1476 + $0x40] sm:$0xff]
        %v1486 = vld [vmem:[%s1476 + $0x48] sm:$0xff]
        %v1487 = vld [vmem:[%s1476 + $0x50] sm:$0xff]
        %v1488 = vld [vmem:[%s1476 + $0x58] sm:$0xff]
        %v1489 = vld [vmem:[%s1476 + $0x60] sm:$0xff]
        %v1490 = vld [vmem:[%s1476 + $0x68] sm:$0xff]
        %v1491 = vld [vmem:[%s1476 + $0x70] sm:$0xff]
        %v1492 = vld [vmem:[%s1476 + $0x78] sm:$0xff]
        %v1493 = vld [vmem:[%s1476 + $0x80] sm:$0xff]
        %v1494 = vld [vmem:[%s1476 + $0x88] sm:$0xff]
        %v1495 = vld [vmem:[%s1476 + $0x90] sm:$0xff]
        %v1496 = vld [vmem:[%s1476 + $0x98] sm:$0xff]
        %v1497 = vld [vmem:[%s1476 + $0xa0] sm:$0xff]
        %v1498 = vld [vmem:[%s1476 + $0xa8] sm:$0xff]
        %v1499 = vld [vmem:[%s1476 + $0xb0] sm:$0xff]
        %v1500 = vld [vmem:[%s1476 + $0xb8] sm:$0xff]
        %v1501 = vld [vmem:[%s1476 + $0xc0] sm:$0xff]
        %v1502 = vld [vmem:[%s1476 + $0xc8] sm:$0xff]
        %v1503 = vld [vmem:[%s1476 + $0xd0] sm:$0xff]
        %v1504 = vld [vmem:[%s1476 + $0xd8] sm:$0xff]
        %v1505 = vld [vmem:[%s1476 + $0xe0] sm:$0x11]
        %v1506 = vld [vmem:[%s1476 + $0xe8] sm:$0x11]
        %v1513 = vunpack.c.l.b16 %v1470
        %v1514 = vunpack.c.l.b16 %v1471
        %v1515 = vunpack.c.l.b16 %v1472
        %v1516 = vunpack.c.l.b16 %v1473
        %v1517 = vunpack.c.l.b16 %v1474
        %v1518 = vunpack.c.l.b16 %v1475
        %v1519 = vpack.c.b16 %v1514, %v1513
        %v1520 = vpack.c.b16 %v1516, %v1515
        %v1521 = vpack.c.b16 %v1518, %v1517
        %v1523 = vshrl.u32 %v1519, 16
        %v1525 = vshll.u32 %v1519, 16
        %v1527 = vrot.slane %v1525, 1
        %v1528 = vor.u32 %v1523, %v1527
        %v1530 = vshll.u32 %v1520, 16
        %v1532 = vrot.slane %v1530, 1
        %v1533 = vsel %vm1093, %v1528, %v1532
        %v1534 = vshrl.u32 %v1520, 16
        %v1536 = vor.u32 %v1534, %v1532
        %v1538 = vshll.u32 %v1521, 16
        %v1540 = vrot.slane %v1538, 1
        %v1541 = vsel %vm1093, %v1536, %v1540
        %v1542 = vshrl.u32 %v1521, 16
        %v1544 = vor.u32 %v1542, %v1540
        %v1575 = vunpack.c.l.b16 %v1477
        %v1576 = vunpack.c.h.b16 %v1477
        %v1577 = vunpack.c.l.b16 %v1478
        %v1578 = vunpack.c.h.b16 %v1478
        %v1579 = vunpack.c.l.b16 %v1479
        %v1580 = vunpack.c.h.b16 %v1479
        %v1581 = vunpack.c.l.b16 %v1480
        %v1582 = vunpack.c.h.b16 %v1480
        %v1583 = vunpack.c.l.b16 %v1481
        %v1584 = vunpack.c.h.b16 %v1481
        %v1585 = vunpack.c.l.b16 %v1482
        %v1586 = vunpack.c.h.b16 %v1482
        %v1587 = vunpack.c.l.b16 %v1483
        %v1588 = vunpack.c.h.b16 %v1483
        %v1589 = vunpack.c.l.b16 %v1484
        %v1590 = vunpack.c.h.b16 %v1484
        %v1591 = vunpack.c.l.b16 %v1485
        %v1592 = vunpack.c.h.b16 %v1485
        %v1593 = vunpack.c.l.b16 %v1486
        %v1594 = vunpack.c.h.b16 %v1486
        %v1595 = vunpack.c.l.b16 %v1487
        %v1596 = vunpack.c.h.b16 %v1487
        %v1597 = vunpack.c.l.b16 %v1488
        %v1598 = vunpack.c.h.b16 %v1488
        %v1599 = vunpack.c.l.b16 %v1489
        %v1600 = vunpack.c.h.b16 %v1489
        %v1601 = vunpack.c.l.b16 %v1490
        %v1602 = vunpack.c.h.b16 %v1490
        %v1603 = vunpack.c.l.b16 %v1491
        %v1604 = vunpack.c.h.b16 %v1491
        %v1605 = vunpack.c.l.b16 %v1492
        %v1606 = vunpack.c.h.b16 %v1492
        %v1607 = vunpack.c.l.b16 %v1493
        %v1608 = vunpack.c.h.b16 %v1493
        %v1609 = vunpack.c.l.b16 %v1494
        %v1610 = vunpack.c.h.b16 %v1494
        %v1611 = vunpack.c.l.b16 %v1495
        %v1612 = vunpack.c.h.b16 %v1495
        %v1613 = vunpack.c.l.b16 %v1496
        %v1614 = vunpack.c.h.b16 %v1496
        %v1615 = vunpack.c.l.b16 %v1497
        %v1616 = vunpack.c.h.b16 %v1497
        %v1617 = vunpack.c.l.b16 %v1498
        %v1618 = vunpack.c.h.b16 %v1498
        %v1619 = vunpack.c.l.b16 %v1499
        %v1620 = vunpack.c.h.b16 %v1499
        %v1621 = vunpack.c.l.b16 %v1500
        %v1622 = vunpack.c.h.b16 %v1500
        %v1623 = vunpack.c.l.b16 %v1501
        %v1624 = vunpack.c.h.b16 %v1501
        %v1625 = vunpack.c.l.b16 %v1502
        %v1626 = vunpack.c.h.b16 %v1502
        %v1627 = vunpack.c.l.b16 %v1503
        %v1628 = vunpack.c.h.b16 %v1503
        %v1629 = vunpack.c.l.b16 %v1504
        %v1630 = vunpack.c.h.b16 %v1504
        %v1631 = vunpack.c.l.b16 %v1505
        %v1632 = vunpack.c.h.b16 %v1505
        %v1633 = vunpack.c.l.b16 %v1506
        %v1634 = vunpack.c.h.b16 %v1506
        %v1635 = vpack.c.b16 %v1579, %v1575
        %v1636 = vpack.c.b16 %v1580, %v1576
        %v1637 = vpack.c.b16 %v1581, %v1577
        %v1638 = vpack.c.b16 %v1582, %v1578
        %v1639 = vpack.c.b16 %v1587, %v1583
        %v1640 = vpack.c.b16 %v1588, %v1584
        %v1641 = vpack.c.b16 %v1589, %v1585
        %v1642 = vpack.c.b16 %v1590, %v1586
        %v1643 = vpack.c.b16 %v1595, %v1591
        %v1644 = vpack.c.b16 %v1596, %v1592
        %v1645 = vpack.c.b16 %v1597, %v1593
        %v1646 = vpack.c.b16 %v1598, %v1594
        %v1647 = vpack.c.b16 %v1603, %v1599
        %v1648 = vpack.c.b16 %v1604, %v1600
        %v1649 = vpack.c.b16 %v1605, %v1601
        %v1650 = vpack.c.b16 %v1606, %v1602
        %v1651 = vpack.c.b16 %v1611, %v1607
        %v1652 = vpack.c.b16 %v1612, %v1608
        %v1653 = vpack.c.b16 %v1613, %v1609
        %v1654 = vpack.c.b16 %v1614, %v1610
        %v1655 = vpack.c.b16 %v1619, %v1615
        %v1656 = vpack.c.b16 %v1620, %v1616
        %v1657 = vpack.c.b16 %v1621, %v1617
        %v1658 = vpack.c.b16 %v1622, %v1618
        %v1659 = vpack.c.b16 %v1627, %v1623
        %v1660 = vpack.c.b16 %v1628, %v1624
        %v1661 = vpack.c.b16 %v1629, %v1625
        %v1662 = vpack.c.b16 %v1630, %v1626
        %v1663 = vpack.c.b16 %v1631, %v1631
        %v1664 = vpack.c.b16 %v1632, %v1632
        %v1665 = vpack.c.b16 %v1633, %v1633
        %v1666 = vpack.c.b16 %v1634, %v1634
        %v1696 = vsel %vm473, %v1533, 0
        %v1699 = vsel %vm473, %v1541, 0
        %v1702 = vsel %vm473, %v1544, 0
        %v1705 = vsel %vm483, %v1663, 0
        %v1708 = vsel %vm483, %v1664, 0
        %v1711 = vsel %vm483, %v1665, 0
        %v1714 = vsel %vm483, %v1666, 0
        %1716 = vmatprep.subr.bf16.mxu0 %v1636
        %1717 = vmatpush1.bf16.msra.mxu0 %v1635
        %1718 = vmatprep.subr.bf16.mxu0 %v1640
        %1719 = vmatpush1.bf16.msra.mxu0 %v1639
        %1720 = vmatprep.subr.bf16.mxu0 %v1644
        %1721 = vmatpush1.bf16.msra.mxu0 %v1643
        %1722 = vmatprep.subr.bf16.mxu0 %v1648
        %1723 = vmatpush1.bf16.msra.mxu0 %v1647
        %1724 = vmatprep.subr.bf16.mxu0 %v1652
        %1725 = vmatpush1.bf16.msra.mxu0 %v1651
        %1726 = vmatprep.subr.bf16.mxu0 %v1656
        %1727 = vmatpush1.bf16.msra.mxu0 %v1655
        %1728 = vmatprep.subr.bf16.mxu0 %v1660
        %1729 = vmatpush1.bf16.msra.mxu0 %v1659
        %1730 = vmatprep.subr.bf16.mxu0 %v1708
        %1731 = vmatpush1.bf16.msra.mxu0 %v1705
        %1732 = vmatprep.subr.bf16.mxu0 0
        %1733 = vmatpush1.bf16.msra.mxu0 0
        %1734 = vmatprep.subr.bf16.mxu0 0
        %1735 = vmatpush1.bf16.msra.mxu0 0
        %1736 = vmatprep.subr.bf16.mxu0 0
        %1737 = vmatpush1.bf16.msra.mxu0 0
        %1738 = vmatprep.subr.bf16.mxu0 0
        %1739 = vmatpush1.bf16.msra.mxu0 0
        %1740 = vmatprep.subr.bf16.mxu0 0
        %1741 = vmatpush1.bf16.msra.mxu0 0
        %1742 = vmatprep.subr.bf16.mxu0 0
        %1743 = vmatpush1.bf16.msra.mxu0 0
        %1744 = vmatprep.subr.bf16.mxu0 0
        %1745 = vmatpush1.bf16.msra.mxu0 0
        %1746 = vmatprep.subr.bf16.mxu0 0
        %1747 = vmatpush1.bf16.msra.mxu0 0
        %1748 = vmatprep.mubr.bf16.mxu0 0
        %1749 = vmatmul.mubr.bf16.gmra.mrb[0].mxu0 %v1696
        %v1750 = vpop.f32.mrb[0].mxu0
        %v1751 = vadd.f32 0.0, %v1750
        %v1752 = vpop.f32.mrb[0].mxu0
        %v1753 = vadd.f32 0.0, %v1752
        %v1754 = vpop.f32.mrb[0].mxu0
        %v1755 = vadd.f32 0.0, %v1754
        %v1756 = vpop.f32.mrb[0].mxu0
        %v1757 = vadd.f32 0.0, %v1756
        %1758 = vmatprep.mubr.bf16.mxu0 0
        %1759 = vmatmul.mubr.bf16.gmra.mrb[0].mxu0 %v1699
        %v1760 = vpop.f32.mrb[0].mxu0
        %v1761 = vadd.f32 0.0, %v1760
        %v1762 = vpop.f32.mrb[0].mxu0
        %v1763 = vadd.f32 0.0, %v1762
        %v1764 = vpop.f32.mrb[0].mxu0
        %v1765 = vadd.f32 0.0, %v1764
        %v1766 = vpop.f32.mrb[0].mxu0
        %v1767 = vadd.f32 0.0, %v1766
        %1768 = vmatprep.mubr.bf16.mxu0 0
        %1769 = vmatmul.mubr.bf16.gmra.mrb[0].mxu0 %v1702
        %v1770 = vpop.f32.mrb[0].mxu0
        %v1771 = vadd.f32 0.0, %v1770
        %v1772 = vpop.f32.mrb[0].mxu0
        %v1773 = vadd.f32 0.0, %v1772
        %v1774 = vpop.f32.mrb[0].mxu0
        %v1775 = vpop.f32.mrb[0].mxu0
        %1776 = vdwg.mxu0
        %1777 = vmatprep.subr.bf16.mxu0 %v1638
        %1778 = vmatpush1.bf16.msra.mxu0 %v1637
        %1779 = vmatprep.subr.bf16.mxu0 %v1642
        %1780 = vmatpush1.bf16.msra.mxu0 %v1641
        %1781 = vmatprep.subr.bf16.mxu0 %v1646
        %1782 = vmatpush1.bf16.msra.mxu0 %v1645
        %1783 = vmatprep.subr.bf16.mxu0 %v1650
        %1784 = vmatpush1.bf16.msra.mxu0 %v1649
        %1785 = vmatprep.subr.bf16.mxu0 %v1654
        %1786 = vmatpush1.bf16.msra.mxu0 %v1653
        %1787 = vmatprep.subr.bf16.mxu0 %v1658
        %1788 = vmatpush1.bf16.msra.mxu0 %v1657
        %1789 = vmatprep.subr.bf16.mxu0 %v1662
        %1790 = vmatpush1.bf16.msra.mxu0 %v1661
        %1791 = vmatprep.subr.bf16.mxu0 %v1714
        %1792 = vmatpush1.bf16.msra.mxu0 %v1711
        %1793 = vmatprep.subr.bf16.mxu0 0
        %1794 = vmatpush1.bf16.msra.mxu0 0
        %1795 = vmatprep.subr.bf16.mxu0 0
        %1796 = vmatpush1.bf16.msra.mxu0 0
        %1797 = vmatprep.subr.bf16.mxu0 0
        %1798 = vmatpush1.bf16.msra.mxu0 0
        %1799 = vmatprep.subr.bf16.mxu0 0
        %1800 = vmatpush1.bf16.msra.mxu0 0
        %1801 = vmatprep.subr.bf16.mxu0 0
        %1802 = vmatpush1.bf16.msra.mxu0 0
        %1803 = vmatprep.subr.bf16.mxu0 0
        %1804 = vmatpush1.bf16.msra.mxu0 0
        %1805 = vmatprep.subr.bf16.mxu0 0
        %1806 = vmatpush1.bf16.msra.mxu0 0
        %1807 = vmatprep.subr.bf16.mxu0 0
        %1808 = vmatpush1.bf16.msra.mxu0 0
        %1809 = vmatprep.mubr.bf16.mxu0 0
        %1810 = vmatmul.mubr.bf16.gmra.mrb[0].mxu0 %v1696
        %v1811 = vpop.f32.mrb[0].mxu0
        %v1812 = vadd.f32 0.0, %v1811
        %v1813 = vpop.f32.mrb[0].mxu0
        %v1814 = vadd.f32 0.0, %v1813
        %v1815 = vpop.f32.mrb[0].mxu0
        %v1816 = vadd.f32 0.0, %v1815
        %v1817 = vpop.f32.mrb[0].mxu0
        %v1818 = vadd.f32 0.0, %v1817
        %1819 = vmatprep.mubr.bf16.mxu0 0
        %1820 = vmatmul.mubr.bf16.gmra.mrb[0].mxu0 %v1699
        %v1821 = vpop.f32.mrb[0].mxu0
        %v1822 = vadd.f32 0.0, %v1821
        %v1823 = vpop.f32.mrb[0].mxu0
        %v1824 = vadd.f32 0.0, %v1823
        %v1825 = vpop.f32.mrb[0].mxu0
        %v1826 = vadd.f32 0.0, %v1825
        %v1827 = vpop.f32.mrb[0].mxu0
        %v1828 = vadd.f32 0.0, %v1827
        %1829 = vmatprep.mubr.bf16.mxu0 0
        %1830 = vmatmul.mubr.bf16.gmra.mrb[0].mxu0 %v1702
        %v1831 = vpop.f32.mrb[0].mxu0
        %v1832 = vadd.f32 0.0, %v1831
        %v1833 = vpop.f32.mrb[0].mxu0
        %v1834 = vadd.f32 0.0, %v1833
        %v1835 = vpop.f32.mrb[0].mxu0
        %v1836 = vpop.f32.mrb[0].mxu0
        %1837 = vdwg.mxu0
        %v1838 = vld [vmem:[#allocation2] sm:$0xff]
        %v1839 = vld [vmem:[#allocation2 + $0x8] sm:$0xff]
        %v1840 = vld [vmem:[#allocation2 + $0x10] sm:$0xff]
        %v1841 = vld [vmem:[#allocation2 + $0x18] sm:$0xff]
        %v1842 = vld [vmem:[#allocation2 + $0x20] sm:$0xff]
        %v1843 = vld [vmem:[#allocation2 + $0x28] sm:$0xff]
        %v1844 = vld [vmem:[#allocation2 + $0x30] sm:$0xff]
        %v1845 = vld [vmem:[#allocation2 + $0x38] sm:$0xff]
        %v1846 = vld [vmem:[#allocation2 + $0x40] sm:$0xff]
        %v1847 = vld [vmem:[#allocation2 + $0x48] sm:$0xff]
        %v1848 = vld [vmem:[#allocation2 + $0x50] sm:$0xff]
        %v1849 = vld [vmem:[#allocation2 + $0x58] sm:$0xff]
        %v1850 = vld [vmem:[#allocation2 + $0x60] sm:$0xff]
        %v1851 = vld [vmem:[#allocation2 + $0x68] sm:$0xff]
        %v1852 = vld [vmem:[#allocation2 + $0x70] sm:$0xff]
        %v1853 = vld [vmem:[#allocation2 + $0x78] sm:$0xff]
        %v1854 = vld [vmem:[#allocation2 + $0x80] sm:$0xff]
        %v1855 = vld [vmem:[#allocation2 + $0x88] sm:$0xff]
        %v1856 = vld [vmem:[#allocation2 + $0x90] sm:$0xff]
        %v1857 = vld [vmem:[#allocation2 + $0x98] sm:$0xff]
        %v1858 = vadd.f32 %v1838, %v1751
        %v1859 = vadd.f32 %v1839, %v1753
        %v1860 = vadd.f32 %v1840, %v1812
        %v1861 = vadd.f32 %v1841, %v1814
        %v1862 = vadd.f32 %v1842, %v1755
        %v1863 = vadd.f32 %v1843, %v1757
        %v1864 = vadd.f32 %v1844, %v1816
        %v1865 = vadd.f32 %v1845, %v1818
        %v1866 = vadd.f32 %v1846, %v1761
        %v1867 = vadd.f32 %v1847, %v1763
        %v1868 = vadd.f32 %v1848, %v1822
        %v1869 = vadd.f32 %v1849, %v1824
        %v1870 = vadd.f32 %v1850, %v1765
        %v1871 = vadd.f32 %v1851, %v1767
        %v1872 = vadd.f32 %v1852, %v1826
        %v1873 = vadd.f32 %v1853, %v1828
        %v1874 = vadd.f32 %v1854, %v1771
        %v1875 = vadd.f32 %v1855, %v1773
        %v1876 = vadd.f32 %v1856, %v1832
        %v1877 = vadd.f32 %v1857, %v1834
        %1878 = vst [vmem:[#allocation2] sm:$0xff] %v1858
        %1879 = vst [vmem:[#allocation2 + $0x8] sm:$0xff] %v1859
        %1880 = vst [vmem:[#allocation2 + $0x10] sm:$0xff] %v1860
        %1881 = vst [vmem:[#allocation2 + $0x18] sm:$0xff] %v1861
        %1882 = vst [vmem:[#allocation2 + $0x20] sm:$0xff] %v1862
        %1883 = vst [vmem:[#allocation2 + $0x28] sm:$0xff] %v1863
        %1884 = vst [vmem:[#allocation2 + $0x30] sm:$0xff] %v1864
        %1885 = vst [vmem:[#allocation2 + $0x38] sm:$0xff] %v1865
        %1886 = vst [vmem:[#allocation2 + $0x40] sm:$0xff] %v1866
        %1887 = vst [vmem:[#allocation2 + $0x48] sm:$0xff] %v1867
        %1888 = vst [vmem:[#allocation2 + $0x50] sm:$0xff] %v1868
        %1889 = vst [vmem:[#allocation2 + $0x58] sm:$0xff] %v1869
        %1890 = vst [vmem:[#allocation2 + $0x60] sm:$0xff] %v1870
        %1891 = vst [vmem:[#allocation2 + $0x68] sm:$0xff] %v1871
        %1892 = vst [vmem:[#allocation2 + $0x70] sm:$0xff] %v1872
        %1893 = vst [vmem:[#allocation2 + $0x78] sm:$0xff] %v1873
        %1894 = vst [vmem:[#allocation2 + $0x80] sm:$0xff] %v1874
        %1895 = vst [vmem:[#allocation2 + $0x88] sm:$0xff] %v1875
        %1896 = vst [vmem:[#allocation2 + $0x90] sm:$0xff] %v1876
        %1897 = vst [vmem:[#allocation2 + $0x98] sm:$0xff] %v1877
        %v1898 = vld [vmem:[%s234] sm:$0xe]
        %v1899 = vld [vmem:[%s234 + $0x4] sm:$0xf]
        %v1900 = vld [vmem:[%s234 + $0x8] sm:$0xf]
        %v1901 = vld [vmem:[%s234 + $0xc] sm:$0xf]
        %v1902 = vld [vmem:[%s234 + $0x10] sm:$0xf]
        %v1903 = vld [vmem:[%s234 + $0x14] sm:$0x1]
        %s1904 = scalar_lea.vmem [#allocation6], 960
        %v1905 = vld [vmem:[%s1904] sm:$0xff]
        %v1906 = vld [vmem:[%s1904 + $0x8] sm:$0xff]
        %v1907 = vld [vmem:[%s1904 + $0x10] sm:$0xff]
        %v1908 = vld [vmem:[%s1904 + $0x18] sm:$0xff]
        %v1909 = vld [vmem:[%s1904 + $0x20] sm:$0xff]
        %v1910 = vld [vmem:[%s1904 + $0x28] sm:$0xff]
        %v1911 = vld [vmem:[%s1904 + $0x30] sm:$0xff]
        %v1912 = vld [vmem:[%s1904 + $0x38] sm:$0xff]
        %v1913 = vld [vmem:[%s1904 + $0x40] sm:$0xff]
        %v1914 = vld [vmem:[%s1904 + $0x48] sm:$0xff]
        %v1915 = vld [vmem:[%s1904 + $0x50] sm:$0xff]
        %v1916 = vld [vmem:[%s1904 + $0x58] sm:$0xff]
        %v1917 = vld [vmem:[%s1904 + $0x60] sm:$0xff]
        %v1918 = vld [vmem:[%s1904 + $0x68] sm:$0xff]
        %v1919 = vld [vmem:[%s1904 + $0x70] sm:$0xff]
        %v1920 = vld [vmem:[%s1904 + $0x78] sm:$0xff]
        %v1921 = vld [vmem:[%s1904 + $0x80] sm:$0xff]
        %v1922 = vld [vmem:[%s1904 + $0x88] sm:$0xff]
        %v1923 = vld [vmem:[%s1904 + $0x90] sm:$0xff]
        %v1924 = vld [vmem:[%s1904 + $0x98] sm:$0xff]
        %v1925 = vld [vmem:[%s1904 + $0xa0] sm:$0xff]
        %v1926 = vld [vmem:[%s1904 + $0xa8] sm:$0xff]
        %v1927 = vld [vmem:[%s1904 + $0xb0] sm:$0xff]
        %v1928 = vld [vmem:[%s1904 + $0xb8] sm:$0xff]
        %v1929 = vld [vmem:[%s1904 + $0xc0] sm:$0xff]
        %v1930 = vld [vmem:[%s1904 + $0xc8] sm:$0xff]
        %v1931 = vld [vmem:[%s1904 + $0xd0] sm:$0xff]
        %v1932 = vld [vmem:[%s1904 + $0xd8] sm:$0xff]
        %v1933 = vld [vmem:[%s1904 + $0xe0] sm:$0x11]
        %v1934 = vld [vmem:[%s1904 + $0xe8] sm:$0x11]
        %v1941 = vunpack.c.l.b16 %v1898
        %v1942 = vunpack.c.l.b16 %v1899
        %v1943 = vunpack.c.l.b16 %v1900
        %v1944 = vunpack.c.l.b16 %v1901
        %v1945 = vunpack.c.l.b16 %v1902
        %v1946 = vunpack.c.l.b16 %v1903
        %v1947 = vpack.c.b16 %v1942, %v1941
        %v1948 = vpack.c.b16 %v1944, %v1943
        %v1949 = vpack.c.b16 %v1946, %v1945
        %vm1950 = vcmask 1046528
        %v1951 = vrot.slane %v1947, 1
        %v1952 = vrot.slane %v1948, 1
        %v1953 = vsel %vm1950, %v1951, %v1952
        %v1954 = vrot.slane %v1949, 1
        %v1955 = vsel %vm1950, %v1952, %v1954
        %v1986 = vunpack.c.l.b16 %v1905
        %v1987 = vunpack.c.h.b16 %v1905
        %v1988 = vunpack.c.l.b16 %v1906
        %v1989 = vunpack.c.h.b16 %v1906
        %v1990 = vunpack.c.l.b16 %v1907
        %v1991 = vunpack.c.h.b16 %v1907
        %v1992 = vunpack.c.l.b16 %v1908
        %v1993 = vunpack.c.h.b16 %v1908
        %v1994 = vunpack.c.l.b16 %v1909
        %v1995 = vunpack.c.h.b16 %v1909
        %v1996 = vunpack.c.l.b16 %v1910
        %v1997 = vunpack.c.h.b16 %v1910
        %v1998 = vunpack.c.l.b16 %v1911
        %v1999 = vunpack.c.h.b16 %v1911
        %v2000 = vunpack.c.l.b16 %v1912
        %v2001 = vunpack.c.h.b16 %v1912
        %v2002 = vunpack.c.l.b16 %v1913
        %v2003 = vunpack.c.h.b16 %v1913
        %v2004 = vunpack.c.l.b16 %v1914
        %v2005 = vunpack.c.h.b16 %v1914
        %v2006 = vunpack.c.l.b16 %v1915
        %v2007 = vunpack.c.h.b16 %v1915
        %v2008 = vunpack.c.l.b16 %v1916
        %v2009 = vunpack.c.h.b16 %v1916
        %v2010 = vunpack.c.l.b16 %v1917
        %v2011 = vunpack.c.h.b16 %v1917
        %v2012 = vunpack.c.l.b16 %v1918
        %v2013 = vunpack.c.h.b16 %v1918
        %v2014 = vunpack.c.l.b16 %v1919
        %v2015 = vunpack.c.h.b16 %v1919
        %v2016 = vunpack.c.l.b16 %v1920
        %v2017 = vunpack.c.h.b16 %v1920
        %v2018 = vunpack.c.l.b16 %v1921
        %v2019 = vunpack.c.h.b16 %v1921
        %v2020 = vunpack.c.l.b16 %v1922
        %v2021 = vunpack.c.h.b16 %v1922
        %v2022 = vunpack.c.l.b16 %v1923
        %v2023 = vunpack.c.h.b16 %v1923
        %v2024 = vunpack.c.l.b16 %v1924
        %v2025 = vunpack.c.h.b16 %v1924
        %v2026 = vunpack.c.l.b16 %v1925
        %v2027 = vunpack.c.h.b16 %v1925
        %v2028 = vunpack.c.l.b16 %v1926
        %v2029 = vunpack.c.h.b16 %v1926
        %v2030 = vunpack.c.l.b16 %v1927
        %v2031 = vunpack.c.h.b16 %v1927
        %v2032 = vunpack.c.l.b16 %v1928
        %v2033 = vunpack.c.h.b16 %v1928
        %v2034 = vunpack.c.l.b16 %v1929
        %v2035 = vunpack.c.h.b16 %v1929
        %v2036 = vunpack.c.l.b16 %v1930
        %v2037 = vunpack.c.h.b16 %v1930
        %v2038 = vunpack.c.l.b16 %v1931
        %v2039 = vunpack.c.h.b16 %v1931
        %v2040 = vunpack.c.l.b16 %v1932
        %v2041 = vunpack.c.h.b16 %v1932
        %v2042 = vunpack.c.l.b16 %v1933
        %v2043 = vunpack.c.h.b16 %v1933
        %v2044 = vunpack.c.l.b16 %v1934
        %v2045 = vunpack.c.h.b16 %v1934
        %v2046 = vpack.c.b16 %v1990, %v1986
        %v2047 = vpack.c.b16 %v1991, %v1987
        %v2048 = vpack.c.b16 %v1992, %v1988
        %v2049 = vpack.c.b16 %v1993, %v1989
        %v2050 = vpack.c.b16 %v1998, %v1994
        %v2051 = vpack.c.b16 %v1999, %v1995
        %v2052 = vpack.c.b16 %v2000, %v1996
        %v2053 = vpack.c.b16 %v2001, %v1997
        %v2054 = vpack.c.b16 %v2006, %v2002
        %v2055 = vpack.c.b16 %v2007, %v2003
        %v2056 = vpack.c.b16 %v2008, %v2004
        %v2057 = vpack.c.b16 %v2009, %v2005
        %v2058 = vpack.c.b16 %v2014, %v2010
        %v2059 = vpack.c.b16 %v2015, %v2011
        %v2060 = vpack.c.b16 %v2016, %v2012
        %v2061 = vpack.c.b16 %v2017, %v2013
        %v2062 = vpack.c.b16 %v2022, %v2018
        %v2063 = vpack.c.b16 %v2023, %v2019
        %v2064 = vpack.c.b16 %v2024, %v2020
        %v2065 = vpack.c.b16 %v2025, %v2021
        %v2066 = vpack.c.b16 %v2030, %v2026
        %v2067 = vpack.c.b16 %v2031, %v2027
        %v2068 = vpack.c.b16 %v2032, %v2028
        %v2069 = vpack.c.b16 %v2033, %v2029
        %v2070 = vpack.c.b16 %v2038, %v2034
        %v2071 = vpack.c.b16 %v2039, %v2035
        %v2072 = vpack.c.b16 %v2040, %v2036
        %v2073 = vpack.c.b16 %v2041, %v2037
        %v2074 = vpack.c.b16 %v2042, %v2042
        %v2075 = vpack.c.b16 %v2043, %v2043
        %v2076 = vpack.c.b16 %v2044, %v2044
        %v2077 = vpack.c.b16 %v2045, %v2045
        %v2107 = vsel %vm473, %v1953, 0
        %v2110 = vsel %vm473, %v1955, 0
        %v2113 = vsel %vm473, %v1954, 0
        %v2116 = vsel %vm483, %v2074, 0
        %v2119 = vsel %vm483, %v2075, 0
        %v2122 = vsel %vm483, %v2076, 0
        %v2125 = vsel %vm483, %v2077, 0
        %2127 = vmatprep.subr.bf16.mxu0 %v2047
        %2128 = vmatpush1.bf16.msra.mxu0 %v2046
        %2129 = vmatprep.subr.bf16.mxu0 %v2051
        %2130 = vmatpush1.bf16.msra.mxu0 %v2050
        %2131 = vmatprep.subr.bf16.mxu0 %v2055
        %2132 = vmatpush1.bf16.msra.mxu0 %v2054
        %2133 = vmatprep.subr.bf16.mxu0 %v2059
        %2134 = vmatpush1.bf16.msra.mxu0 %v2058
        %2135 = vmatprep.subr.bf16.mxu0 %v2063
        %2136 = vmatpush1.bf16.msra.mxu0 %v2062
        %2137 = vmatprep.subr.bf16.mxu0 %v2067
        %2138 = vmatpush1.bf16.msra.mxu0 %v2066
        %2139 = vmatprep.subr.bf16.mxu0 %v2071
        %2140 = vmatpush1.bf16.msra.mxu0 %v2070
        %2141 = vmatprep.subr.bf16.mxu0 %v2119
        %2142 = vmatpush1.bf16.msra.mxu0 %v2116
        %2143 = vmatprep.subr.bf16.mxu0 0
        %2144 = vmatpush1.bf16.msra.mxu0 0
        %2145 = vmatprep.subr.bf16.mxu0 0
        %2146 = vmatpush1.bf16.msra.mxu0 0
        %2147 = vmatprep.subr.bf16.mxu0 0
        %2148 = vmatpush1.bf16.msra.mxu0 0
        %2149 = vmatprep.subr.bf16.mxu0 0
        %2150 = vmatpush1.bf16.msra.mxu0 0
        %2151 = vmatprep.subr.bf16.mxu0 0
        %2152 = vmatpush1.bf16.msra.mxu0 0
        %2153 = vmatprep.subr.bf16.mxu0 0
        %2154 = vmatpush1.bf16.msra.mxu0 0
        %2155 = vmatprep.subr.bf16.mxu0 0
        %2156 = vmatpush1.bf16.msra.mxu0 0
        %2157 = vmatprep.subr.bf16.mxu0 0
        %2158 = vmatpush1.bf16.msra.mxu0 0
        %2159 = vmatprep.mubr.bf16.mxu0 0
        %2160 = vmatmul.mubr.bf16.gmra.mrb[0].mxu0 %v2107
        %v2161 = vpop.f32.mrb[0].mxu0
        %v2162 = vadd.f32 0.0, %v2161
        %v2163 = vpop.f32.mrb[0].mxu0
        %v2164 = vadd.f32 0.0, %v2163
        %v2165 = vpop.f32.mrb[0].mxu0
        %v2166 = vadd.f32 0.0, %v2165
        %v2167 = vpop.f32.mrb[0].mxu0
        %v2168 = vadd.f32 0.0, %v2167
        %2169 = vmatprep.mubr.bf16.mxu0 0
        %2170 = vmatmul.mubr.bf16.gmra.mrb[0].mxu0 %v2110
        %v2171 = vpop.f32.mrb[0].mxu0
        %v2172 = vadd.f32 0.0, %v2171
        %v2173 = vpop.f32.mrb[0].mxu0
        %v2174 = vadd.f32 0.0, %v2173
        %v2175 = vpop.f32.mrb[0].mxu0
        %v2176 = vadd.f32 0.0, %v2175
        %v2177 = vpop.f32.mrb[0].mxu0
        %v2178 = vadd.f32 0.0, %v2177
        %2179 = vmatprep.mubr.bf16.mxu0 0
        %2180 = vmatmul.mubr.bf16.gmra.mrb[0].mxu0 %v2113
        %v2181 = vpop.f32.mrb[0].mxu0
        %v2182 = vadd.f32 0.0, %v2181
        %v2183 = vpop.f32.mrb[0].mxu0
        %v2184 = vadd.f32 0.0, %v2183
        %v2185 = vpop.f32.mrb[0].mxu0
        %v2186 = vpop.f32.mrb[0].mxu0
        %2187 = vdwg.mxu0
        %2188 = vmatprep.subr.bf16.mxu0 %v2049
        %2189 = vmatpush1.bf16.msra.mxu0 %v2048
        %2190 = vmatprep.subr.bf16.mxu0 %v2053
        %2191 = vmatpush1.bf16.msra.mxu0 %v2052
        %2192 = vmatprep.subr.bf16.mxu0 %v2057
        %2193 = vmatpush1.bf16.msra.mxu0 %v2056
        %2194 = vmatprep.subr.bf16.mxu0 %v2061
        %2195 = vmatpush1.bf16.msra.mxu0 %v2060
        %2196 = vmatprep.subr.bf16.mxu0 %v2065
        %2197 = vmatpush1.bf16.msra.mxu0 %v2064
        %2198 = vmatprep.subr.bf16.mxu0 %v2069
        %2199 = vmatpush1.bf16.msra.mxu0 %v2068
        %2200 = vmatprep.subr.bf16.mxu0 %v2073
        %2201 = vmatpush1.bf16.msra.mxu0 %v2072
        %2202 = vmatprep.subr.bf16.mxu0 %v2125
        %2203 = vmatpush1.bf16.msra.mxu0 %v2122
        %2204 = vmatprep.subr.bf16.mxu0 0
        %2205 = vmatpush1.bf16.msra.mxu0 0
        %2206 = vmatprep.subr.bf16.mxu0 0
        %2207 = vmatpush1.bf16.msra.mxu0 0
        %2208 = vmatprep.subr.bf16.mxu0 0
        %2209 = vmatpush1.bf16.msra.mxu0 0
        %2210 = vmatprep.subr.bf16.mxu0 0
        %2211 = vmatpush1.bf16.msra.mxu0 0
        %2212 = vmatprep.subr.bf16.mxu0 0
        %2213 = vmatpush1.bf16.msra.mxu0 0
        %2214 = vmatprep.subr.bf16.mxu0 0
        %2215 = vmatpush1.bf16.msra.mxu0 0
        %2216 = vmatprep.subr.bf16.mxu0 0
        %2217 = vmatpush1.bf16.msra.mxu0 0
        %2218 = vmatprep.subr.bf16.mxu0 0
        %2219 = vmatpush1.bf16.msra.mxu0 0
        %2220 = vmatprep.mubr.bf16.mxu0 0
        %2221 = vmatmul.mubr.bf16.gmra.mrb[0].mxu0 %v2107
        %v2222 = vpop.f32.mrb[0].mxu0
        %v2223 = vadd.f32 0.0, %v2222
        %v2224 = vpop.f32.mrb[0].mxu0
        %v2225 = vadd.f32 0.0, %v2224
        %v2226 = vpop.f32.mrb[0].mxu0
        %v2227 = vadd.f32 0.0, %v2226
        %v2228 = vpop.f32.mrb[0].mxu0
        %v2229 = vadd.f32 0.0, %v2228
        %2230 = vmatprep.mubr.bf16.mxu0 0
        %2231 = vmatmul.mubr.bf16.gmra.mrb[0].mxu0 %v2110
        %v2232 = vpop.f32.mrb[0].mxu0
        %v2233 = vadd.f32 0.0, %v2232
        %v2234 = vpop.f32.mrb[0].mxu0
        %v2235 = vadd.f32 0.0, %v2234
        %v2236 = vpop.f32.mrb[0].mxu0
        %v2237 = vadd.f32 0.0, %v2236
        %v2238 = vpop.f32.mrb[0].mxu0
        %v2239 = vadd.f32 0.0, %v2238
        %2240 = vmatprep.mubr.bf16.mxu0 0
        %2241 = vmatmul.mubr.bf16.gmra.mrb[0].mxu0 %v2113
        %v2242 = vpop.f32.mrb[0].mxu0
        %v2243 = vadd.f32 0.0, %v2242
        %v2244 = vpop.f32.mrb[0].mxu0
        %v2245 = vadd.f32 0.0, %v2244
        %v2246 = vpop.f32.mrb[0].mxu0
        %v2247 = vpop.f32.mrb[0].mxu0
        %2248 = vdwg.mxu0
        %v2249 = vld [vmem:[#allocation2] sm:$0xff]
        %v2250 = vld [vmem:[#allocation2 + $0x8] sm:$0xff]
        %v2251 = vld [vmem:[#allocation2 + $0x10] sm:$0xff]
        %v2252 = vld [vmem:[#allocation2 + $0x18] sm:$0xff]
        %v2253 = vld [vmem:[#allocation2 + $0x20] sm:$0xff]
        %v2254 = vld [vmem:[#allocation2 + $0x28] sm:$0xff]
        %v2255 = vld [vmem:[#allocation2 + $0x30] sm:$0xff]
        %v2256 = vld [vmem:[#allocation2 + $0x38] sm:$0xff]
        %v2257 = vld [vmem:[#allocation2 + $0x40] sm:$0xff]
        %v2258 = vld [vmem:[#allocation2 + $0x48] sm:$0xff]
        %v2259 = vld [vmem:[#allocation2 + $0x50] sm:$0xff]
        %v2260 = vld [vmem:[#allocation2 + $0x58] sm:$0xff]
        %v2261 = vld [vmem:[#allocation2 + $0x60] sm:$0xff]
        %v2262 = vld [vmem:[#allocation2 + $0x68] sm:$0xff]
        %v2263 = vld [vmem:[#allocation2 + $0x70] sm:$0xff]
        %v2264 = vld [vmem:[#allocation2 + $0x78] sm:$0xff]
        %v2265 = vld [vmem:[#allocation2 + $0x80] sm:$0xff]
        %v2266 = vld [vmem:[#allocation2 + $0x88] sm:$0xff]
        %v2267 = vld [vmem:[#allocation2 + $0x90] sm:$0xff]
        %v2268 = vld [vmem:[#allocation2 + $0x98] sm:$0xff]
        %v2269 = vadd.f32 %v2249, %v2162
        %v2270 = vadd.f32 %v2250, %v2164
        %v2271 = vadd.f32 %v2251, %v2223
        %v2272 = vadd.f32 %v2252, %v2225
        %v2273 = vadd.f32 %v2253, %v2166
        %v2274 = vadd.f32 %v2254, %v2168
        %v2275 = vadd.f32 %v2255, %v2227
        %v2276 = vadd.f32 %v2256, %v2229
        %v2277 = vadd.f32 %v2257, %v2172
        %v2278 = vadd.f32 %v2258, %v2174
        %v2279 = vadd.f32 %v2259, %v2233
        %v2280 = vadd.f32 %v2260, %v2235
        %v2281 = vadd.f32 %v2261, %v2176
        %v2282 = vadd.f32 %v2262, %v2178
        %v2283 = vadd.f32 %v2263, %v2237
        %v2284 = vadd.f32 %v2264, %v2239
        %v2285 = vadd.f32 %v2265, %v2182
        %v2286 = vadd.f32 %v2266, %v2184
        %v2287 = vadd.f32 %v2267, %v2243
        %v2288 = vadd.f32 %v2268, %v2245
        %2289 = vst [vmem:[#allocation2] sm:$0xff] %v2269
        %2290 = vst [vmem:[#allocation2 + $0x8] sm:$0xff] %v2270
        %2291 = vst [vmem:[#allocation2 + $0x10] sm:$0xff] %v2271
        %2292 = vst [vmem:[#allocation2 + $0x18] sm:$0xff] %v2272
        %2293 = vst [vmem:[#allocation2 + $0x20] sm:$0xff] %v2273
        %2294 = vst [vmem:[#allocation2 + $0x28] sm:$0xff] %v2274
        %2295 = vst [vmem:[#allocation2 + $0x30] sm:$0xff] %v2275
        %2296 = vst [vmem:[#allocation2 + $0x38] sm:$0xff] %v2276
        %2297 = vst [vmem:[#allocation2 + $0x40] sm:$0xff] %v2277
        %2298 = vst [vmem:[#allocation2 + $0x48] sm:$0xff] %v2278
        %2299 = vst [vmem:[#allocation2 + $0x50] sm:$0xff] %v2279
        %2300 = vst [vmem:[#allocation2 + $0x58] sm:$0xff] %v2280
        %2301 = vst [vmem:[#allocation2 + $0x60] sm:$0xff] %v2281
        %2302 = vst [vmem:[#allocation2 + $0x68] sm:$0xff] %v2282
        %2303 = vst [vmem:[#allocation2 + $0x70] sm:$0xff] %v2283
        %2304 = vst [vmem:[#allocation2 + $0x78] sm:$0xff] %v2284
        %2305 = vst [vmem:[#allocation2 + $0x80] sm:$0xff] %v2285
        %2306 = vst [vmem:[#allocation2 + $0x88] sm:$0xff] %v2286
        %2307 = vst [vmem:[#allocation2 + $0x90] sm:$0xff] %v2287
        %2308 = vst [vmem:[#allocation2 + $0x98] sm:$0xff] %v2288
        %v2309 = vld [vmem:[%s638] sm:$0xe]
        %v2310 = vld [vmem:[%s638 + $0x4] sm:$0xf]
        %v2311 = vld [vmem:[%s638 + $0x8] sm:$0xf]
        %v2312 = vld [vmem:[%s638 + $0xc] sm:$0xf]
        %v2313 = vld [vmem:[%s638 + $0x10] sm:$0xf]
        %v2314 = vld [vmem:[%s638 + $0x14] sm:$0x1]
        %s2315 = scalar_lea.vmem [#allocation6], 1200
        %v2316 = vld [vmem:[%s2315] sm:$0xff]
        %v2317 = vld [vmem:[%s2315 + $0x8] sm:$0xff]
        %v2318 = vld [vmem:[%s2315 + $0x10] sm:$0xff]
        %v2319 = vld [vmem:[%s2315 + $0x18] sm:$0xff]
        %v2320 = vld [vmem:[%s2315 + $0x20] sm:$0xff]
        %v2321 = vld [vmem:[%s2315 + $0x28] sm:$0xff]
        %v2322 = vld [vmem:[%s2315 + $0x30] sm:$0xff]
        %v2323 = vld [vmem:[%s2315 + $0x38] sm:$0xff]
        %v2324 = vld [vmem:[%s2315 + $0x40] sm:$0xff]
        %v2325 = vld [vmem:[%s2315 + $0x48] sm:$0xff]
        %v2326 = vld [vmem:[%s2315 + $0x50] sm:$0xff]
        %v2327 = vld [vmem:[%s2315 + $0x58] sm:$0xff]
        %v2328 = vld [vmem:[%s2315 + $0x60] sm:$0xff]
        %v2329 = vld [vmem:[%s2315 + $0x68] sm:$0xff]
        %v2330 = vld [vmem:[%s2315 + $0x70] sm:$0xff]
        %v2331 = vld [vmem:[%s2315 + $0x78] sm:$0xff]
        %v2332 = vld [vmem:[%s2315 + $0x80] sm:$0xff]
        %v2333 = vld [vmem:[%s2315 + $0x88] sm:$0xff]
        %v2334 = vld [vmem:[%s2315 + $0x90] sm:$0xff]
        %v2335 = vld [vmem:[%s2315 + $0x98] sm:$0xff]
        %v2336 = vld [vmem:[%s2315 + $0xa0] sm:$0xff]
        %v2337 = vld [vmem:[%s2315 + $0xa8] sm:$0xff]
        %v2338 = vld [vmem:[%s2315 + $0xb0] sm:$0xff]
        %v2339 = vld [vmem:[%s2315 + $0xb8] sm:$0xff]
        %v2340 = vld [vmem:[%s2315 + $0xc0] sm:$0xff]
        %v2341 = vld [vmem:[%s2315 + $0xc8] sm:$0xff]
        %v2342 = vld [vmem:[%s2315 + $0xd0] sm:$0xff]
        %v2343 = vld [vmem:[%s2315 + $0xd8] sm:$0xff]
        %v2344 = vld [vmem:[%s2315 + $0xe0] sm:$0x11]
        %v2345 = vld [vmem:[%s2315 + $0xe8] sm:$0x11]
        %v2352 = vunpack.c.l.b16 %v2309
        %v2353 = vunpack.c.l.b16 %v2310
        %v2354 = vunpack.c.l.b16 %v2311
        %v2355 = vunpack.c.l.b16 %v2312
        %v2356 = vunpack.c.l.b16 %v2313
        %v2357 = vunpack.c.l.b16 %v2314
        %v2358 = vpack.c.b16 %v2353, %v2352
        %v2359 = vpack.c.b16 %v2355, %v2354
        %v2360 = vpack.c.b16 %v2357, %v2356
        %v2361 = vrot.slane %v2358, 1
        %v2362 = vrot.slane %v2359, 1
        %v2363 = vsel %vm1950, %v2361, %v2362
        %v2364 = vrot.slane %v2360, 1
        %v2365 = vsel %vm1950, %v2362, %v2364
        %v2396 = vunpack.c.l.b16 %v2316
        %v2397 = vunpack.c.h.b16 %v2316
        %v2398 = vunpack.c.l.b16 %v2317
        %v2399 = vunpack.c.h.b16 %v2317
        %v2400 = vunpack.c.l.b16 %v2318
        %v2401 = vunpack.c.h.b16 %v2318
        %v2402 = vunpack.c.l.b16 %v2319
        %v2403 = vunpack.c.h.b16 %v2319
        %v2404 = vunpack.c.l.b16 %v2320
        %v2405 = vunpack.c.h.b16 %v2320
        %v2406 = vunpack.c.l.b16 %v2321
        %v2407 = vunpack.c.h.b16 %v2321
        %v2408 = vunpack.c.l.b16 %v2322
        %v2409 = vunpack.c.h.b16 %v2322
        %v2410 = vunpack.c.l.b16 %v2323
        %v2411 = vunpack.c.h.b16 %v2323
        %v2412 = vunpack.c.l.b16 %v2324
        %v2413 = vunpack.c.h.b16 %v2324
        %v2414 = vunpack.c.l.b16 %v2325
        %v2415 = vunpack.c.h.b16 %v2325
        %v2416 = vunpack.c.l.b16 %v2326
        %v2417 = vunpack.c.h.b16 %v2326
        %v2418 = vunpack.c.l.b16 %v2327
        %v2419 = vunpack.c.h.b16 %v2327
        %v2420 = vunpack.c.l.b16 %v2328
        %v2421 = vunpack.c.h.b16 %v2328
        %v2422 = vunpack.c.l.b16 %v2329
        %v2423 = vunpack.c.h.b16 %v2329
        %v2424 = vunpack.c.l.b16 %v2330
        %v2425 = vunpack.c.h.b16 %v2330
        %v2426 = vunpack.c.l.b16 %v2331
        %v2427 = vunpack.c.h.b16 %v2331
        %v2428 = vunpack.c.l.b16 %v2332
        %v2429 = vunpack.c.h.b16 %v2332
        %v2430 = vunpack.c.l.b16 %v2333
        %v2431 = vunpack.c.h.b16 %v2333
        %v2432 = vunpack.c.l.b16 %v2334
        %v2433 = vunpack.c.h.b16 %v2334
        %v2434 = vunpack.c.l.b16 %v2335
        %v2435 = vunpack.c.h.b16 %v2335
        %v2436 = vunpack.c.l.b16 %v2336
        %v2437 = vunpack.c.h.b16 %v2336
        %v2438 = vunpack.c.l.b16 %v2337
        %v2439 = vunpack.c.h.b16 %v2337
        %v2440 = vunpack.c.l.b16 %v2338
        %v2441 = vunpack.c.h.b16 %v2338
        %v2442 = vunpack.c.l.b16 %v2339
        %v2443 = vunpack.c.h.b16 %v2339
        %v2444 = vunpack.c.l.b16 %v2340
        %v2445 = vunpack.c.h.b16 %v2340
        %v2446 = vunpack.c.l.b16 %v2341
        %v2447 = vunpack.c.h.b16 %v2341
        %v2448 = vunpack.c.l.b16 %v2342
        %v2449 = vunpack.c.h.b16 %v2342
        %v2450 = vunpack.c.l.b16 %v2343
        %v2451 = vunpack.c.h.b16 %v2343
        %v2452 = vunpack.c.l.b16 %v2344
        %v2453 = vunpack.c.h.b16 %v2344
        %v2454 = vunpack.c.l.b16 %v2345
        %v2455 = vunpack.c.h.b16 %v2345
        %v2456 = vpack.c.b16 %v2400, %v2396
        %v2457 = vpack.c.b16 %v2401, %v2397
        %v2458 = vpack.c.b16 %v2402, %v2398
        %v2459 = vpack.c.b16 %v2403, %v2399
        %v2460 = vpack.c.b16 %v2408, %v2404
        %v2461 = vpack.c.b16 %v2409, %v2405
        %v2462 = vpack.c.b16 %v2410, %v2406
        %v2463 = vpack.c.b16 %v2411, %v2407
        %v2464 = vpack.c.b16 %v2416, %v2412
        %v2465 = vpack.c.b16 %v2417, %v2413
        %v2466 = vpack.c.b16 %v2418, %v2414
        %v2467 = vpack.c.b16 %v2419, %v2415
        %v2468 = vpack.c.b16 %v2424, %v2420
        %v2469 = vpack.c.b16 %v2425, %v2421
        %v2470 = vpack.c.b16 %v2426, %v2422
        %v2471 = vpack.c.b16 %v2427, %v2423
        %v2472 = vpack.c.b16 %v2432, %v2428
        %v2473 = vpack.c.b16 %v2433, %v2429
        %v2474 = vpack.c.b16 %v2434, %v2430
        %v2475 = vpack.c.b16 %v2435, %v2431
        %v2476 = vpack.c.b16 %v2440, %v2436
        %v2477 = vpack.c.b16 %v2441, %v2437
        %v2478 = vpack.c.b16 %v2442, %v2438
        %v2479 = vpack.c.b16 %v2443, %v2439
        %v2480 = vpack.c.b16 %v2448, %v2444
        %v2481 = vpack.c.b16 %v2449, %v2445
        %v2482 = vpack.c.b16 %v2450, %v2446
        %v2483 = vpack.c.b16 %v2451, %v2447
        %v2484 = vpack.c.b16 %v2452, %v2452
        %v2485 = vpack.c.b16 %v2453, %v2453
        %v2486 = vpack.c.b16 %v2454, %v2454
        %v2487 = vpack.c.b16 %v2455, %v2455
        %v2517 = vsel %vm473, %v2363, 0
        %v2520 = vsel %vm473, %v2365, 0
        %v2523 = vsel %vm473, %v2364, 0
        %v2526 = vsel %vm483, %v2484, 0
        %v2529 = vsel %vm483, %v2485, 0
        %v2532 = vsel %vm483, %v2486, 0
        %v2535 = vsel %vm483, %v2487, 0
        %2537 = vmatprep.subr.bf16.mxu0 %v2457
        %2538 = vmatpush1.bf16.msra.mxu0 %v2456
        %2539 = vmatprep.subr.bf16.mxu0 %v2461
        %2540 = vmatpush1.bf16.msra.mxu0 %v2460
        %2541 = vmatprep.subr.bf16.mxu0 %v2465
        %2542 = vmatpush1.bf16.msra.mxu0 %v2464
        %2543 = vmatprep.subr.bf16.mxu0 %v2469
        %2544 = vmatpush1.bf16.msra.mxu0 %v2468
        %2545 = vmatprep.subr.bf16.mxu0 %v2473
        %2546 = vmatpush1.bf16.msra.mxu0 %v2472
        %2547 = vmatprep.subr.bf16.mxu0 %v2477
        %2548 = vmatpush1.bf16.msra.mxu0 %v2476
        %2549 = vmatprep.subr.bf16.mxu0 %v2481
        %2550 = vmatpush1.bf16.msra.mxu0 %v2480
        %2551 = vmatprep.subr.bf16.mxu0 %v2529
        %2552 = vmatpush1.bf16.msra.mxu0 %v2526
        %2553 = vmatprep.subr.bf16.mxu0 0
        %2554 = vmatpush1.bf16.msra.mxu0 0
        %2555 = vmatprep.subr.bf16.mxu0 0
        %2556 = vmatpush1.bf16.msra.mxu0 0
        %2557 = vmatprep.subr.bf16.mxu0 0
        %2558 = vmatpush1.bf16.msra.mxu0 0
        %2559 = vmatprep.subr.bf16.mxu0 0
        %2560 = vmatpush1.bf16.msra.mxu0 0
        %2561 = vmatprep.subr.bf16.mxu0 0
        %2562 = vmatpush1.bf16.msra.mxu0 0
        %2563 = vmatprep.subr.bf16.mxu0 0
        %2564 = vmatpush1.bf16.msra.mxu0 0
        %2565 = vmatprep.subr.bf16.mxu0 0
        %2566 = vmatpush1.bf16.msra.mxu0 0
        %2567 = vmatprep.subr.bf16.mxu0 0
        %2568 = vmatpush1.bf16.msra.mxu0 0
        %2569 = vmatprep.mubr.bf16.mxu0 0
        %2570 = vmatmul.mubr.bf16.gmra.mrb[0].mxu0 %v2517
        %v2571 = vpop.f32.mrb[0].mxu0
        %v2572 = vadd.f32 0.0, %v2571
        %v2573 = vpop.f32.mrb[0].mxu0
        %v2574 = vadd.f32 0.0, %v2573
        %v2575 = vpop.f32.mrb[0].mxu0
        %v2576 = vadd.f32 0.0, %v2575
        %v2577 = vpop.f32.mrb[0].mxu0
        %v2578 = vadd.f32 0.0, %v2577
        %2579 = vmatprep.mubr.bf16.mxu0 0
        %2580 = vmatmul.mubr.bf16.gmra.mrb[0].mxu0 %v2520
        %v2581 = vpop.f32.mrb[0].mxu0
        %v2582 = vadd.f32 0.0, %v2581
        %v2583 = vpop.f32.mrb[0].mxu0
        %v2584 = vadd.f32 0.0, %v2583
        %v2585 = vpop.f32.mrb[0].mxu0
        %v2586 = vadd.f32 0.0, %v2585
        %v2587 = vpop.f32.mrb[0].mxu0
        %v2588 = vadd.f32 0.0, %v2587
        %2589 = vmatprep.mubr.bf16.mxu0 0
        %2590 = vmatmul.mubr.bf16.gmra.mrb[0].mxu0 %v2523
        %v2591 = vpop.f32.mrb[0].mxu0
        %v2592 = vadd.f32 0.0, %v2591
        %v2593 = vpop.f32.mrb[0].mxu0
        %v2594 = vadd.f32 0.0, %v2593
        %v2595 = vpop.f32.mrb[0].mxu0
        %v2596 = vpop.f32.mrb[0].mxu0
        %2597 = vdwg.mxu0
        %2598 = vmatprep.subr.bf16.mxu0 %v2459
        %2599 = vmatpush1.bf16.msra.mxu0 %v2458
        %2600 = vmatprep.subr.bf16.mxu0 %v2463
        %2601 = vmatpush1.bf16.msra.mxu0 %v2462
        %2602 = vmatprep.subr.bf16.mxu0 %v2467
        %2603 = vmatpush1.bf16.msra.mxu0 %v2466
        %2604 = vmatprep.subr.bf16.mxu0 %v2471
        %2605 = vmatpush1.bf16.msra.mxu0 %v2470
        %2606 = vmatprep.subr.bf16.mxu0 %v2475
        %2607 = vmatpush1.bf16.msra.mxu0 %v2474
        %2608 = vmatprep.subr.bf16.mxu0 %v2479
        %2609 = vmatpush1.bf16.msra.mxu0 %v2478
        %2610 = vmatprep.subr.bf16.mxu0 %v2483
        %2611 = vmatpush1.bf16.msra.mxu0 %v2482
        %2612 = vmatprep.subr.bf16.mxu0 %v2535
        %2613 = vmatpush1.bf16.msra.mxu0 %v2532
        %2614 = vmatprep.subr.bf16.mxu0 0
        %2615 = vmatpush1.bf16.msra.mxu0 0
        %2616 = vmatprep.subr.bf16.mxu0 0
        %2617 = vmatpush1.bf16.msra.mxu0 0
        %2618 = vmatprep.subr.bf16.mxu0 0
        %2619 = vmatpush1.bf16.msra.mxu0 0
        %2620 = vmatprep.subr.bf16.mxu0 0
        %2621 = vmatpush1.bf16.msra.mxu0 0
        %2622 = vmatprep.subr.bf16.mxu0 0
        %2623 = vmatpush1.bf16.msra.mxu0 0
        %2624 = vmatprep.subr.bf16.mxu0 0
        %2625 = vmatpush1.bf16.msra.mxu0 0
        %2626 = vmatprep.subr.bf16.mxu0 0
        %2627 = vmatpush1.bf16.msra.mxu0 0
        %2628 = vmatprep.subr.bf16.mxu0 0
        %2629 = vmatpush1.bf16.msra.mxu0 0
        %2630 = vmatprep.mubr.bf16.mxu0 0
        %2631 = vmatmul.mubr.bf16.gmra.mrb[0].mxu0 %v2517
        %v2632 = vpop.f32.mrb[0].mxu0
        %v2633 = vadd.f32 0.0, %v2632
        %v2634 = vpop.f32.mrb[0].mxu0
        %v2635 = vadd.f32 0.0, %v2634
        %v2636 = vpop.f32.mrb[0].mxu0
        %v2637 = vadd.f32 0.0, %v2636
        %v2638 = vpop.f32.mrb[0].mxu0
        %v2639 = vadd.f32 0.0, %v2638
        %2640 = vmatprep.mubr.bf16.mxu0 0
        %2641 = vmatmul.mubr.bf16.gmra.mrb[0].mxu0 %v2520
        %v2642 = vpop.f32.mrb[0].mxu0
        %v2643 = vadd.f32 0.0, %v2642
        %v2644 = vpop.f32.mrb[0].mxu0
        %v2645 = vadd.f32 0.0, %v2644
        %v2646 = vpop.f32.mrb[0].mxu0
        %v2647 = vadd.f32 0.0, %v2646
        %v2648 = vpop.f32.mrb[0].mxu0
        %v2649 = vadd.f32 0.0, %v2648
        %2650 = vmatprep.mubr.bf16.mxu0 0
        %2651 = vmatmul.mubr.bf16.gmra.mrb[0].mxu0 %v2523
        %v2652 = vpop.f32.mrb[0].mxu0
        %v2653 = vadd.f32 0.0, %v2652
        %v2654 = vpop.f32.mrb[0].mxu0
        %v2655 = vadd.f32 0.0, %v2654
        %v2656 = vpop.f32.mrb[0].mxu0
        %v2657 = vpop.f32.mrb[0].mxu0
        %2658 = vdwg.mxu0
        %v2659 = vld [vmem:[#allocation2] sm:$0xff]
        %v2660 = vld [vmem:[#allocation2 + $0x8] sm:$0xff]
        %v2661 = vld [vmem:[#allocation2 + $0x10] sm:$0xff]
        %v2662 = vld [vmem:[#allocation2 + $0x18] sm:$0xff]
        %v2663 = vld [vmem:[#allocation2 + $0x20] sm:$0xff]
        %v2664 = vld [vmem:[#allocation2 + $0x28] sm:$0xff]
        %v2665 = vld [vmem:[#allocation2 + $0x30] sm:$0xff]
        %v2666 = vld [vmem:[#allocation2 + $0x38] sm:$0xff]
        %v2667 = vld [vmem:[#allocation2 + $0x40] sm:$0xff]
        %v2668 = vld [vmem:[#allocation2 + $0x48] sm:$0xff]
        %v2669 = vld [vmem:[#allocation2 + $0x50] sm:$0xff]
        %v2670 = vld [vmem:[#allocation2 + $0x58] sm:$0xff]
        %v2671 = vld [vmem:[#allocation2 + $0x60] sm:$0xff]
        %v2672 = vld [vmem:[#allocation2 + $0x68] sm:$0xff]
        %v2673 = vld [vmem:[#allocation2 + $0x70] sm:$0xff]
        %v2674 = vld [vmem:[#allocation2 + $0x78] sm:$0xff]
        %v2675 = vld [vmem:[#allocation2 + $0x80] sm:$0xff]
        %v2676 = vld [vmem:[#allocation2 + $0x88] sm:$0xff]
        %v2677 = vld [vmem:[#allocation2 + $0x90] sm:$0xff]
        %v2678 = vld [vmem:[#allocation2 + $0x98] sm:$0xff]
        %v2679 = vadd.f32 %v2659, %v2572
        %v2680 = vadd.f32 %v2660, %v2574
        %v2681 = vadd.f32 %v2661, %v2633
        %v2682 = vadd.f32 %v2662, %v2635
        %v2683 = vadd.f32 %v2663, %v2576
        %v2684 = vadd.f32 %v2664, %v2578
        %v2685 = vadd.f32 %v2665, %v2637
        %v2686 = vadd.f32 %v2666, %v2639
        %v2687 = vadd.f32 %v2667, %v2582
        %v2688 = vadd.f32 %v2668, %v2584
        %v2689 = vadd.f32 %v2669, %v2643
        %v2690 = vadd.f32 %v2670, %v2645
        %v2691 = vadd.f32 %v2671, %v2586
        %v2692 = vadd.f32 %v2672, %v2588
        %v2693 = vadd.f32 %v2673, %v2647
        %v2694 = vadd.f32 %v2674, %v2649
        %v2695 = vadd.f32 %v2675, %v2592
        %v2696 = vadd.f32 %v2676, %v2594
        %v2697 = vadd.f32 %v2677, %v2653
        %v2698 = vadd.f32 %v2678, %v2655
        %2699 = vst [vmem:[#allocation2] sm:$0xff] %v2679
        %2700 = vst [vmem:[#allocation2 + $0x8] sm:$0xff] %v2680
        %2701 = vst [vmem:[#allocation2 + $0x10] sm:$0xff] %v2681
        %2702 = vst [vmem:[#allocation2 + $0x18] sm:$0xff] %v2682
        %2703 = vst [vmem:[#allocation2 + $0x20] sm:$0xff] %v2683
        %2704 = vst [vmem:[#allocation2 + $0x28] sm:$0xff] %v2684
        %2705 = vst [vmem:[#allocation2 + $0x30] sm:$0xff] %v2685
        %2706 = vst [vmem:[#allocation2 + $0x38] sm:$0xff] %v2686
        %2707 = vst [vmem:[#allocation2 + $0x40] sm:$0xff] %v2687
        %2708 = vst [vmem:[#allocation2 + $0x48] sm:$0xff] %v2688
        %2709 = vst [vmem:[#allocation2 + $0x50] sm:$0xff] %v2689
        %2710 = vst [vmem:[#allocation2 + $0x58] sm:$0xff] %v2690
        %2711 = vst [vmem:[#allocation2 + $0x60] sm:$0xff] %v2691
        %2712 = vst [vmem:[#allocation2 + $0x68] sm:$0xff] %v2692
        %2713 = vst [vmem:[#allocation2 + $0x70] sm:$0xff] %v2693
        %2714 = vst [vmem:[#allocation2 + $0x78] sm:$0xff] %v2694
        %2715 = vst [vmem:[#allocation2 + $0x80] sm:$0xff] %v2695
        %2716 = vst [vmem:[#allocation2 + $0x88] sm:$0xff] %v2696
        %2717 = vst [vmem:[#allocation2 + $0x90] sm:$0xff] %v2697
        %2718 = vst [vmem:[#allocation2 + $0x98] sm:$0xff] %v2698
        %v2719 = vld [vmem:[%s234] sm:$0xe]
        %v2720 = vld [vmem:[%s234 + $0x4] sm:$0xf]
        %v2721 = vld [vmem:[%s234 + $0x8] sm:$0xf]
        %v2722 = vld [vmem:[%s234 + $0xc] sm:$0xf]
        %v2723 = vld [vmem:[%s234 + $0x10] sm:$0xf]
        %v2724 = vld [vmem:[%s234 + $0x14] sm:$0x3]
        %s2725 = scalar_lea.vmem [#allocation6], 1440
        %v2726 = vld [vmem:[%s2725] sm:$0xff]
        %v2727 = vld [vmem:[%s2725 + $0x8] sm:$0xff]
        %v2728 = vld [vmem:[%s2725 + $0x10] sm:$0xff]
        %v2729 = vld [vmem:[%s2725 + $0x18] sm:$0xff]
        %v2730 = vld [vmem:[%s2725 + $0x20] sm:$0xff]
        %v2731 = vld [vmem:[%s2725 + $0x28] sm:$0xff]
        %v2732 = vld [vmem:[%s2725 + $0x30] sm:$0xff]
        %v2733 = vld [vmem:[%s2725 + $0x38] sm:$0xff]
        %v2734 = vld [vmem:[%s2725 + $0x40] sm:$0xff]
        %v2735 = vld [vmem:[%s2725 + $0x48] sm:$0xff]
        %v2736 = vld [vmem:[%s2725 + $0x50] sm:$0xff]
        %v2737 = vld [vmem:[%s2725 + $0x58] sm:$0xff]
        %v2738 = vld [vmem:[%s2725 + $0x60] sm:$0xff]
        %v2739 = vld [vmem:[%s2725 + $0x68] sm:$0xff]
        %v2740 = vld [vmem:[%s2725 + $0x70] sm:$0xff]
        %v2741 = vld [vmem:[%s2725 + $0x78] sm:$0xff]
        %v2742 = vld [vmem:[%s2725 + $0x80] sm:$0xff]
        %v2743 = vld [vmem:[%s2725 + $0x88] sm:$0xff]
        %v2744 = vld [vmem:[%s2725 + $0x90] sm:$0xff]
        %v2745 = vld [vmem:[%s2725 + $0x98] sm:$0xff]
        %v2746 = vld [vmem:[%s2725 + $0xa0] sm:$0xff]
        %v2747 = vld [vmem:[%s2725 + $0xa8] sm:$0xff]
        %v2748 = vld [vmem:[%s2725 + $0xb0] sm:$0xff]
        %v2749 = vld [vmem:[%s2725 + $0xb8] sm:$0xff]
        %v2750 = vld [vmem:[%s2725 + $0xc0] sm:$0xff]
        %v2751 = vld [vmem:[%s2725 + $0xc8] sm:$0xff]
        %v2752 = vld [vmem:[%s2725 + $0xd0] sm:$0xff]
        %v2753 = vld [vmem:[%s2725 + $0xd8] sm:$0xff]
        %v2754 = vld [vmem:[%s2725 + $0xe0] sm:$0x11]
        %v2755 = vld [vmem:[%s2725 + $0xe8] sm:$0x11]
        %v2762 = vunpack.c.l.b16 %v2719
        %v2763 = vunpack.c.l.b16 %v2720
        %v2764 = vunpack.c.l.b16 %v2721
        %v2765 = vunpack.c.l.b16 %v2722
        %v2766 = vunpack.c.l.b16 %v2723
        %v2767 = vunpack.c.l.b16 %v2724
        %v2768 = vpack.c.b16 %v2763, %v2762
        %v2769 = vpack.c.b16 %v2765, %v2764
        %v2770 = vpack.c.b16 %v2767, %v2766
        %vm2771 = vsmask.f32 6400
        %v2773 = vshrl.u32 %v2768, 16
        %v2775 = vrot.slane %v2773, 1
        %v2776 = vshll.u32 %v2768, 16
        %v2778 = vrot.slane %v2776, 2
        %v2779 = vor.u32 %v2775, %v2778
        %v2781 = vshrl.u32 %v2769, 16
        %v2783 = vrot.slane %v2781, 1
        %v2784 = vshll.u32 %v2769, 16
        %v2786 = vrot.slane %v2784, 2
        %v2787 = vor.u32 %v2783, %v2786
        %v2788 = vsel %vm2771, %v2779, %v2787
        %v2790 = vshrl.u32 %v2770, 16
        %v2792 = vrot.slane %v2790, 1
        %v2793 = vshll.u32 %v2770, 16
        %v2795 = vrot.slane %v2793, 2
        %v2796 = vor.u32 %v2792, %v2795
        %v2797 = vsel %vm2771, %v2787, %v2796
        %v2828 = vunpack.c.l.b16 %v2726
        %v2829 = vunpack.c.h.b16 %v2726
        %v2830 = vunpack.c.l.b16 %v2727
        %v2831 = vunpack.c.h.b16 %v2727
        %v2832 = vunpack.c.l.b16 %v2728
        %v2833 = vunpack.c.h.b16 %v2728
        %v2834 = vunpack.c.l.b16 %v2729
        %v2835 = vunpack.c.h.b16 %v2729
        %v2836 = vunpack.c.l.b16 %v2730
        %v2837 = vunpack.c.h.b16 %v2730
        %v2838 = vunpack.c.l.b16 %v2731
        %v2839 = vunpack.c.h.b16 %v2731
        %v2840 = vunpack.c.l.b16 %v2732
        %v2841 = vunpack.c.h.b16 %v2732
        %v2842 = vunpack.c.l.b16 %v2733
        %v2843 = vunpack.c.h.b16 %v2733
        %v2844 = vunpack.c.l.b16 %v2734
        %v2845 = vunpack.c.h.b16 %v2734
        %v2846 = vunpack.c.l.b16 %v2735
        %v2847 = vunpack.c.h.b16 %v2735
        %v2848 = vunpack.c.l.b16 %v2736
        %v2849 = vunpack.c.h.b16 %v2736
        %v2850 = vunpack.c.l.b16 %v2737
        %v2851 = vunpack.c.h.b16 %v2737
        %v2852 = vunpack.c.l.b16 %v2738
        %v2853 = vunpack.c.h.b16 %v2738
        %v2854 = vunpack.c.l.b16 %v2739
        %v2855 = vunpack.c.h.b16 %v2739
        %v2856 = vunpack.c.l.b16 %v2740
        %v2857 = vunpack.c.h.b16 %v2740
        %v2858 = vunpack.c.l.b16 %v2741
        %v2859 = vunpack.c.h.b16 %v2741
        %v2860 = vunpack.c.l.b16 %v2742
        %v2861 = vunpack.c.h.b16 %v2742
        %v2862 = vunpack.c.l.b16 %v2743
        %v2863 = vunpack.c.h.b16 %v2743
        %v2864 = vunpack.c.l.b16 %v2744
        %v2865 = vunpack.c.h.b16 %v2744
        %v2866 = vunpack.c.l.b16 %v2745
        %v2867 = vunpack.c.h.b16 %v2745
        %v2868 = vunpack.c.l.b16 %v2746
        %v2869 = vunpack.c.h.b16 %v2746
        %v2870 = vunpack.c.l.b16 %v2747
        %v2871 = vunpack.c.h.b16 %v2747
        %v2872 = vunpack.c.l.b16 %v2748
        %v2873 = vunpack.c.h.b16 %v2748
        %v2874 = vunpack.c.l.b16 %v2749
        %v2875 = vunpack.c.h.b16 %v2749
        %v2876 = vunpack.c.l.b16 %v2750
        %v2877 = vunpack.c.h.b16 %v2750
        %v2878 = vunpack.c.l.b16 %v2751
        %v2879 = vunpack.c.h.b16 %v2751
        %v2880 = vunpack.c.l.b16 %v2752
        %v2881 = vunpack.c.h.b16 %v2752
        %v2882 = vunpack.c.l.b16 %v2753
        %v2883 = vunpack.c.h.b16 %v2753
        %v2884 = vunpack.c.l.b16 %v2754
        %v2885 = vunpack.c.h.b16 %v2754
        %v2886 = vunpack.c.l.b16 %v2755
        %v2887 = vunpack.c.h.b16 %v2755
        %v2888 = vpack.c.b16 %v2832, %v2828
        %v2889 = vpack.c.b16 %v2833, %v2829
        %v2890 = vpack.c.b16 %v2834, %v2830
        %v2891 = vpack.c.b16 %v2835, %v2831
        %v2892 = vpack.c.b16 %v2840, %v2836
        %v2893 = vpack.c.b16 %v2841, %v2837
        %v2894 = vpack.c.b16 %v2842, %v2838
        %v2895 = vpack.c.b16 %v2843, %v2839
        %v2896 = vpack.c.b16 %v2848, %v2844
        %v2897 = vpack.c.b16 %v2849, %v2845
        %v2898 = vpack.c.b16 %v2850, %v2846
        %v2899 = vpack.c.b16 %v2851, %v2847
        %v2900 = vpack.c.b16 %v2856, %v2852
        %v2901 = vpack.c.b16 %v2857, %v2853
        %v2902 = vpack.c.b16 %v2858, %v2854
        %v2903 = vpack.c.b16 %v2859, %v2855
        %v2904 = vpack.c.b16 %v2864, %v2860
        %v2905 = vpack.c.b16 %v2865, %v2861
        %v2906 = vpack.c.b16 %v2866, %v2862
        %v2907 = vpack.c.b16 %v2867, %v2863
        %v2908 = vpack.c.b16 %v2872, %v2868
        %v2909 = vpack.c.b16 %v2873, %v2869
        %v2910 = vpack.c.b16 %v2874, %v2870
        %v2911 = vpack.c.b16 %v2875, %v2871
        %v2912 = vpack.c.b16 %v2880, %v2876
        %v2913 = vpack.c.b16 %v2881, %v2877
        %v2914 = vpack.c.b16 %v2882, %v2878
        %v2915 = vpack.c.b16 %v2883, %v2879
        %v2916 = vpack.c.b16 %v2884, %v2884
        %v2917 = vpack.c.b16 %v2885, %v2885
        %v2918 = vpack.c.b16 %v2886, %v2886
        %v2919 = vpack.c.b16 %v2887, %v2887
        %v2949 = vsel %vm473, %v2788, 0
        %v2952 = vsel %vm473, %v2797, 0
        %v2955 = vsel %vm473, %v2796, 0
        %v2958 = vsel %vm483, %v2916, 0
        %v2961 = vsel %vm483, %v2917, 0
        %v2964 = vsel %vm483, %v2918, 0
        %v2967 = vsel %vm483, %v2919, 0
        %2969 = vmatprep.subr.bf16.mxu0 %v2889
        %2970 = vmatpush1.bf16.msra.mxu0 %v2888
        %2971 = vmatprep.subr.bf16.mxu0 %v2893
        %2972 = vmatpush1.bf16.msra.mxu0 %v2892
        %2973 = vmatprep.subr.bf16.mxu0 %v2897
        %2974 = vmatpush1.bf16.msra.mxu0 %v2896
        %2975 = vmatprep.subr.bf16.mxu0 %v2901
        %2976 = vmatpush1.bf16.msra.mxu0 %v2900
        %2977 = vmatprep.subr.bf16.mxu0 %v2905
        %2978 = vmatpush1.bf16.msra.mxu0 %v2904
        %2979 = vmatprep.subr.bf16.mxu0 %v2909
        %2980 = vmatpush1.bf16.msra.mxu0 %v2908
        %2981 = vmatprep.subr.bf16.mxu0 %v2913
        %2982 = vmatpush1.bf16.msra.mxu0 %v2912
        %2983 = vmatprep.subr.bf16.mxu0 %v2961
        %2984 = vmatpush1.bf16.msra.mxu0 %v2958
        %2985 = vmatprep.subr.bf16.mxu0 0
        %2986 = vmatpush1.bf16.msra.mxu0 0
        %2987 = vmatprep.subr.bf16.mxu0 0
        %2988 = vmatpush1.bf16.msra.mxu0 0
        %2989 = vmatprep.subr.bf16.mxu0 0
        %2990 = vmatpush1.bf16.msra.mxu0 0
        %2991 = vmatprep.subr.bf16.mxu0 0
        %2992 = vmatpush1.bf16.msra.mxu0 0
        %2993 = vmatprep.subr.bf16.mxu0 0
        %2994 = vmatpush1.bf16.msra.mxu0 0
        %2995 = vmatprep.subr.bf16.mxu0 0
        %2996 = vmatpush1.bf16.msra.mxu0 0
        %2997 = vmatprep.subr.bf16.mxu0 0
        %2998 = vmatpush1.bf16.msra.mxu0 0
        %2999 = vmatprep.subr.bf16.mxu0 0
        %3000 = vmatpush1.bf16.msra.mxu0 0
        %3001 = vmatprep.mubr.bf16.mxu0 0
        %3002 = vmatmul.mubr.bf16.gmra.mrb[0].mxu0 %v2949
        %v3003 = vpop.f32.mrb[0].mxu0
        %v3004 = vadd.f32 0.0, %v3003
        %v3005 = vpop.f32.mrb[0].mxu0
        %v3006 = vadd.f32 0.0, %v3005
        %v3007 = vpop.f32.mrb[0].mxu0
        %v3008 = vadd.f32 0.0, %v3007
        %v3009 = vpop.f32.mrb[0].mxu0
        %v3010 = vadd.f32 0.0, %v3009
        %3011 = vmatprep.mubr.bf16.mxu0 0
        %3012 = vmatmul.mubr.bf16.gmra.mrb[0].mxu0 %v2952
        %v3013 = vpop.f32.mrb[0].mxu0
        %v3014 = vadd.f32 0.0, %v3013
        %v3015 = vpop.f32.mrb[0].mxu0
        %v3016 = vadd.f32 0.0, %v3015
        %v3017 = vpop.f32.mrb[0].mxu0
        %v3018 = vadd.f32 0.0, %v3017
        %v3019 = vpop.f32.mrb[0].mxu0
        %v3020 = vadd.f32 0.0, %v3019
        %3021 = vmatprep.mubr.bf16.mxu0 0
        %3022 = vmatmul.mubr.bf16.gmra.mrb[0].mxu0 %v2955
        %v3023 = vpop.f32.mrb[0].mxu0
        %v3024 = vadd.f32 0.0, %v3023
        %v3025 = vpop.f32.mrb[0].mxu0
        %v3026 = vadd.f32 0.0, %v3025
        %v3027 = vpop.f32.mrb[0].mxu0
        %v3028 = vpop.f32.mrb[0].mxu0
        %3029 = vdwg.mxu0
        %3030 = vmatprep.subr.bf16.mxu0 %v2891
        %3031 = vmatpush1.bf16.msra.mxu0 %v2890
        %3032 = vmatprep.subr.bf16.mxu0 %v2895
        %3033 = vmatpush1.bf16.msra.mxu0 %v2894
        %3034 = vmatprep.subr.bf16.mxu0 %v2899
        %3035 = vmatpush1.bf16.msra.mxu0 %v2898
        %3036 = vmatprep.subr.bf16.mxu0 %v2903
        %3037 = vmatpush1.bf16.msra.mxu0 %v2902
        %3038 = vmatprep.subr.bf16.mxu0 %v2907
        %3039 = vmatpush1.bf16.msra.mxu0 %v2906
        %3040 = vmatprep.subr.bf16.mxu0 %v2911
        %3041 = vmatpush1.bf16.msra.mxu0 %v2910
        %3042 = vmatprep.subr.bf16.mxu0 %v2915
        %3043 = vmatpush1.bf16.msra.mxu0 %v2914
        %3044 = vmatprep.subr.bf16.mxu0 %v2967
        %3045 = vmatpush1.bf16.msra.mxu0 %v2964
        %3046 = vmatprep.subr.bf16.mxu0 0
        %3047 = vmatpush1.bf16.msra.mxu0 0
        %3048 = vmatprep.subr.bf16.mxu0 0
        %3049 = vmatpush1.bf16.msra.mxu0 0
        %3050 = vmatprep.subr.bf16.mxu0 0
        %3051 = vmatpush1.bf16.msra.mxu0 0
        %3052 = vmatprep.subr.bf16.mxu0 0
        %3053 = vmatpush1.bf16.msra.mxu0 0
        %3054 = vmatprep.subr.bf16.mxu0 0
        %3055 = vmatpush1.bf16.msra.mxu0 0
        %3056 = vmatprep.subr.bf16.mxu0 0
        %3057 = vmatpush1.bf16.msra.mxu0 0
        %3058 = vmatprep.subr.bf16.mxu0 0
        %3059 = vmatpush1.bf16.msra.mxu0 0
        %3060 = vmatprep.subr.bf16.mxu0 0
        %3061 = vmatpush1.bf16.msra.mxu0 0
        %3062 = vmatprep.mubr.bf16.mxu0 0
        %3063 = vmatmul.mubr.bf16.gmra.mrb[0].mxu0 %v2949
        %v3064 = vpop.f32.mrb[0].mxu0
        %v3065 = vadd.f32 0.0, %v3064
        %v3066 = vpop.f32.mrb[0].mxu0
        %v3067 = vadd.f32 0.0, %v3066
        %v3068 = vpop.f32.mrb[0].mxu0
        %v3069 = vadd.f32 0.0, %v3068
        %v3070 = vpop.f32.mrb[0].mxu0
        %v3071 = vadd.f32 0.0, %v3070
        %3072 = vmatprep.mubr.bf16.mxu0 0
        %3073 = vmatmul.mubr.bf16.gmra.mrb[0].mxu0 %v2952
        %v3074 = vpop.f32.mrb[0].mxu0
        %v3075 = vadd.f32 0.0, %v3074
        %v3076 = vpop.f32.mrb[0].mxu0
        %v3077 = vadd.f32 0.0, %v3076
        %v3078 = vpop.f32.mrb[0].mxu0
        %v3079 = vadd.f32 0.0, %v3078
        %v3080 = vpop.f32.mrb[0].mxu0
        %v3081 = vadd.f32 0.0, %v3080
        %3082 = vmatprep.mubr.bf16.mxu0 0
        %3083 = vmatmul.mubr.bf16.gmra.mrb[0].mxu0 %v2955
        %v3084 = vpop.f32.mrb[0].mxu0
        %v3085 = vadd.f32 0.0, %v3084
        %v3086 = vpop.f32.mrb[0].mxu0
        %v3087 = vadd.f32 0.0, %v3086
        %v3088 = vpop.f32.mrb[0].mxu0
        %v3089 = vpop.f32.mrb[0].mxu0
        %3090 = vdwg.mxu0
        %v3091 = vld [vmem:[#allocation2] sm:$0xff]
        %v3092 = vld [vmem:[#allocation2 + $0x8] sm:$0xff]
        %v3093 = vld [vmem:[#allocation2 + $0x10] sm:$0xff]
        %v3094 = vld [vmem:[#allocation2 + $0x18] sm:$0xff]
        %v3095 = vld [vmem:[#allocation2 + $0x20] sm:$0xff]
        %v3096 = vld [vmem:[#allocation2 + $0x28] sm:$0xff]
        %v3097 = vld [vmem:[#allocation2 + $0x30] sm:$0xff]
        %v3098 = vld [vmem:[#allocation2 + $0x38] sm:$0xff]
        %v3099 = vld [vmem:[#allocation2 + $0x40] sm:$0xff]
        %v3100 = vld [vmem:[#allocation2 + $0x48] sm:$0xff]
        %v3101 = vld [vmem:[#allocation2 + $0x50] sm:$0xff]
        %v3102 = vld [vmem:[#allocation2 + $0x58] sm:$0xff]
        %v3103 = vld [vmem:[#allocation2 + $0x60] sm:$0xff]
        %v3104 = vld [vmem:[#allocation2 + $0x68] sm:$0xff]
        %v3105 = vld [vmem:[#allocation2 + $0x70] sm:$0xff]
        %v3106 = vld [vmem:[#allocation2 + $0x78] sm:$0xff]
        %v3107 = vld [vmem:[#allocation2 + $0x80] sm:$0xff]
        %v3108 = vld [vmem:[#allocation2 + $0x88] sm:$0xff]
        %v3109 = vld [vmem:[#allocation2 + $0x90] sm:$0xff]
        %v3110 = vld [vmem:[#allocation2 + $0x98] sm:$0xff]
        %v3111 = vadd.f32 %v3091, %v3004
        %v3112 = vadd.f32 %v3092, %v3006
        %v3113 = vadd.f32 %v3093, %v3065
        %v3114 = vadd.f32 %v3094, %v3067
        %v3115 = vadd.f32 %v3095, %v3008
        %v3116 = vadd.f32 %v3096, %v3010
        %v3117 = vadd.f32 %v3097, %v3069
        %v3118 = vadd.f32 %v3098, %v3071
        %v3119 = vadd.f32 %v3099, %v3014
        %v3120 = vadd.f32 %v3100, %v3016
        %v3121 = vadd.f32 %v3101, %v3075
        %v3122 = vadd.f32 %v3102, %v3077
        %v3123 = vadd.f32 %v3103, %v3018
        %v3124 = vadd.f32 %v3104, %v3020
        %v3125 = vadd.f32 %v3105, %v3079
        %v3126 = vadd.f32 %v3106, %v3081
        %v3127 = vadd.f32 %v3107, %v3024
        %v3128 = vadd.f32 %v3108, %v3026
        %v3129 = vadd.f32 %v3109, %v3085
        %v3130 = vadd.f32 %v3110, %v3087
        %3131 = vst [vmem:[#allocation2] sm:$0xff] %v3111
        %3132 = vst [vmem:[#allocation2 + $0x8] sm:$0xff] %v3112
        %3133 = vst [vmem:[#allocation2 + $0x10] sm:$0xff] %v3113
        %3134 = vst [vmem:[#allocation2 + $0x18] sm:$0xff] %v3114
        %3135 = vst [vmem:[#allocation2 + $0x20] sm:$0xff] %v3115
        %3136 = vst [vmem:[#allocation2 + $0x28] sm:$0xff] %v3116
        %3137 = vst [vmem:[#allocation2 + $0x30] sm:$0xff] %v3117
        %3138 = vst [vmem:[#allocation2 + $0x38] sm:$0xff] %v3118
        %3139 = vst [vmem:[#allocation2 + $0x40] sm:$0xff] %v3119
        %3140 = vst [vmem:[#allocation2 + $0x48] sm:$0xff] %v3120
        %3141 = vst [vmem:[#allocation2 + $0x50] sm:$0xff] %v3121
        %3142 = vst [vmem:[#allocation2 + $0x58] sm:$0xff] %v3122
        %3143 = vst [vmem:[#allocation2 + $0x60] sm:$0xff] %v3123
        %3144 = vst [vmem:[#allocation2 + $0x68] sm:$0xff] %v3124
        %3145 = vst [vmem:[#allocation2 + $0x70] sm:$0xff] %v3125
        %3146 = vst [vmem:[#allocation2 + $0x78] sm:$0xff] %v3126
        %3147 = vst [vmem:[#allocation2 + $0x80] sm:$0xff] %v3127
        %3148 = vst [vmem:[#allocation2 + $0x88] sm:$0xff] %v3128
        %3149 = vst [vmem:[#allocation2 + $0x90] sm:$0xff] %v3129
        %3150 = vst [vmem:[#allocation2 + $0x98] sm:$0xff] %v3130
        %v3151 = vld [vmem:[#allocation2] sm:$0xff]
        %v3152 = vld [vmem:[#allocation2 + $0x8] sm:$0xff]
        %v3153 = vld [vmem:[#allocation2 + $0x10] sm:$0xff]
        %v3154 = vld [vmem:[#allocation2 + $0x18] sm:$0xff]
        %v3155 = vld [vmem:[#allocation2 + $0x20] sm:$0xff]
        %v3156 = vld [vmem:[#allocation2 + $0x28] sm:$0xff]
        %v3157 = vld [vmem:[#allocation2 + $0x30] sm:$0xff]
        %v3158 = vld [vmem:[#allocation2 + $0x38] sm:$0xff]
        %v3159 = vld [vmem:[%s270] sm:$0xf]
        %v3161 = vlaneseq
        %v3162 = vshrl.u32 %v3161, 7
        %v3163 = vsub.s32 0, %v3162
        %v3164 = vrot.slane %v3159, %v3163
        %v3165 = vlaneseq
        %v3166 = vshrl.u32 %v3165, 7
        %v3167 = vsub.s32 1, %v3166
        %v3168 = vrot.slane %v3159, %v3167
        %v3169 = vlaneseq
        %v3170 = vshrl.u32 %v3169, 7
        %v3171 = vsub.s32 2, %v3170
        %v3172 = vrot.slane %v3159, %v3171
        %v3173 = vlaneseq
        %v3174 = vshrl.u32 %v3173, 7
        %v3175 = vsub.s32 3, %v3174
        %v3176 = vrot.slane %v3159, %v3175
        %v3181 = vadd.f32 %v3151, %v3164
        %v3182 = vadd.f32 %v3152, %v3168
        %v3183 = vadd.f32 %v3153, %v3172
        %v3184 = vadd.f32 %v3154, %v3176
        %v3185 = vadd.f32 %v3155, %v3164
        %v3186 = vadd.f32 %v3156, %v3168
        %v3187 = vadd.f32 %v3157, %v3172
        %v3188 = vadd.f32 %v3158, %v3176
        %v3189 = vmax.f32 %v3181, 0.0
        %v3190 = vmax.f32 %v3182, 0.0
        %v3191 = vmax.f32 %v3183, 0.0
        %v3192 = vmax.f32 %v3184, 0.0
        %v3193 = vmax.f32 %v3185, 0.0
        %v3194 = vmax.f32 %v3186, 0.0
        %v3195 = vmax.f32 %v3187, 0.0
        %v3196 = vmax.f32 %v3188, 0.0
        %v3197 = vpack.c.bf16 %v3193, %v3189
        %v3198 = vpack.c.bf16 %v3194, %v3190
        %v3199 = vpack.c.bf16 %v3195, %v3191
        %v3200 = vpack.c.bf16 %v3196, %v3192
        %v3205 = vunpack.c.l.b16 %v3197
        %v3206 = vunpack.c.l.b16 %v3198
        %v3207 = vunpack.c.l.b16 %v3199
        %v3208 = vunpack.c.l.b16 %v3200
        %v3209 = vunpack.c.h.b16 %v3197
        %v3210 = vunpack.c.h.b16 %v3198
        %v3211 = vunpack.c.h.b16 %v3199
        %v3212 = vunpack.c.h.b16 %v3200
        %v3213 = vpack.c.b16 %v3206, %v3205
        %v3214 = vpack.c.b16 %v3208, %v3207
        %v3215 = vpack.c.b16 %v3210, %v3209
        %v3216 = vpack.c.b16 %v3212, %v3211
        %3221 = vst [vmem:[%s264] sm:$0xff] %v3213
        %3222 = vst [vmem:[%s264 + $0x8] sm:$0xff] %v3214
        %3223 = vst [vmem:[%s264 + $0x10] sm:$0xff] %v3215
        %3224 = vst [vmem:[%s264 + $0x18] sm:$0xff] %v3216
        %v3225 = vld [vmem:[#allocation2 + $0x60] sm:$0xff]
        %v3226 = vld [vmem:[#allocation2 + $0x68] sm:$0xff]
        %v3227 = vld [vmem:[#allocation2 + $0x70] sm:$0xff]
        %v3228 = vld [vmem:[#allocation2 + $0x78] sm:$0xff]
        %v3229 = vld [vmem:[#allocation2 + $0x80] sm:$0xff]
        %v3230 = vld [vmem:[#allocation2 + $0x88] sm:$0xff]
        %v3231 = vld [vmem:[#allocation2 + $0x90] sm:$0xff]
        %v3232 = vld [vmem:[#allocation2 + $0x98] sm:$0xff]
        %v3233 = vld [vmem:[%s270] sm:$0xf]
        %v3235 = vlaneseq
        %v3236 = vshrl.u32 %v3235, 7
        %v3237 = vsub.s32 0, %v3236
        %v3238 = vrot.slane %v3233, %v3237
        %v3239 = vlaneseq
        %v3240 = vshrl.u32 %v3239, 7
        %v3241 = vsub.s32 1, %v3240
        %v3242 = vrot.slane %v3233, %v3241
        %v3243 = vlaneseq
        %v3244 = vshrl.u32 %v3243, 7
        %v3245 = vsub.s32 2, %v3244
        %v3246 = vrot.slane %v3233, %v3245
        %v3247 = vlaneseq
        %v3248 = vshrl.u32 %v3247, 7
        %v3249 = vsub.s32 3, %v3248
        %v3250 = vrot.slane %v3233, %v3249
        %v3255 = vadd.f32 %v3225, %v3238
        %v3256 = vadd.f32 %v3226, %v3242
        %v3257 = vadd.f32 %v3227, %v3246
        %v3258 = vadd.f32 %v3228, %v3250
        %v3259 = vadd.f32 %v3229, %v3238
        %v3260 = vadd.f32 %v3230, %v3242
        %v3261 = vadd.f32 %v3231, %v3246
        %v3262 = vadd.f32 %v3232, %v3250
        %v3263 = vmax.f32 %v3255, 0.0
        %v3264 = vmax.f32 %v3256, 0.0
        %v3265 = vmax.f32 %v3257, 0.0
        %v3266 = vmax.f32 %v3258, 0.0
        %v3267 = vmax.f32 %v3259, 0.0
        %v3268 = vmax.f32 %v3260, 0.0
        %v3269 = vmax.f32 %v3261, 0.0
        %v3270 = vmax.f32 %v3262, 0.0
        %v3271 = vpack.c.bf16 %v3267, %v3263
        %v3272 = vpack.c.bf16 %v3268, %v3264
        %v3273 = vpack.c.bf16 %v3269, %v3265
        %v3274 = vpack.c.bf16 %v3270, %v3266
        %v3279 = vunpack.c.l.b16 %v3271
        %v3280 = vunpack.c.l.b16 %v3272
        %v3281 = vunpack.c.l.b16 %v3273
        %v3282 = vunpack.c.l.b16 %v3274
        %v3283 = vunpack.c.h.b16 %v3271
        %v3284 = vunpack.c.h.b16 %v3272
        %v3285 = vunpack.c.h.b16 %v3273
        %v3286 = vunpack.c.h.b16 %v3274
        %v3287 = vpack.c.b16 %v3280, %v3279
        %v3288 = vpack.c.b16 %v3282, %v3281
        %v3289 = vpack.c.b16 %v3284, %v3283
        %v3290 = vpack.c.b16 %v3286, %v3285
        %s3295 = scalar_lea.vmem %s264, 32 [#allocation8]
        %3296 = vst [vmem:[%s3295] sm:$0xff] %v3287
        %3297 = vst [vmem:[%s3295 + $0x8] sm:$0xff] %v3288
        %3298 = vst [vmem:[%s3295 + $0x10] sm:$0xff] %v3289
        %3299 = vst [vmem:[%s3295 + $0x18] sm:$0xff] %v3290
        %s3300 = sand.u32 %s121, 1
        %s3301 = scalar_lea.sflag [#allocation5], %s3300
        %s3302 = sand.u32 %s121, 1
        %s3303 = smul.addr %s3302, 64
        %s3304 = scalar_lea.vmem [#allocation8], %s3303
        // Predicated region
        $region41: #{tpu_custom_call.1} parent=31 // pred_check
          %p3305 = pneg %p131
        $region42: #{tpu_custom_call.1} parent=31 // pred_check_branch
          %3307 = sbr.rel (%p3305) target = $region44
        $region43: #{tpu_custom_call.1} parent=31 // pred_region
          %s3308 = smul.u32 2, %s25
          %s3309 = smul.u32 4, %s26
          %s3311 = ssub.s32 1024, 1024
          %3312 = vsyncadd %s3301, %s3311
          %s3313 = smul.addr %s3308, 8
          %s3314 = sadd.s32 %s3309, %s3313
          %s3315 = smul.addr %s3314, 64
          %s3316 = scalar_lea.hbm %s3, %s3315
          %s3317 = sshll.u32 %s3304, 4
          %s3318 = int_to_ptr.vmem [resolvable:$true] %s3317
          %3323 = dma.vmem_to_hbm [thread:$0]  %s3318, 1024, %s3316, %s3301, 256, 256, 16
        $region44: #{tpu_custom_call.1} parent=31 // pred_fallthru
          _
      $region32: #{tpu_custom_call.1} parent=5 // pred_fallthru
        _
      %p3324 = scmp.le.s32.totalorder 2, %s16
      // Predicated region
      $region45: #{tpu_custom_call.1} parent=5 // pred_check
        %p3325 = pneg %p3324
      $region46: #{tpu_custom_call.1} parent=5 // pred_check_branch
        %3327 = sbr.rel (%p3325) target = $region48
      $region47: #{tpu_custom_call.1} parent=5 // pred_region
        %s3328 = ssub.s32 %s16, 2
        // Predicated region
        $region49: #{tpu_custom_call.1} parent=47 // pred_check
          %p3329 = pneg %p137
        $region50: #{tpu_custom_call.1} parent=47 // pred_check_branch
          %3331 = sbr.rel (%p3329) target = $region52
        $region51: #{tpu_custom_call.1} parent=47 // pred_region
          %s3332 = sand.u32 %s122, 1
          %s3333 = scalar_lea.sflag [#allocation5], %s3332
          %s3334 = sand.u32 %s122, 1
          %s3335 = smul.addr %s3334, 64
          %s3336 = scalar_lea.vmem [#allocation8], %s3335
          %3337 = dma.done %s3333, 1024
        $region52: #{tpu_custom_call.1} parent=47 // pred_fallthru
          _
      $region48: #{tpu_custom_call.1} parent=5 // pred_fallthru
        _
    $region6: #{tpu_custom_call.1} parent=1 // loop_footer
      %s20 = sadd.s32 1, %s16
    $region7: #{tpu_custom_call.1} parent=1 // loop_footer_branch
      %15 = sbr.rel target = $region3
    $region8: #{tpu_custom_call.1} parent=1 // loop_exit
      _
    %3338 = vsyncpa [#allocation4], 1
    %s3339 = scalar_lea.sflag [#allocation4], 1
    %3340 = vsyncpa %s3339, 1
    %3341 = vsyncpa [#allocation7], 1
    %3342 = vsyncpa [#allocation5], 1
    %s3343 = scalar_lea.sflag [#allocation5], 1
    %3344 = vsyncpa %s3343, 1

</llo_original>
